<compile_context>
chip_gen: v5e
topology: v5e:2x2
jax: 0.10.0
libtpu: 0.0.40
codegen_flags: <defaults>
</compile_context>

<pallas_src>
import jax
import jax.numpy as jnp
from jax.experimental import pallas as pl
from jax.experimental.pallas import tpu as pltpu

LANE = 128
WL = 16   # left W-halo width in scratch (interior starts tile-aligned for f32 & bf16)
WR = 16   # right W-halo width in scratch


def _round_up(x, m):
    return (x + m - 1) // m * m


def _im2col_3x3(buf_ref, rows, W):
    """(rows+2, WL+W+WR, C) padded scratch ref -> (rows*W, 9*C) im2col patches.

    Contraction index ordered (kh, kw, c), matching the host-side weight layout.
    Lane-axis concat pieces are C (multiple of 128) wide -> tile aligned.
    """
    C = buf_ref.shape[-1]
    cols = [buf_ref[kh:kh + rows, WL - 1 + kw:WL - 1 + kw + W, :]
            for kh in range(3) for kw in range(3)]
    return jnp.concatenate(cols, axis=-1).reshape(rows * W, 9 * C)


def basic_block_kernel(x_ref, w1_ref, b1_ref, w2_ref, b2_ref, out_ref,
                       xpad_sc, mid_sc):
    # x_ref:   (1, H, W, Cp)        full (lane-dense) input image, f32,
    #                               resident across the H-tile grid axis
    # w1_ref:  (9*Cp, Pp)           conv1 weights (BN1 scale folded), compute dtype
    # b1_ref:  (1, Pp)              BN1 bias, f32
    # w2_ref:  (9*Pp, Pp)           conv2 weights (BN2 scale folded), compute dtype
    # b2_ref:  (1, Pp)              BN2 bias, f32
    # out_ref: (1, Ht, W, Pp)       lane-dense output tile, f32
    # xpad_sc: (Ht+4, WL+W+WR, Cp)  padded input rows [h0-2, h0+Ht+2), compute dtype
    # mid_sc:  (Ht+2, WL+W+WR, Pp)  padded conv1 out rows [h0-1, h0+Ht+1), compute dtype
    H = x_ref.shape[1]
    Ht, W, Pp = out_ref.shape[1], out_ref.shape[2], out_ref.shape[3]
    Cp = x_ref.shape[3]
    cdt = xpad_sc.dtype

    h_tile = pl.program_id(1)
    nh = pl.num_programs(1)
    h0 = pl.multiple_of(h_tile * Ht, Ht)

    # ---- zero the W-halo columns (aligned 16-wide stores, re-done per step so
    #      it is megacore-safe) ----
    xpad_sc[:, 0:WL, :] = jnp.zeros((Ht + 4, WL, Cp), cdt)
    xpad_sc[:, WL + W:WL + W + WR, :] = jnp.zeros((Ht + 4, WR, Cp), cdt)
    mid_sc[:, 0:WL, :] = jnp.zeros((Ht + 2, WL, Pp), cdt)
    mid_sc[:, WL + W:WL + W + WR, :] = jnp.zeros((Ht + 2, WR, Pp), cdt)

    # ---- stage input rows [h0-2, h0+Ht+2): 1-row conv2 halo + 1-row conv1 halo
    #      (recomputed per tile); rows outside the image are the conv zero-pad ----
    xv = x_ref[0, pl.ds(h0, Ht), :, :]                      # (Ht, W, Cp) f32
    xpad_sc[2:Ht + 2, WL:WL + W, :] = xv.astype(cdt)

    @pl.when(h_tile == 0)
    def _():
        xpad_sc[0:2, WL:WL + W, :] = jnp.zeros((2, W, Cp), cdt)

    @pl.when(h_tile > 0)
    def _():
        xpad_sc[0:2, WL:WL + W, :] = x_ref[0, pl.ds(h0 - 2, 2), :, :].astype(cdt)

    @pl.when(h_tile == nh - 1)
    def _():
        xpad_sc[Ht + 2:Ht + 4, WL:WL + W, :] = jnp.zeros((2, W, Cp), cdt)

    @pl.when(h_tile < nh - 1)
    def _():
        xpad_sc[Ht + 2:Ht + 4, WL:WL + W, :] = (
            x_ref[0, pl.ds(h0 + Ht, 2), :, :].astype(cdt))

    # ---- conv1 (+ folded BN1 scale): one fat MXU matmul over Ht+2 rows ----
    patch1 = _im2col_3x3(xpad_sc, Ht + 2, W)                # ((Ht+2)*W, 9*Cp) cdt
    acc1 = jnp.dot(patch1, w1_ref[...], preferred_element_type=jnp.float32)
    out1 = jnp.maximum(acc1 + b1_ref[...], 0.0)             # BN1 bias + ReLU
    mid_sc[0:Ht + 2, WL:WL + W, :] = out1.astype(cdt).reshape(Ht + 2, W, Pp)

    # conv2's spatial zero-padding: halo rows outside the image must be zero.
    @pl.when(h_tile == 0)
    def _():
        mid_sc[0:1, WL:WL + W, :] = jnp.zeros((1, W, Pp), cdt)

    @pl.when(h_tile == nh - 1)
    def _():
        mid_sc[Ht + 1:Ht + 2, WL:WL + W, :] = jnp.zeros((1, W, Pp), cdt)

    # ---- conv2 (+ folded BN2 scale): one fat MXU matmul over Ht rows ----
    patch2 = _im2col_3x3(mid_sc, Ht, W)                     # (Ht*W, 9*Pp) cdt
    acc2 = jnp.dot(patch2, w2_ref[...], preferred_element_type=jnp.float32)
    out2 = acc2 + b2_ref[...]                               # BN2 bias

    # ---- residual add (Cp == Pp, stride=1, no downsample) + ReLU ----
    residual = xv.reshape(Ht * W, Pp)                       # f32, same rows as out tile
    out = jnp.maximum(out2 + residual, 0.0)
    out_ref[0] = out.reshape(Ht, W, Pp).astype(out_ref.dtype)


def basic_block_forward(x_nchw, params, eps=1e-5,
                        compute_dtype=jnp.bfloat16, ht=None):
    """x_nchw: (N, C, H, W) float32, matching the PyTorch module's input layout."""
    w1 = params["w1"]  # (P, Cin, 3, 3) OIHW
    w2 = params["w2"]  # (P, P, 3, 3)   OIHW
    N, Cin, H, W = x_nchw.shape
    P = w1.shape[0]
    # Default BasicBlock (stride=1, downsample=None) requires inplanes == planes.
    assert Cin == P, "residual add requires inplanes == planes (no downsample)"

    Cp = _round_up(Cin, LANE)
    Pp = _round_up(P, LANE)

    # Fold eval-mode BN into per-channel scale/bias; scale is folded into the
    # weight columns below, only the bias enters the kernel.
    s1 = params["g1"] / jnp.sqrt(params["rv1"] + eps)
    b1 = params["be1"] - params["rm1"] * s1
    s2 = params["g2"] / jnp.sqrt(params["rv2"] + eps)
    b2 = params["be2"] - params["rm2"] * s2

    def pad_row(v):
        return jnp.pad(v, (0, Pp - P)).reshape(1, Pp).astype(jnp.float32)

    # OIHW -> (kh, kw, cin, o); fold BN scale per output channel (padded output
    # columns stay exactly zero); channel-pad; flatten to (9*Cp, Pp) im2col matrix.
    def im2col_weights(w, scale, cin, cp, pp):
        w_hwio = jnp.transpose(w, (2, 3, 1, 0)) * scale[None, None, None, :]
        w_pad = jnp.pad(w_hwio, ((0, 0), (0, 0), (0, cp - cin), (0, pp - w.shape[0])))
        return w_pad.reshape(9 * cp, pp).astype(compute_dtype)

    w1_mat = im2col_weights(w1, s1, Cin, Cp, Pp)
    w2_mat = im2col_weights(w2, s2, P, Pp, Pp)

    # NCHW -> NHWC with lane-dense (128-multiple) channel padding (single pass);
    # spatial padding happens inside the kernel in VMEM scratch.
    x_nhwc = jnp.transpose(x_nchw, (0, 2, 3, 1))
    x_lane = jnp.pad(x_nhwc, ((0, 0), (0, 0), (0, 0), (0, Cp - Cin))).astype(jnp.float32)

    # H-tile size: bound the 9x im2col working set and give the pipeline steps.
    # Ht >= 2 (or Ht == H) so the 2-row staging halo never straddles the image edge.
    if ht is None:
        target = max(2, 256 // W)               # aim for ~256 matmul rows per tile
        ht = H
        for d in range(2, H + 1):
            if H % d == 0 and d <= target:
                ht = d
    assert H % ht == 0 and (ht >= 2 or ht == H)
    Ht = ht
    nh = H // Ht

    const2 = lambda n, h: (0, 0)
    out_padded = pl.pallas_call(
        basic_block_kernel,
        out_shape=jax.ShapeDtypeStruct((N, H, W, Pp), jnp.float32),
        grid=(N, nh),
        in_specs=[
            pl.BlockSpec((1, H, W, Cp), lambda n, h: (n, 0, 0, 0)),
            pl.BlockSpec((9 * Cp, Pp), const2, pipeline_mode=pl.Buffered(1)),
            pl.BlockSpec((1, Pp), const2, pipeline_mode=pl.Buffered(1)),
            pl.BlockSpec((9 * Pp, Pp), const2, pipeline_mode=pl.Buffered(1)),
            pl.BlockSpec((1, Pp), const2, pipeline_mode=pl.Buffered(1)),
        ],
        out_specs=pl.BlockSpec((1, Ht, W, Pp), lambda n, h: (n, h, 0, 0)),
        scratch_shapes=[pltpu.VMEM((Ht + 4, WL + W + WR, Cp), compute_dtype),
                        pltpu.VMEM((Ht + 2, WL + W + WR, Pp), compute_dtype)],
        compiler_params=pltpu.CompilerParams(
            dimension_semantics=("parallel", "arbitrary"),
            vmem_limit_bytes=64 * 1024 * 1024),
    )(x_lane, w1_mat, pad_row(b1), w2_mat, pad_row(b2))

    # Drop padded lanes, NHWC -> NCHW to match the PyTorch output convention.
    return jnp.transpose(out_padded[..., :P], (0, 3, 1, 2))


def basic_block_reference(x, params, eps=1e-5):
    """Pure-JAX NCHW reference mirroring the PyTorch forward (eval-mode BN)."""
    def conv(x, w):
        return jax.lax.conv_general_dilated(
            x, w, window_strides=(1, 1), padding=((1, 1), (1, 1)),
            dimension_numbers=("NCHW", "OIHW", "NCHW"))

    def bn(x, g, b, m, v):
        g, b, m, v = (a[None, :, None, None] for a in (g, b, m, v))
        return (x - m) / jnp.sqrt(v + eps) * g + b

    out = conv(x, params["w1"])
    out = jax.nn.relu(bn(out, params["g1"], params["be1"], params["rm1"], params["rv1"]))
    out = conv(out, params["w2"])
    out = bn(out, params["g2"], params["be2"], params["rm2"], params["rv2"])
    return jax.nn.relu(out + x)


def make_params(key, inplanes, planes):
    ks = jax.random.split(key, 10)
    return {
        "w1":  0.1 * jax.random.normal(ks[0], (planes, inplanes, 3, 3), jnp.float32),
        "g1":  1.0 + 0.1 * jax.random.normal(ks[1], (planes,), jnp.float32),
        "be1": 0.1 * jax.random.normal(ks[2], (planes,), jnp.float32),
        "rm1": 0.1 * jax.random.normal(ks[3], (planes,), jnp.float32),
        "rv1": 0.5 + jnp.abs(jax.random.normal(ks[4], (planes,), jnp.float32)) * 0.5,
        "w2":  0.1 * jax.random.normal(ks[5], (planes, planes, 3, 3), jnp.float32),
        "g2":  1.0 + 0.1 * jax.random.normal(ks[6], (planes,), jnp.float32),
        "be2": 0.1 * jax.random.normal(ks[7], (planes,), jnp.float32),
        "rm2": 0.1 * jax.random.normal(ks[8], (planes,), jnp.float32),
        "rv2": 0.5 + jnp.abs(jax.random.normal(ks[9], (planes,), jnp.float32)) * 0.5,
    }


if __name__ == "__main__":
    key = jax.random.PRNGKey(0)
    k_x, k_p = jax.random.split(key)

    N, C, H, W = 2, 4, 16, 16          # inplanes == planes == 4, stride=1, downsample=None
    x = jax.random.normal(k_x, (N, C, H, W), jnp.float32)
    params = make_params(k_p, C, C)

    ref = jax.block_until_ready(basic_block_reference(x, params))

    # bf16 MXU path (default), 2 H-tiles to exercise the recomputed conv1 halo.
    out_bf16 = jax.block_until_ready(basic_block_forward(x, params, ht=8))
    assert out_bf16.shape == (N, C, H, W)
    assert jnp.allclose(out_bf16, ref, atol=5e-2, rtol=5e-2), (
        f"bf16 path max abs err {jnp.max(jnp.abs(out_bf16 - ref))}")

    # f32 path, single H-tile, tight tolerance.
    out_f32 = jax.block_until_ready(
        basic_block_forward(x, params, compute_dtype=jnp.float32, ht=H))
    assert jnp.allclose(out_f32, ref, atol=1e-4, rtol=1e-4), (
        f"f32 path max abs err {jnp.max(jnp.abs(out_f32 - ref))}")

    print("KERNEL_OK")
</pallas_src>

<mosaic_0001>
module attributes {stable_mosaic.version = 11 : i64} {
  func.func @basic_block_kernel(%arg0: i32, %arg1: i32, %arg2: memref<1x16x16x128xf32, #tpu.memory_space<vmem>>, %arg3: memref<1152x128xbf16, #tpu.memory_space<vmem>>, %arg4: memref<1x128xf32, #tpu.memory_space<vmem>>, %arg5: memref<1152x128xbf16, #tpu.memory_space<vmem>>, %arg6: memref<1x128xf32, #tpu.memory_space<vmem>>, %arg7: memref<1x8x16x128xf32, #tpu.memory_space<vmem>>, %arg8: memref<12x48x128xbf16, #tpu.memory_space<vmem>>, %arg9: memref<10x48x128xbf16, #tpu.memory_space<vmem>>) attributes {dimension_semantics = [#tpu.dimension_semantics<parallel>, #tpu.dimension_semantics<arbitrary>], iteration_bounds = array<i64: 2, 2>, scalar_prefetch = 0 : i64, scratch_operands = 2 : i64, tpu.core_type = #tpu.core_type<tc>, window_params = [{transform_indices = @transform_0, window_bounds = array<i64: 1, 16, 16, 128>}, {pipeline_mode = #tpu.pipeline_mode<synchronous>, transform_indices = @transform_1, window_bounds = array<i64: 1152, 128>}, {pipeline_mode = #tpu.pipeline_mode<synchronous>, transform_indices = @transform_2, window_bounds = array<i64: 1, 128>}, {pipeline_mode = #tpu.pipeline_mode<synchronous>, transform_indices = @transform_3, window_bounds = array<i64: 1152, 128>}, {pipeline_mode = #tpu.pipeline_mode<synchronous>, transform_indices = @transform_4, window_bounds = array<i64: 1, 128>}, {transform_indices = @transform_5, window_bounds = array<i64: 1, 8, 16, 128>}]} {
    %c8_i32 = arith.constant 8 : i32
    %0 = arith.muli %arg1, %c8_i32 : i32
    %1 = tpu.assume_multiple %0, 8 : i32
    %cst = arith.constant 0.000000e+00 : bf16
    %2 = vector.broadcast %cst : bf16 to vector<12x16x128xbf16>
    %c0 = arith.constant 0 : index
    %c0_0 = arith.constant 0 : index
    %c0_1 = arith.constant 0 : index
    %3 = vector.load %arg8[%c0, %c0_0, %c0_1] : memref<12x48x128xbf16, #tpu.memory_space<vmem>>, vector<12x16x128xbf16>
    tpu.vector_store %arg8[%c0, %c0_0, %c0_1], %2 {strides = array<i32>} : memref<12x48x128xbf16, #tpu.memory_space<vmem>>, vector<12x16x128xbf16>,
    %cst_2 = arith.constant 0.000000e+00 : bf16
    %4 = vector.broadcast %cst_2 : bf16 to vector<12x16x128xbf16>
    %c0_3 = arith.constant 0 : index
    %c32 = arith.constant 32 : index
    %c0_4 = arith.constant 0 : index
    %5 = vector.load %arg8[%c0_3, %c32, %c0_4] : memref<12x48x128xbf16, #tpu.memory_space<vmem>>, vector<12x16x128xbf16>
    tpu.vector_store %arg8[%c0_3, %c32, %c0_4], %4 {strides = array<i32>} : memref<12x48x128xbf16, #tpu.memory_space<vmem>>, vector<12x16x128xbf16>,
    %cst_5 = arith.constant 0.000000e+00 : bf16
    %6 = vector.broadcast %cst_5 : bf16 to vector<10x16x128xbf16>
    %c0_6 = arith.constant 0 : index
    %c0_7 = arith.constant 0 : index
    %c0_8 = arith.constant 0 : index
    %7 = vector.load %arg9[%c0_6, %c0_7, %c0_8] : memref<10x48x128xbf16, #tpu.memory_space<vmem>>, vector<10x16x128xbf16>
    tpu.vector_store %arg9[%c0_6, %c0_7, %c0_8], %6 {strides = array<i32>} : memref<10x48x128xbf16, #tpu.memory_space<vmem>>, vector<10x16x128xbf16>,
    %cst_9 = arith.constant 0.000000e+00 : bf16
    %8 = vector.broadcast %cst_9 : bf16 to vector<10x16x128xbf16>
    %c0_10 = arith.constant 0 : index
    %c32_11 = arith.constant 32 : index
    %c0_12 = arith.constant 0 : index
    %9 = vector.load %arg9[%c0_10, %c32_11, %c0_12] : memref<10x48x128xbf16, #tpu.memory_space<vmem>>, vector<10x16x128xbf16>
    tpu.vector_store %arg9[%c0_10, %c32_11, %c0_12], %8 {strides = array<i32>} : memref<10x48x128xbf16, #tpu.memory_space<vmem>>, vector<10x16x128xbf16>,
    %c0_13 = arith.constant 0 : index
    %10 = arith.index_cast %1 : i32 to index
    %c0_14 = arith.constant 0 : index
    %c0_15 = arith.constant 0 : index
    %11 = vector.load %arg2[%c0_13, %10, %c0_14, %c0_15] : memref<1x16x16x128xf32, #tpu.memory_space<vmem>>, vector<1x8x16x128xf32>
    %12 = vector.shape_cast %11 : vector<1x8x16x128xf32> to vector<8x16x128xf32>
    %13 = arith.truncf %12 : vector<8x16x128xf32> to vector<8x16x128xbf16>
    %c2 = arith.constant 2 : index
    %c16 = arith.constant 16 : index
    %c0_16 = arith.constant 0 : index
    %14 = vector.load %arg8[%c2, %c16, %c0_16] : memref<12x48x128xbf16, #tpu.memory_space<vmem>>, vector<8x16x128xbf16>
    tpu.vector_store %arg8[%c2, %c16, %c0_16], %13 {strides = array<i32>} : memref<12x48x128xbf16, #tpu.memory_space<vmem>>, vector<8x16x128xbf16>,
    %c0_i32 = arith.constant 0 : i32
    %15 = arith.cmpi eq, %arg1, %c0_i32 : i32
    %16 = arith.extui %15 : i1 to i32
    %c0_i32_17 = arith.constant 0 : i32
    %17 = arith.cmpi ne, %16, %c0_i32_17 : i32
    scf.if %17 {
      %cst_97 = arith.constant 0.000000e+00 : bf16
      %78 = vector.broadcast %cst_97 : bf16 to vector<2x16x128xbf16>
      %c0_98 = arith.constant 0 : index
      %c16_99 = arith.constant 16 : index
      %c0_100 = arith.constant 0 : index
      %79 = vector.load %arg8[%c0_98, %c16_99, %c0_100] : memref<12x48x128xbf16, #tpu.memory_space<vmem>>, vector<2x16x128xbf16>
      tpu.vector_store %arg8[%c0_98, %c16_99, %c0_100], %78 {strides = array<i32>} : memref<12x48x128xbf16, #tpu.memory_space<vmem>>, vector<2x16x128xbf16>,
    } else {
    }
    %c0_i32_18 = arith.constant 0 : i32
    %18 = arith.cmpi sgt, %arg1, %c0_i32_18 : i32
    %19 = arith.extui %18 : i1 to i32
    %c0_i32_19 = arith.constant 0 : i32
    %20 = arith.cmpi ne, %19, %c0_i32_19 : i32
    scf.if %20 {
      %c2_i32 = arith.constant 2 : i32
      %78 = arith.subi %1, %c2_i32 : i32
      %c0_97 = arith.constant 0 : index
      %79 = arith.index_cast %78 : i32 to index
      %c0_98 = arith.constant 0 : index
      %c0_99 = arith.constant 0 : index
      %80 = vector.load %arg2[%c0_97, %79, %c0_98, %c0_99] : memref<1x16x16x128xf32, #tpu.memory_space<vmem>>, vector<1x2x16x128xf32>
      %81 = vector.shape_cast %80 : vector<1x2x16x128xf32> to vector<2x16x128xf32>
      %82 = arith.truncf %81 : vector<2x16x128xf32> to vector<2x16x128xbf16>
      %c0_100 = arith.constant 0 : index
      %c16_101 = arith.constant 16 : index
      %c0_102 = arith.constant 0 : index
      %83 = vector.load %arg8[%c0_100, %c16_101, %c0_102] : memref<12x48x128xbf16, #tpu.memory_space<vmem>>, vector<2x16x128xbf16>
      tpu.vector_store %arg8[%c0_100, %c16_101, %c0_102], %82 {strides = array<i32>} : memref<12x48x128xbf16, #tpu.memory_space<vmem>>, vector<2x16x128xbf16>,
    } else {
    }
    %c1_i32 = arith.constant 1 : i32
    %21 = arith.cmpi eq, %arg1, %c1_i32 : i32
    %22 = arith.extui %21 : i1 to i32
    %c0_i32_20 = arith.constant 0 : i32
    %23 = arith.cmpi ne, %22, %c0_i32_20 : i32
    scf.if %23 {
      %cst_97 = arith.constant 0.000000e+00 : bf16
      %78 = vector.broadcast %cst_97 : bf16 to vector<2x16x128xbf16>
      %c10 = arith.constant 10 : index
      %c16_98 = arith.constant 16 : index
      %c0_99 = arith.constant 0 : index
      %79 = vector.load %arg8[%c10, %c16_98, %c0_99] : memref<12x48x128xbf16, #tpu.memory_space<vmem>>, vector<2x16x128xbf16>
      tpu.vector_store %arg8[%c10, %c16_98, %c0_99], %78 {strides = array<i32>} : memref<12x48x128xbf16, #tpu.memory_space<vmem>>, vector<2x16x128xbf16>,
    } else {
    }
    %c1_i32_21 = arith.constant 1 : i32
    %24 = arith.cmpi slt, %arg1, %c1_i32_21 : i32
    %25 = arith.extui %24 : i1 to i32
    %c0_i32_22 = arith.constant 0 : i32
    %26 = arith.cmpi ne, %25, %c0_i32_22 : i32
    scf.if %26 {
      %c8_i32_97 = arith.constant 8 : i32
      %78 = arith.addi %1, %c8_i32_97 : i32
      %c0_98 = arith.constant 0 : index
      %79 = arith.index_cast %78 : i32 to index
      %c0_99 = arith.constant 0 : index
      %c0_100 = arith.constant 0 : index
      %80 = vector.load %arg2[%c0_98, %79, %c0_99, %c0_100] : memref<1x16x16x128xf32, #tpu.memory_space<vmem>>, vector<1x2x16x128xf32>
      %81 = vector.shape_cast %80 : vector<1x2x16x128xf32> to vector<2x16x128xf32>
      %82 = arith.truncf %81 : vector<2x16x128xf32> to vector<2x16x128xbf16>
      %c10 = arith.constant 10 : index
      %c16_101 = arith.constant 16 : index
      %c0_102 = arith.constant 0 : index
      %83 = vector.load %arg8[%c10, %c16_101, %c0_102] : memref<12x48x128xbf16, #tpu.memory_space<vmem>>, vector<2x16x128xbf16>
      tpu.vector_store %arg8[%c10, %c16_101, %c0_102], %82 {strides = array<i32>} : memref<12x48x128xbf16, #tpu.memory_space<vmem>>, vector<2x16x128xbf16>,
    } else {
    }
    %c0_23 = arith.constant 0 : index
    %c15 = arith.constant 15 : index
    %c0_24 = arith.constant 0 : index
    %27 = vector.load %arg8[%c0_23, %c15, %c0_24] : memref<12x48x128xbf16, #tpu.memory_space<vmem>>, vector<10x16x128xbf16>
    %c0_25 = arith.constant 0 : index
    %c16_26 = arith.constant 16 : index
    %c0_27 = arith.constant 0 : index
    %28 = vector.load %arg8[%c0_25, %c16_26, %c0_27] : memref<12x48x128xbf16, #tpu.memory_space<vmem>>, vector<10x16x128xbf16>
    %c0_28 = arith.constant 0 : index
    %c17 = arith.constant 17 : index
    %c0_29 = arith.constant 0 : index
    %29 = vector.load %arg8[%c0_28, %c17, %c0_29] : memref<12x48x128xbf16, #tpu.memory_space<vmem>>, vector<10x16x128xbf16>
    %c1 = arith.constant 1 : index
    %c15_30 = arith.constant 15 : index
    %c0_31 = arith.constant 0 : index
    %30 = vector.load %arg8[%c1, %c15_30, %c0_31] : memref<12x48x128xbf16, #tpu.memory_space<vmem>>, vector<10x16x128xbf16>
    %c1_32 = arith.constant 1 : index
    %c16_33 = arith.constant 16 : index
    %c0_34 = arith.constant 0 : index
    %31 = vector.load %arg8[%c1_32, %c16_33, %c0_34] : memref<12x48x128xbf16, #tpu.memory_space<vmem>>, vector<10x16x128xbf16>
    %c1_35 = arith.constant 1 : index
    %c17_36 = arith.constant 17 : index
    %c0_37 = arith.constant 0 : index
    %32 = vector.load %arg8[%c1_35, %c17_36, %c0_37] : memref<12x48x128xbf16, #tpu.memory_space<vmem>>, vector<10x16x128xbf16>
    %c2_38 = arith.constant 2 : index
    %c15_39 = arith.constant 15 : index
    %c0_40 = arith.constant 0 : index
    %33 = vector.load %arg8[%c2_38, %c15_39, %c0_40] : memref<12x48x128xbf16, #tpu.memory_space<vmem>>, vector<10x16x128xbf16>
    %c2_41 = arith.constant 2 : index
    %c16_42 = arith.constant 16 : index
    %c0_43 = arith.constant 0 : index
    %34 = vector.load %arg8[%c2_41, %c16_42, %c0_43] : memref<12x48x128xbf16, #tpu.memory_space<vmem>>, vector<10x16x128xbf16>
    %c2_44 = arith.constant 2 : index
    %c17_45 = arith.constant 17 : index
    %c0_46 = arith.constant 0 : index
    %35 = vector.load %arg8[%c2_44, %c17_45, %c0_46] : memref<12x48x128xbf16, #tpu.memory_space<vmem>>, vector<10x16x128xbf16>
    %36 = tpu.concatenate %27, %28, %29, %30, %31, %32, %33, %34, %35 in 2 : vector<10x16x128xbf16>, vector<10x16x128xbf16>, vector<10x16x128xbf16>, vector<10x16x128xbf16>, vector<10x16x128xbf16>, vector<10x16x128xbf16>, vector<10x16x128xbf16>, vector<10x16x128xbf16>, vector<10x16x128xbf16> -> vector<10x16x1152xbf16>
    %37 = vector.shape_cast %36 : vector<10x16x1152xbf16> to vector<160x1152xbf16>
    %c0_47 = arith.constant 0 : index
    %c0_48 = arith.constant 0 : index
    %38 = vector.load %arg3[%c0_47, %c0_48] : memref<1152x128xbf16, #tpu.memory_space<vmem>>, vector<1152x128xbf16>
    %cst_49 = arith.constant dense<0.000000e+00> : vector<160x128xf32>
    %39 = tpu.matmul %37, %38, %cst_49 {dimension_numbers = #tpu.dot_dimension_numbers<[1], [0], [0], [1], [0, 0, 1, 1], [], []>} : vector<160x1152xbf16>, vector<1152x128xbf16>, vector<160x128xf32> -> vector<160x128xf32>
    %c0_50 = arith.constant 0 : index
    %c0_51 = arith.constant 0 : index
    %40 = vector.load %arg4[%c0_50, %c0_51] : memref<1x128xf32, #tpu.memory_space<vmem>>, vector<1x128xf32>
    %41 = vector.broadcast %40 : vector<1x128xf32> to vector<160x128xf32>
    %42 = arith.addf %39, %41 : vector<160x128xf32>
    %cst_52 = arith.constant 0.000000e+00 : f32
    %43 = vector.broadcast %cst_52 : f32 to vector<160x128xf32>
    %44 = arith.maximumf %42, %43 : vector<160x128xf32>
    %45 = arith.truncf %44 : vector<160x128xf32> to vector<160x128xbf16>
    %46 = vector.shape_cast %45 : vector<160x128xbf16> to vector<10x16x128xbf16>
    %c0_53 = arith.constant 0 : index
    %c16_54 = arith.constant 16 : index
    %c0_55 = arith.constant 0 : index
    %47 = vector.load %arg9[%c0_53, %c16_54, %c0_55] : memref<10x48x128xbf16, #tpu.memory_space<vmem>>, vector<10x16x128xbf16>
    tpu.vector_store %arg9[%c0_53, %c16_54, %c0_55], %46 {strides = array<i32>} : memref<10x48x128xbf16, #tpu.memory_space<vmem>>, vector<10x16x128xbf16>,
    %c0_i32_56 = arith.constant 0 : i32
    %48 = arith.cmpi eq, %arg1, %c0_i32_56 : i32
    %49 = arith.extui %48 : i1 to i32
    %c0_i32_57 = arith.constant 0 : i32
    %50 = arith.cmpi ne, %49, %c0_i32_57 : i32
    scf.if %50 {
      %cst_97 = arith.constant 0.000000e+00 : bf16
      %78 = vector.broadcast %cst_97 : bf16 to vector<1x16x128xbf16>
      %c0_98 = arith.constant 0 : index
      %c16_99 = arith.constant 16 : index
      %c0_100 = arith.constant 0 : index
      %79 = vector.load %arg9[%c0_98, %c16_99, %c0_100] : memref<10x48x128xbf16, #tpu.memory_space<vmem>>, vector<1x16x128xbf16>
      tpu.vector_store %arg9[%c0_98, %c16_99, %c0_100], %78 {strides = array<i32>} : memref<10x48x128xbf16, #tpu.memory_space<vmem>>, vector<1x16x128xbf16>,
    } else {
    }
    %c1_i32_58 = arith.constant 1 : i32
    %51 = arith.cmpi eq, %arg1, %c1_i32_58 : i32
    %52 = arith.extui %51 : i1 to i32
    %c0_i32_59 = arith.constant 0 : i32
    %53 = arith.cmpi ne, %52, %c0_i32_59 : i32
    scf.if %53 {
      %cst_97 = arith.constant 0.000000e+00 : bf16
      %78 = vector.broadcast %cst_97 : bf16 to vector<1x16x128xbf16>
      %c9 = arith.constant 9 : index
      %c16_98 = arith.constant 16 : index
      %c0_99 = arith.constant 0 : index
      %79 = vector.load %arg9[%c9, %c16_98, %c0_99] : memref<10x48x128xbf16, #tpu.memory_space<vmem>>, vector<1x16x128xbf16>
      tpu.vector_store %arg9[%c9, %c16_98, %c0_99], %78 {strides = array<i32>} : memref<10x48x128xbf16, #tpu.memory_space<vmem>>, vector<1x16x128xbf16>,
    } else {
    }
    %c0_60 = arith.constant 0 : index
    %c15_61 = arith.constant 15 : index
    %c0_62 = arith.constant 0 : index
    %54 = vector.load %arg9[%c0_60, %c15_61, %c0_62] : memref<10x48x128xbf16, #tpu.memory_space<vmem>>, vector<8x16x128xbf16>
    %c0_63 = arith.constant 0 : index
    %c16_64 = arith.constant 16 : index
    %c0_65 = arith.constant 0 : index
    %55 = vector.load %arg9[%c0_63, %c16_64, %c0_65] : memref<10x48x128xbf16, #tpu.memory_space<vmem>>, vector<8x16x128xbf16>
    %c0_66 = arith.constant 0 : index
    %c17_67 = arith.constant 17 : index
    %c0_68 = arith.constant 0 : index
    %56 = vector.load %arg9[%c0_66, %c17_67, %c0_68] : memref<10x48x128xbf16, #tpu.memory_space<vmem>>, vector<8x16x128xbf16>
    %c1_69 = arith.constant 1 : index
    %c15_70 = arith.constant 15 : index
    %c0_71 = arith.constant 0 : index
    %57 = vector.load %arg9[%c1_69, %c15_70, %c0_71] : memref<10x48x128xbf16, #tpu.memory_space<vmem>>, vector<8x16x128xbf16>
    %c1_72 = arith.constant 1 : index
    %c16_73 = arith.constant 16 : index
    %c0_74 = arith.constant 0 : index
    %58 = vector.load %arg9[%c1_72, %c16_73, %c0_74] : memref<10x48x128xbf16, #tpu.memory_space<vmem>>, vector<8x16x128xbf16>
    %c1_75 = arith.constant 1 : index
    %c17_76 = arith.constant 17 : index
    %c0_77 = arith.constant 0 : index
    %59 = vector.load %arg9[%c1_75, %c17_76, %c0_77] : memref<10x48x128xbf16, #tpu.memory_space<vmem>>, vector<8x16x128xbf16>
    %c2_78 = arith.constant 2 : index
    %c15_79 = arith.constant 15 : index
    %c0_80 = arith.constant 0 : index
    %60 = vector.load %arg9[%c2_78, %c15_79, %c0_80] : memref<10x48x128xbf16, #tpu.memory_space<vmem>>, vector<8x16x128xbf16>
    %c2_81 = arith.constant 2 : index
    %c16_82 = arith.constant 16 : index
    %c0_83 = arith.constant 0 : index
    %61 = vector.load %arg9[%c2_81, %c16_82, %c0_83] : memref<10x48x128xbf16, #tpu.memory_space<vmem>>, vector<8x16x128xbf16>
    %c2_84 = arith.constant 2 : index
    %c17_85 = arith.constant 17 : index
    %c0_86 = arith.constant 0 : index
    %62 = vector.load %arg9[%c2_84, %c17_85, %c0_86] : memref<10x48x128xbf16, #tpu.memory_space<vmem>>, vector<8x16x128xbf16>
    %63 = tpu.concatenate %54, %55, %56, %57, %58, %59, %60, %61, %62 in 2 : vector<8x16x128xbf16>, vector<8x16x128xbf16>, vector<8x16x128xbf16>, vector<8x16x128xbf16>, vector<8x16x128xbf16>, vector<8x16x128xbf16>, vector<8x16x128xbf16>, vector<8x16x128xbf16>, vector<8x16x128xbf16> -> vector<8x16x1152xbf16>
    %64 = vector.shape_cast %63 : vector<8x16x1152xbf16> to vector<128x1152xbf16>
    %c0_87 = arith.constant 0 : index
    %c0_88 = arith.constant 0 : index
    %65 = vector.load %arg5[%c0_87, %c0_88] : memref<1152x128xbf16, #tpu.memory_space<vmem>>, vector<1152x128xbf16>
    %cst_89 = arith.constant dense<0.000000e+00> : vector<128x128xf32>
    %66 = tpu.matmul %64, %65, %cst_89 {dimension_numbers = #tpu.dot_dimension_numbers<[1], [0], [0], [1], [0, 0, 1, 1], [], []>} : vector<128x1152xbf16>, vector<1152x128xbf16>, vector<128x128xf32> -> vector<128x128xf32>
    %c0_90 = arith.constant 0 : index
    %c0_91 = arith.constant 0 : index
    %67 = vector.load %arg6[%c0_90, %c0_91] : memref<1x128xf32, #tpu.memory_space<vmem>>, vector<1x128xf32>
    %68 = vector.broadcast %67 : vector<1x128xf32> to vector<128x128xf32>
    %69 = arith.addf %66, %68 : vector<128x128xf32>
    %70 = vector.shape_cast %12 : vector<8x16x128xf32> to vector<128x128xf32>
    %71 = arith.addf %69, %70 : vector<128x128xf32>
    %cst_92 = arith.constant 0.000000e+00 : f32
    %72 = vector.broadcast %cst_92 : f32 to vector<128x128xf32>
    %73 = arith.maximumf %71, %72 : vector<128x128xf32>
    %74 = vector.shape_cast %73 : vector<128x128xf32> to vector<8x16x128xf32>
    %c0_93 = arith.constant 0 : index
    %c0_94 = arith.constant 0 : index
    %c0_95 = arith.constant 0 : index
    %c0_96 = arith.constant 0 : index
    %75 = vector.load %arg7[%c0_93, %c0_94, %c0_95, %c0_96] : memref<1x8x16x128xf32, #tpu.memory_space<vmem>>, vector<1x8x16x128xf32>
    %76 = vector.shape_cast %75 : vector<1x8x16x128xf32> to vector<8x16x128xf32>
    %77 = vector.shape_cast %74 : vector<8x16x128xf32> to vector<1x8x16x128xf32>
    tpu.vector_store %arg7[%c0_93, %c0_94, %c0_95, %c0_96], %77 {strides = array<i32>} : memref<1x8x16x128xf32, #tpu.memory_space<vmem>>, vector<1x8x16x128xf32>,
    return
  }
  func.func @transform_0(%arg0: i32, %arg1: i32) -> (i32, i32, i32, i32) {
    %c0_i32 = arith.constant 0 : i32
    %c0_i32_0 = arith.constant 0 : i32
    %c0_i32_1 = arith.constant 0 : i32
    %c0_i32_2 = arith.constant 0 : i32
    return %arg0, %c0_i32, %c0_i32_0, %c0_i32_1 : i32, i32, i32, i32
  }
  func.func @transform_1(%arg0: i32, %arg1: i32) -> (i32, i32) {
    %c0_i32 = arith.constant 0 : i32
    %c0_i32_0 = arith.constant 0 : i32
    %c0_i32_1 = arith.constant 0 : i32
    return %c0_i32, %c0_i32_0 : i32, i32
  }
  func.func @transform_2(%arg0: i32, %arg1: i32) -> (i32, i32) {
    %c0_i32 = arith.constant 0 : i32
    %c0_i32_0 = arith.constant 0 : i32
    %c0_i32_1 = arith.constant 0 : i32
    return %c0_i32, %c0_i32_0 : i32, i32
  }
  func.func @transform_3(%arg0: i32, %arg1: i32) -> (i32, i32) {
    %c0_i32 = arith.constant 0 : i32
    %c0_i32_0 = arith.constant 0 : i32
    %c0_i32_1 = arith.constant 0 : i32
    return %c0_i32, %c0_i32_0 : i32, i32
  }
  func.func @transform_4(%arg0: i32, %arg1: i32) -> (i32, i32) {
    %c0_i32 = arith.constant 0 : i32
    %c0_i32_0 = arith.constant 0 : i32
    %c0_i32_1 = arith.constant 0 : i32
    return %c0_i32, %c0_i32_0 : i32, i32
  }
  func.func @transform_5(%arg0: i32, %arg1: i32) -> (i32, i32, i32, i32) {
    %c0_i32 = arith.constant 0 : i32
    %c0_i32_0 = arith.constant 0 : i32
    %c0_i32_1 = arith.constant 0 : i32
    return %arg0, %arg1, %c0_i32, %c0_i32_0 : i32, i32, i32, i32
  }
}

</mosaic_0001>

<llo_original>
// kernel: tpu_custom_call.1
$region0: #{tpu_custom_call.1}
  #allocation0 [shape = 'u32[]', space=smem, size = 0x4, offset = 0x4, fixed_abs, tag = 'smem constant byte address 0x4 - core index']
  #allocation1 [shape = 'u32[72,128]{1,0:T(1,128)}', space=vmem, size = 0x9000, scoped, tag = 'internal scratch']
  #allocation2 [shape = 'bf16[12,48,128]{2,1,0:T(8,128)(2,1)}', space=vmem, size = 0x24000, scoped, tag = 'scratch operand']
  #allocation3 [shape = 'bf16[10,48,128]{2,1,0:T(8,128)(2,1)}', space=vmem, size = 0x1e000, scoped, tag = 'scratch operand']
  %s0 = inlined_call_operand.hbm [shape: f32[2,16,16,128], index: 0, kind: input, shape index: {}]
  %s1 = inlined_call_operand.hbm [shape: bf16[1152,128], index: 1, kind: input, shape index: {}]
  %s2 = inlined_call_operand.vmem [shape: f32[1,128], index: 2, kind: input, shape index: {}]
  %s3 = inlined_call_operand.hbm [shape: bf16[1152,128], index: 3, kind: input, shape index: {}]
  %s4 = inlined_call_operand.vmem [shape: f32[1,128], index: 4, kind: input, shape index: {}]
  %s5 = inlined_call_operand.hbm [shape: f32[2,16,16,128], index: 5, kind: output, shape index: {}]
  %s6 = sld [smem:[#allocation0]]
  $region89: #{tpu_custom_call.1} parent=0
    _
  %s8 = ssub.s32 1, %s6
  %s9 = scalar_select 0, %s8, %s6
  $region1: #{tpu_custom_call.1} parent=0
    #allocation4 [shape = 'u8[262144]{0}', space=vmem, size = 0x40000, scoped, tag = 'input window, operand 0']
    #allocation5 [shape = 's32[2]{0}', space=sflag, size = 0x8, scoped, tag = 'scoped memory for tpu_custom_call.1']
    #allocation6 [shape = 's32[2]{0}', space=sflag, size = 0x8, scoped, tag = 'scoped memory for tpu_custom_call.1']
    #allocation7 [shape = 'u8[294912]{0}', space=vmem, size = 0x48000, scoped, tag = 'input window, operand 1, single buffered']
    #allocation8 [shape = 's32[1]{0}', space=sflag, size = 0x4, scoped, tag = 'scoped memory for tpu_custom_call.1']
    #allocation9 [shape = 'u8[294912]{0}', space=vmem, size = 0x48000, scoped, tag = 'input window, operand 3, single buffered']
    #allocation10 [shape = 'u8[131072]{0}', space=vmem, size = 0x20000, scoped, tag = 'output window, operand 0']
    %10 = vsyncpa [#allocation5], 0
    %s11 = scalar_lea.sflag [#allocation5], 1
    %12 = vsyncpa %s11, 0
    %13 = vsyncpa [#allocation8], 0
    %14 = vsyncpa [#allocation6], 0
    %s15 = scalar_lea.sflag [#allocation6], 1
    %16 = vsyncpa %s15, 0
    loop: start=0, step=1, limit=6
    $region2: #{tpu_custom_call.1} parent=1 // loop_pre_header
      _
    $region3: #{tpu_custom_call.1} parent=1 // loop_header
      %s18 = sphi 0, %s22
      %p19 = scmp.ge.s32.totalorder %s18, 6
      %s25 = sphi 0, %s37
      %s26 = sphi 0, %s33
      %s27 = sphi 0, %s25
      %s28 = sphi 0, %s26
      %s29 = sphi 0, %s27
      %s30 = sphi 0, %s28
      %s40 = sphi 0, %s42
      %s43 = sphi 0, %s40
      %s44 = sphi 0, %s43
      %s60 = sphi 0, %s44
      %s64 = sphi 0, %s64
      %s66 = sphi 0, %s64
      %s67 = sphi 0, %s66
      %s81 = sphi 0, %s67
      %s85 = sphi 0, %s85
      %s87 = sphi 0, %s85
      %s88 = sphi 0, %s87
      %s102 = sphi 0, %s88
      %s106 = sphi 0, %s106
      %s108 = sphi 0, %s106
      %s109 = sphi 0, %s108
      %s123 = sphi 0, %s109
      %s127 = sphi 0, %s127
      %s129 = sphi 0, %s127
      %s130 = sphi 0, %s129
      %s144 = sphi 0, %s130
      %s152 = sphi 0, %s154
      %s155 = sphi 0, %s152
      %s156 = sphi 0, %s155
      %s172 = sphi 0, %s156
    $region4: #{tpu_custom_call.1} parent=1 // loop_header_branch
      %21 = sbr.rel (%p19) target = $region8
    $region5: #{tpu_custom_call.1} parent=1 // loop_body
      %s23 = ssub.s32 %s18, 1
      %s24 = ssub.s32 %s18, 2
      %s31 = sadd.s32 1, %s26
      %p32 = scmp.ge.s32.totalorder %s31, 2
      %s33 = scalar_select %p32, 0, %s31
      %s34 = sadd.s32 1, %s25
      %s35 = scalar_select %p32, %s34, %s25
      %p36 = scmp.ge.s32.totalorder %s35, 2
      %s37 = scalar_select %p36, 0, %s35
      %s38 = ssub.s32 %s25, %s37
      %p39 = scmp.eq.s32.totalorder %s38, 0
      %s41 = sadd.s32 %s40, 1
      %s42 = scalar_select %p39, %s40, %s41
      %p45 = pneg %p39
      %p46 = scmp.eq.s32.totalorder %s18, 3
      %p47 = por %p45, %p46
      %p48 = scmp.ne.s32.totalorder %s40, %s43
      %p49 = scmp.eq.s32.totalorder %s18, 0
      %p50 = por %p48, %p49
      %p51 = scmp.ne.s32.totalorder %s40, %s43
      %p52 = scmp.eq.s32.totalorder %s23, 3
      %p53 = por %p51, %p52
      %p54 = scmp.ne.s32.totalorder %s43, %s44
      %p55 = scmp.eq.s32.totalorder %s23, 0
      %p56 = por %p54, %p55
      %p57 = scmp.ne.s32.totalorder %s43, %s44
      %p58 = scmp.eq.s32.totalorder %s24, 3
      %p59 = por %p57, %p58
      %p61 = scmp.ne.s32.totalorder %s44, %s60
      %p62 = scmp.eq.s32.totalorder %s24, 0
      %p63 = por %p61, %p62
      %s65 = sadd.s32 %s64, 1
      %p68 = scmp.eq.s32.totalorder %s18, 3
      %p69 = scmp.ne.s32.totalorder %s64, %s66
      %p70 = scmp.eq.s32.totalorder %s18, 0
      %p71 = por %p69, %p70
      %p72 = scmp.ne.s32.totalorder %s64, %s66
      %p73 = scmp.eq.s32.totalorder %s23, 3
      %p74 = por %p72, %p73
      %p75 = scmp.ne.s32.totalorder %s66, %s67
      %p76 = scmp.eq.s32.totalorder %s23, 0
      %p77 = por %p75, %p76
      %p78 = scmp.ne.s32.totalorder %s66, %s67
      %p79 = scmp.eq.s32.totalorder %s24, 3
      %p80 = por %p78, %p79
      %p82 = scmp.ne.s32.totalorder %s67, %s81
      %p83 = scmp.eq.s32.totalorder %s24, 0
      %p84 = por %p82, %p83
      %s86 = sadd.s32 %s85, 1
      %p89 = scmp.eq.s32.totalorder %s18, 3
      %p90 = scmp.ne.s32.totalorder %s85, %s87
      %p91 = scmp.eq.s32.totalorder %s18, 0
      %p92 = por %p90, %p91
      %p93 = scmp.ne.s32.totalorder %s85, %s87
      %p94 = scmp.eq.s32.totalorder %s23, 3
      %p95 = por %p93, %p94
      %p96 = scmp.ne.s32.totalorder %s87, %s88
      %p97 = scmp.eq.s32.totalorder %s23, 0
      %p98 = por %p96, %p97
      %p99 = scmp.ne.s32.totalorder %s87, %s88
      %p100 = scmp.eq.s32.totalorder %s24, 3
      %p101 = por %p99, %p100
      %p103 = scmp.ne.s32.totalorder %s88, %s102
      %p104 = scmp.eq.s32.totalorder %s24, 0
      %p105 = por %p103, %p104
      %s107 = sadd.s32 %s106, 1
      %p110 = scmp.eq.s32.totalorder %s18, 3
      %p111 = scmp.ne.s32.totalorder %s106, %s108
      %p112 = scmp.eq.s32.totalorder %s18, 0
      %p113 = por %p111, %p112
      %p114 = scmp.ne.s32.totalorder %s106, %s108
      %p115 = scmp.eq.s32.totalorder %s23, 3
      %p116 = por %p114, %p115
      %p117 = scmp.ne.s32.totalorder %s108, %s109
      %p118 = scmp.eq.s32.totalorder %s23, 0
      %p119 = por %p117, %p118
      %p120 = scmp.ne.s32.totalorder %s108, %s109
      %p121 = scmp.eq.s32.totalorder %s24, 3
      %p122 = por %p120, %p121
      %p124 = scmp.ne.s32.totalorder %s109, %s123
      %p125 = scmp.eq.s32.totalorder %s24, 0
      %p126 = por %p124, %p125
      %s128 = sadd.s32 %s127, 1
      %p131 = scmp.eq.s32.totalorder %s18, 3
      %p132 = scmp.ne.s32.totalorder %s127, %s129
      %p133 = scmp.eq.s32.totalorder %s18, 0
      %p134 = por %p132, %p133
      %p135 = scmp.ne.s32.totalorder %s127, %s129
      %p136 = scmp.eq.s32.totalorder %s23, 3
      %p137 = por %p135, %p136
      %p138 = scmp.ne.s32.totalorder %s129, %s130
      %p139 = scmp.eq.s32.totalorder %s23, 0
      %p140 = por %p138, %p139
      %p141 = scmp.ne.s32.totalorder %s129, %s130
      %p142 = scmp.eq.s32.totalorder %s24, 3
      %p143 = por %p141, %p142
      %p145 = scmp.ne.s32.totalorder %s130, %s144
      %p146 = scmp.eq.s32.totalorder %s24, 0
      %p147 = por %p145, %p146
      %s148 = ssub.s32 %s25, %s37
      %s149 = ssub.s32 %s26, %s33
      %s150 = sor.u32 %s148, %s149
      %p151 = scmp.eq.s32.totalorder %s150, 0
      %s153 = sadd.s32 %s152, 1
      %s154 = scalar_select %p151, %s152, %s153
      %p157 = pneg %p151
      %p158 = scmp.eq.s32.totalorder %s18, 3
      %p159 = por %p157, %p158
      %p160 = scmp.ne.s32.totalorder %s152, %s155
      %p161 = scmp.eq.s32.totalorder %s18, 0
      %p162 = por %p160, %p161
      %p163 = scmp.ne.s32.totalorder %s152, %s155
      %p164 = scmp.eq.s32.totalorder %s23, 3
      %p165 = por %p163, %p164
      %p166 = scmp.ne.s32.totalorder %s155, %s156
      %p167 = scmp.eq.s32.totalorder %s23, 0
      %p168 = por %p166, %p167
      %p169 = scmp.ne.s32.totalorder %s155, %s156
      %p170 = scmp.eq.s32.totalorder %s24, 3
      %p171 = por %p169, %p170
      %p173 = scmp.ne.s32.totalorder %s156, %s172
      %p174 = scmp.eq.s32.totalorder %s24, 0
      %p175 = por %p173, %p174
      %p176 = scmp.le.s32.totalorder 1, %s18
      %p177 = scmp.lt.s32.totalorder %s18, 5
      %p178 = pnand %p176, %p177
      %p179 = pneg %p178
      // Predicated region
      $region9: #{tpu_custom_call.1} parent=5 // pred_check
        _
      $region10: #{tpu_custom_call.1} parent=5 // pred_check_branch
        %181 = sbr.rel (%p178) target = $region12
      $region11: #{tpu_custom_call.1} parent=5 // pred_region
        %s182 = ssub.s32 %s18, 1
        // Predicated region
        $region13: #{tpu_custom_call.1} parent=11 // pred_check
          %p183 = pneg %p77
        $region14: #{tpu_custom_call.1} parent=11 // pred_check_branch
          %185 = sbr.rel (%p183) target = $region16
        $region15: #{tpu_custom_call.1} parent=11 // pred_region
          %187 = vsyncadd [#allocation8], 0
          %s188 = sshll.u32 %s1, 4
          %s189 = int_to_ptr.hbm [resolvable:$true] %s188
          %s190 = sshll.u32 [#allocation7], 4
          %s191 = int_to_ptr.vmem [resolvable:$true] %s190
          %196 = dma.hbm_to_vmem [thread:$0]  %s189, 9216, %s191, [#allocation8], 64, 64, 4
        $region16: #{tpu_custom_call.1} parent=11 // pred_fallthru
          _
        // Predicated region
        $region17: #{tpu_custom_call.1} parent=11 // pred_check
          %p197 = pneg %p98
        $region18: #{tpu_custom_call.1} parent=11 // pred_check_branch
          %199 = sbr.rel (%p197) target = $region20
        $region19: #{tpu_custom_call.1} parent=11 // pred_region
          _
        $region20: #{tpu_custom_call.1} parent=11 // pred_fallthru
          _
        // Predicated region
        $region21: #{tpu_custom_call.1} parent=11 // pred_check
          %p200 = pneg %p119
        $region22: #{tpu_custom_call.1} parent=11 // pred_check_branch
          %202 = sbr.rel (%p200) target = $region24
        $region23: #{tpu_custom_call.1} parent=11 // pred_region
          %204 = vsyncadd [#allocation8], 0
          %s205 = sshll.u32 %s3, 4
          %s206 = int_to_ptr.hbm [resolvable:$true] %s205
          %s207 = sshll.u32 [#allocation9], 4
          %s208 = int_to_ptr.vmem [resolvable:$true] %s207
          %213 = dma.hbm_to_vmem [thread:$0]  %s206, 9216, %s208, [#allocation8], 64, 64, 4
        $region24: #{tpu_custom_call.1} parent=11 // pred_fallthru
          _
        // Predicated region
        $region25: #{tpu_custom_call.1} parent=11 // pred_check
          %p214 = pneg %p140
        $region26: #{tpu_custom_call.1} parent=11 // pred_check_branch
          %216 = sbr.rel (%p214) target = $region28
        $region27: #{tpu_custom_call.1} parent=11 // pred_region
          _
        $region28: #{tpu_custom_call.1} parent=11 // pred_fallthru
          _
      $region12: #{tpu_custom_call.1} parent=5 // pred_fallthru
        _
      %p217 = scmp.lt.s32.totalorder %s18, 4
      // Predicated region
      $region29: #{tpu_custom_call.1} parent=5 // pred_check
        %p218 = pneg %p217
      $region30: #{tpu_custom_call.1} parent=5 // pred_check_branch
        %220 = sbr.rel (%p218) target = $region32
      $region31: #{tpu_custom_call.1} parent=5 // pred_region
        // Predicated region
        $region33: #{tpu_custom_call.1} parent=31 // pred_check
          %p221 = pneg %p50
        $region34: #{tpu_custom_call.1} parent=31 // pred_check_branch
          %223 = sbr.rel (%p221) target = $region36
        $region35: #{tpu_custom_call.1} parent=31 // pred_region
          %s224 = sand.u32 %s40, 1
          %s225 = scalar_lea.sflag [#allocation5], %s224
          %s226 = sand.u32 %s40, 1
          %s227 = smul.addr %s226, 256
          %s228 = scalar_lea.vmem [#allocation4], %s227
          %230 = vsyncadd %s225, 0
          %s231 = smul.addr %s25, 32
          %s232 = smul.addr %s231, 8
          %s233 = scalar_lea.hbm %s0, %s232
          %s234 = sshll.u32 %s233, 4
          %s235 = int_to_ptr.hbm [resolvable:$true] %s234
          %s236 = sshll.u32 %s228, 4
          %s237 = int_to_ptr.vmem [resolvable:$true] %s236
          %242 = dma.hbm_to_vmem [thread:$0]  %s235, 4096, %s237, %s225, 128, 128, 8
        $region36: #{tpu_custom_call.1} parent=31 // pred_fallthru
          _
      $region32: #{tpu_custom_call.1} parent=5 // pred_fallthru
        _
      %p243 = scmp.le.s32.totalorder 1, %s18
      %p244 = scmp.lt.s32.totalorder %s18, 5
      %p245 = pnand %p243, %p244
      %p246 = pneg %p245
      // Predicated region
      $region37: #{tpu_custom_call.1} parent=5 // pred_check
        _
      $region38: #{tpu_custom_call.1} parent=5 // pred_check_branch
        %248 = sbr.rel (%p245) target = $region40
      $region39: #{tpu_custom_call.1} parent=5 // pred_region
        %s249 = ssub.s32 %s18, 1
        %s250 = sand.u32 %s43, 1
        %s251 = scalar_lea.sflag [#allocation5], %s250
        %s252 = sand.u32 %s43, 1
        %s253 = smul.addr %s252, 256
        %s254 = scalar_lea.vmem [#allocation4], %s253
        // Predicated region
        $region41: #{tpu_custom_call.1} parent=39 // pred_check
          %p255 = pneg %p56
        $region42: #{tpu_custom_call.1} parent=39 // pred_check_branch
          %257 = sbr.rel (%p255) target = $region44
        $region43: #{tpu_custom_call.1} parent=39 // pred_region
          %259 = dma.done %s251, 4096
        $region44: #{tpu_custom_call.1} parent=39 // pred_fallthru
          _
        // Predicated region
        $region45: #{tpu_custom_call.1} parent=39 // pred_check
          %p260 = pneg %p77
        $region46: #{tpu_custom_call.1} parent=39 // pred_check_branch
          %262 = sbr.rel (%p260) target = $region48
        $region47: #{tpu_custom_call.1} parent=39 // pred_region
          %264 = dma.done [#allocation8], 9216
        $region48: #{tpu_custom_call.1} parent=39 // pred_fallthru
          _
        // Predicated region
        $region49: #{tpu_custom_call.1} parent=39 // pred_check
          %p265 = pneg %p119
        $region50: #{tpu_custom_call.1} parent=39 // pred_check_branch
          %267 = sbr.rel (%p265) target = $region52
        $region51: #{tpu_custom_call.1} parent=39 // pred_region
          %269 = dma.done [#allocation8], 9216
        $region52: #{tpu_custom_call.1} parent=39 // pred_fallthru
          _
        %s270 = sand.u32 %s43, 1
        %s271 = scalar_lea.sflag [#allocation5], %s270
        %s272 = sand.u32 %s43, 1
        %s273 = smul.addr %s272, 256
        %s274 = scalar_lea.vmem [#allocation4], %s273
        %p275 = pneg %p56
        %p276 = pneg %p53
        %p277 = pneg %p77
        %p278 = pneg %p74
        %p279 = pneg %p98
        %p280 = pneg %p95
        %p281 = pneg %p119
        %p282 = pneg %p116
        %p283 = pneg %p140
        %p284 = pneg %p137
        %p285 = pneg %p168
        %p286 = pneg %p165
        %s287 = sand.u32 %s155, 1
        %s288 = scalar_lea.sflag [#allocation6], %s287
        %s289 = sand.u32 %s155, 1
        %s290 = smul.addr %s289, 128
        %s291 = scalar_lea.vmem [#allocation10], %s290
        %s292 = smul.u32 8, %s28
        %s294 = smul.u32 %s28, 8
        %295 = vst [vmem:[#allocation2] sm:$0xf] 0
        %296 = vst [vmem:[#allocation2 + $0x4] sm:$0xf] 0
        %297 = vst [vmem:[#allocation2 + $0x18] sm:$0xf] 0
        %298 = vst [vmem:[#allocation2 + $0x1c] sm:$0xf] 0
        %299 = vst [vmem:[#allocation2 + $0x30] sm:$0xf] 0
        %300 = vst [vmem:[#allocation2 + $0x34] sm:$0xf] 0
        %301 = vst [vmem:[#allocation2 + $0x48] sm:$0xf] 0
        %302 = vst [vmem:[#allocation2 + $0x4c] sm:$0xf] 0
        %303 = vst [vmem:[#allocation2 + $0x60] sm:$0xf] 0
        %304 = vst [vmem:[#allocation2 + $0x64] sm:$0xf] 0
        %305 = vst [vmem:[#allocation2 + $0x78] sm:$0xf] 0
        %306 = vst [vmem:[#allocation2 + $0x7c] sm:$0xf] 0
        %307 = vst [vmem:[#allocation2 + $0x90] sm:$0xf] 0
        %308 = vst [vmem:[#allocation2 + $0x94] sm:$0xf] 0
        %309 = vst [vmem:[#allocation2 + $0xa8] sm:$0xf] 0
        %310 = vst [vmem:[#allocation2 + $0xac] sm:$0xf] 0
        %311 = vst [vmem:[#allocation2 + $0xc0] sm:$0xf] 0
        %312 = vst [vmem:[#allocation2 + $0xc4] sm:$0xf] 0
        %313 = vst [vmem:[#allocation2 + $0xd8] sm:$0xf] 0
        %314 = vst [vmem:[#allocation2 + $0xdc] sm:$0xf] 0
        %315 = vst [vmem:[#allocation2 + $0xf0] sm:$0xf] 0
        %316 = vst [vmem:[#allocation2 + $0xf4] sm:$0xf] 0
        %317 = vst [vmem:[#allocation2 + $0x108] sm:$0xf] 0
        %318 = vst [vmem:[#allocation2 + $0x10c] sm:$0xf] 0
        %319 = vst [vmem:[#allocation2 + $0x10] sm:$0xf] 0
        %320 = vst [vmem:[#allocation2 + $0x14] sm:$0xf] 0
        %321 = vst [vmem:[#allocation2 + $0x28] sm:$0xf] 0
        %322 = vst [vmem:[#allocation2 + $0x2c] sm:$0xf] 0
        %323 = vst [vmem:[#allocation2 + $0x40] sm:$0xf] 0
        %324 = vst [vmem:[#allocation2 + $0x44] sm:$0xf] 0
        %325 = vst [vmem:[#allocation2 + $0x58] sm:$0xf] 0
        %326 = vst [vmem:[#allocation2 + $0x5c] sm:$0xf] 0
        %327 = vst [vmem:[#allocation2 + $0x70] sm:$0xf] 0
        %328 = vst [vmem:[#allocation2 + $0x74] sm:$0xf] 0
        %329 = vst [vmem:[#allocation2 + $0x88] sm:$0xf] 0
        %330 = vst [vmem:[#allocation2 + $0x8c] sm:$0xf] 0
        %331 = vst [vmem:[#allocation2 + $0xa0] sm:$0xf] 0
        %332 = vst [vmem:[#allocation2 + $0xa4] sm:$0xf] 0
        %333 = vst [vmem:[#allocation2 + $0xb8] sm:$0xf] 0
        %334 = vst [vmem:[#allocation2 + $0xbc] sm:$0xf] 0
        %335 = vst [vmem:[#allocation2 + $0xd0] sm:$0xf] 0
        %336 = vst [vmem:[#allocation2 + $0xd4] sm:$0xf] 0
        %337 = vst [vmem:[#allocation2 + $0xe8] sm:$0xf] 0
        %338 = vst [vmem:[#allocation2 + $0xec] sm:$0xf] 0
        %339 = vst [vmem:[#allocation2 + $0x100] sm:$0xf] 0
        %340 = vst [vmem:[#allocation2 + $0x104] sm:$0xf] 0
        %341 = vst [vmem:[#allocation2 + $0x118] sm:$0xf] 0
        %342 = vst [vmem:[#allocation2 + $0x11c] sm:$0xf] 0
        %343 = vst [vmem:[#allocation3] sm:$0xf] 0
        %344 = vst [vmem:[#allocation3 + $0x4] sm:$0xf] 0
        %345 = vst [vmem:[#allocation3 + $0x18] sm:$0xf] 0
        %346 = vst [vmem:[#allocation3 + $0x1c] sm:$0xf] 0
        %347 = vst [vmem:[#allocation3 + $0x30] sm:$0xf] 0
        %348 = vst [vmem:[#allocation3 + $0x34] sm:$0xf] 0
        %349 = vst [vmem:[#allocation3 + $0x48] sm:$0xf] 0
        %350 = vst [vmem:[#allocation3 + $0x4c] sm:$0xf] 0
        %351 = vst [vmem:[#allocation3 + $0x60] sm:$0xf] 0
        %352 = vst [vmem:[#allocation3 + $0x64] sm:$0xf] 0
        %353 = vst [vmem:[#allocation3 + $0x78] sm:$0xf] 0
        %354 = vst [vmem:[#allocation3 + $0x7c] sm:$0xf] 0
        %355 = vst [vmem:[#allocation3 + $0x90] sm:$0xf] 0
        %356 = vst [vmem:[#allocation3 + $0x94] sm:$0xf] 0
        %357 = vst [vmem:[#allocation3 + $0xa8] sm:$0xf] 0
        %358 = vst [vmem:[#allocation3 + $0xac] sm:$0xf] 0
        %359 = vst [vmem:[#allocation3 + $0xc0] sm:$0xf] 0
        %360 = vst [vmem:[#allocation3 + $0xc4] sm:$0xf] 0
        %361 = vst [vmem:[#allocation3 + $0xd8] sm:$0xf] 0
        %362 = vst [vmem:[#allocation3 + $0xdc] sm:$0xf] 0
        %363 = vst [vmem:[#allocation3 + $0x10] sm:$0xf] 0
        %364 = vst [vmem:[#allocation3 + $0x14] sm:$0xf] 0
        %365 = vst [vmem:[#allocation3 + $0x28] sm:$0xf] 0
        %366 = vst [vmem:[#allocation3 + $0x2c] sm:$0xf] 0
        %367 = vst [vmem:[#allocation3 + $0x40] sm:$0xf] 0
        %368 = vst [vmem:[#allocation3 + $0x44] sm:$0xf] 0
        %369 = vst [vmem:[#allocation3 + $0x58] sm:$0xf] 0
        %370 = vst [vmem:[#allocation3 + $0x5c] sm:$0xf] 0
        %371 = vst [vmem:[#allocation3 + $0x70] sm:$0xf] 0
        %372 = vst [vmem:[#allocation3 + $0x74] sm:$0xf] 0
        %373 = vst [vmem:[#allocation3 + $0x88] sm:$0xf] 0
        %374 = vst [vmem:[#allocation3 + $0x8c] sm:$0xf] 0
        %375 = vst [vmem:[#allocation3 + $0xa0] sm:$0xf] 0
        %376 = vst [vmem:[#allocation3 + $0xa4] sm:$0xf] 0
        %377 = vst [vmem:[#allocation3 + $0xb8] sm:$0xf] 0
        %378 = vst [vmem:[#allocation3 + $0xbc] sm:$0xf] 0
        %379 = vst [vmem:[#allocation3 + $0xd0] sm:$0xf] 0
        %380 = vst [vmem:[#allocation3 + $0xd4] sm:$0xf] 0
        %381 = vst [vmem:[#allocation3 + $0xe8] sm:$0xf] 0
        %382 = vst [vmem:[#allocation3 + $0xec] sm:$0xf] 0
        %s383 = smul.u32 %s294, 16
        %s384 = scalar_lea.vmem %s254, %s383 [#allocation4]
        %v385 = vld [vmem:[%s384] sm:$0xff]
        %v386 = vld [vmem:[%s384 + $0x8] sm:$0xff]
        %v387 = vld [vmem:[%s384 + $0x10] sm:$0xff]
        %v388 = vld [vmem:[%s384 + $0x18] sm:$0xff]
        %v389 = vld [vmem:[%s384 + $0x20] sm:$0xff]
        %v390 = vld [vmem:[%s384 + $0x28] sm:$0xff]
        %v391 = vld [vmem:[%s384 + $0x30] sm:$0xff]
        %v392 = vld [vmem:[%s384 + $0x38] sm:$0xff]
        %v393 = vld [vmem:[%s384 + $0x40] sm:$0xff]
        %v394 = vld [vmem:[%s384 + $0x48] sm:$0xff]
        %v395 = vld [vmem:[%s384 + $0x50] sm:$0xff]
        %v396 = vld [vmem:[%s384 + $0x58] sm:$0xff]
        %v397 = vld [vmem:[%s384 + $0x60] sm:$0xff]
        %v398 = vld [vmem:[%s384 + $0x68] sm:$0xff]
        %v399 = vld [vmem:[%s384 + $0x70] sm:$0xff]
        %v400 = vld [vmem:[%s384 + $0x78] sm:$0xff]
        %v401 = vpack.c.bf16 %v385, %v385
        %v402 = vpack.c.bf16 %v386, %v386
        %v403 = vpack.c.bf16 %v387, %v387
        %v404 = vpack.c.bf16 %v388, %v388
        %v405 = vpack.c.bf16 %v389, %v389
        %v406 = vpack.c.bf16 %v390, %v390
        %v407 = vpack.c.bf16 %v391, %v391
        %v408 = vpack.c.bf16 %v392, %v392
        %v409 = vpack.c.bf16 %v393, %v393
        %v410 = vpack.c.bf16 %v394, %v394
        %v411 = vpack.c.bf16 %v395, %v395
        %v412 = vpack.c.bf16 %v396, %v396
        %v413 = vpack.c.bf16 %v397, %v397
        %v414 = vpack.c.bf16 %v398, %v398
        %v415 = vpack.c.bf16 %v399, %v399
        %v416 = vpack.c.bf16 %v400, %v400
        %s417 = scalar_lea.vmem [#allocation2], 48
        %418 = vst [vmem:[%s417 + $0x8] sm:$0xf] %v401
        %419 = vst [vmem:[%s417 + $0xc] sm:$0xf] %v402
        %420 = vst [vmem:[%s417 + $0x20] sm:$0xf] %v403
        %421 = vst [vmem:[%s417 + $0x24] sm:$0xf] %v404
        %422 = vst [vmem:[%s417 + $0x38] sm:$0xf] %v405
        %423 = vst [vmem:[%s417 + $0x3c] sm:$0xf] %v406
        %424 = vst [vmem:[%s417 + $0x50] sm:$0xf] %v407
        %425 = vst [vmem:[%s417 + $0x54] sm:$0xf] %v408
        %426 = vst [vmem:[%s417 + $0x68] sm:$0xf] %v409
        %427 = vst [vmem:[%s417 + $0x6c] sm:$0xf] %v410
        %428 = vst [vmem:[%s417 + $0x80] sm:$0xf] %v411
        %429 = vst [vmem:[%s417 + $0x84] sm:$0xf] %v412
        %430 = vst [vmem:[%s417 + $0x98] sm:$0xf] %v413
        %431 = vst [vmem:[%s417 + $0x9c] sm:$0xf] %v414
        %432 = vst [vmem:[%s417 + $0xb0] sm:$0xf] %v415
        %433 = vst [vmem:[%s417 + $0xb4] sm:$0xf] %v416
        %p434 = scmp.eq.s32.totalorder %s28, 0
        // Predicated region
        $region53: #{tpu_custom_call.1} parent=39 // pred_check
          %p435 = pneg %p434
        $region54: #{tpu_custom_call.1} parent=39 // pred_check_branch
          %437 = sbr.rel (%p435) target = $region56
        $region55: #{tpu_custom_call.1} parent=39 // pred_region
          %438 = vst [vmem:[#allocation2 + $0x8] sm:$0xf] 0
          %439 = vst [vmem:[#allocation2 + $0xc] sm:$0xf] 0
          %440 = vst [vmem:[#allocation2 + $0x20] sm:$0xf] 0
          %441 = vst [vmem:[#allocation2 + $0x24] sm:$0xf] 0
        $region56: #{tpu_custom_call.1} parent=39 // pred_fallthru
          _
        %p442 = scmp.gt.s32.totalorder %s28, 0
        // Predicated region
        $region57: #{tpu_custom_call.1} parent=39 // pred_check
          %p443 = pneg %p442
        $region58: #{tpu_custom_call.1} parent=39 // pred_check_branch
          %445 = sbr.rel (%p443) target = $region60
        $region59: #{tpu_custom_call.1} parent=39 // pred_region
          %s446 = ssub.s32 %s294, 2
          %s447 = smul.u32 %s446, 16
          %s448 = scalar_lea.vmem %s254, %s447 [#allocation4]
          %v449 = vld [vmem:[%s448] sm:$0xff]
          %v450 = vld [vmem:[%s448 + $0x8] sm:$0xff]
          %v451 = vld [vmem:[%s448 + $0x10] sm:$0xff]
          %v452 = vld [vmem:[%s448 + $0x18] sm:$0xff]
          %v453 = vpack.c.bf16 %v449, %v449
          %v454 = vpack.c.bf16 %v450, %v450
          %v455 = vpack.c.bf16 %v451, %v451
          %v456 = vpack.c.bf16 %v452, %v452
          %457 = vst [vmem:[#allocation2 + $0x8] sm:$0xf] %v453
          %458 = vst [vmem:[#allocation2 + $0xc] sm:$0xf] %v454
          %459 = vst [vmem:[#allocation2 + $0x20] sm:$0xf] %v455
          %460 = vst [vmem:[#allocation2 + $0x24] sm:$0xf] %v456
        $region60: #{tpu_custom_call.1} parent=39 // pred_fallthru
          _
        %p461 = scmp.eq.s32.totalorder %s28, 1
        // Predicated region
        $region61: #{tpu_custom_call.1} parent=39 // pred_check
          %p462 = pneg %p461
        $region62: #{tpu_custom_call.1} parent=39 // pred_check_branch
          %464 = sbr.rel (%p462) target = $region64
        $region63: #{tpu_custom_call.1} parent=39 // pred_region
          %s465 = scalar_lea.vmem [#allocation2], 240
          %466 = vst [vmem:[%s465 + $0x8] sm:$0xf] 0
          %467 = vst [vmem:[%s465 + $0xc] sm:$0xf] 0
          %468 = vst [vmem:[%s465 + $0x20] sm:$0xf] 0
          %469 = vst [vmem:[%s465 + $0x24] sm:$0xf] 0
        $region64: #{tpu_custom_call.1} parent=39 // pred_fallthru
          _
        %p470 = scmp.lt.s32.totalorder %s28, 1
        // Predicated region
        $region65: #{tpu_custom_call.1} parent=39 // pred_check
          %p471 = pneg %p470
        $region66: #{tpu_custom_call.1} parent=39 // pred_check_branch
          %473 = sbr.rel (%p471) target = $region68
        $region67: #{tpu_custom_call.1} parent=39 // pred_region
          %s474 = sadd.s32 %s294, 8
          %s475 = smul.u32 %s474, 16
          %s476 = scalar_lea.vmem %s254, %s475 [#allocation4]
          %v477 = vld [vmem:[%s476] sm:$0xff]
          %v478 = vld [vmem:[%s476 + $0x8] sm:$0xff]
          %v479 = vld [vmem:[%s476 + $0x10] sm:$0xff]
          %v480 = vld [vmem:[%s476 + $0x18] sm:$0xff]
          %v481 = vpack.c.bf16 %v477, %v477
          %v482 = vpack.c.bf16 %v478, %v478
          %v483 = vpack.c.bf16 %v479, %v479
          %v484 = vpack.c.bf16 %v480, %v480
          %s485 = scalar_lea.vmem [#allocation2], 240
          %486 = vst [vmem:[%s485 + $0x8] sm:$0xf] %v481
          %487 = vst [vmem:[%s485 + $0xc] sm:$0xf] %v482
          %488 = vst [vmem:[%s485 + $0x20] sm:$0xf] %v483
          %489 = vst [vmem:[%s485 + $0x24] sm:$0xf] %v484
        $region68: #{tpu_custom_call.1} parent=39 // pred_fallthru
          _
        %v490 = vld [vmem:[#allocation2 + $0x4] sm:$0x8]
        %v491 = vld [vmem:[#allocation2 + $0x8] sm:$0xf]
        %v492 = vld [vmem:[#allocation2 + $0xc] sm:$0xf]
        %v493 = vld [vmem:[#allocation2 + $0x1c] sm:$0x8]
        %v494 = vld [vmem:[#allocation2 + $0x20] sm:$0xf]
        %v495 = vld [vmem:[#allocation2 + $0x24] sm:$0xf]
        %v496 = vld [vmem:[#allocation2 + $0x34] sm:$0x8]
        %v497 = vld [vmem:[#allocation2 + $0x38] sm:$0xf]
        %v498 = vld [vmem:[#allocation2 + $0x3c] sm:$0xf]
        %v499 = vld [vmem:[#allocation2 + $0x4c] sm:$0x8]
        %v500 = vld [vmem:[#allocation2 + $0x50] sm:$0xf]
        %v501 = vld [vmem:[#allocation2 + $0x54] sm:$0xf]
        %v502 = vld [vmem:[#allocation2 + $0x64] sm:$0x8]
        %v503 = vld [vmem:[#allocation2 + $0x68] sm:$0xf]
        %v504 = vld [vmem:[#allocation2 + $0x6c] sm:$0xf]
        %v505 = vld [vmem:[#allocation2 + $0x7c] sm:$0x8]
        %v506 = vld [vmem:[#allocation2 + $0x80] sm:$0xf]
        %v507 = vld [vmem:[#allocation2 + $0x84] sm:$0xf]
        %v508 = vld [vmem:[#allocation2 + $0x94] sm:$0x8]
        %v509 = vld [vmem:[#allocation2 + $0x98] sm:$0xf]
        %v510 = vld [vmem:[#allocation2 + $0x9c] sm:$0xf]
        %v511 = vld [vmem:[#allocation2 + $0xac] sm:$0x8]
        %v512 = vld [vmem:[#allocation2 + $0xb0] sm:$0xf]
        %v513 = vld [vmem:[#allocation2 + $0xb4] sm:$0xf]
        %v514 = vld [vmem:[#allocation2 + $0xc4] sm:$0x8]
        %v515 = vld [vmem:[#allocation2 + $0xc8] sm:$0xf]
        %v516 = vld [vmem:[#allocation2 + $0xcc] sm:$0xf]
        %v517 = vld [vmem:[#allocation2 + $0xdc] sm:$0x8]
        %v518 = vld [vmem:[#allocation2 + $0xe0] sm:$0xf]
        %v519 = vld [vmem:[#allocation2 + $0xe4] sm:$0xf]
        %v520 = vld [vmem:[#allocation2 + $0x10] sm:$0x1]
        %v521 = vld [vmem:[#allocation2 + $0x28] sm:$0x1]
        %v522 = vld [vmem:[#allocation2 + $0x40] sm:$0x1]
        %v523 = vld [vmem:[#allocation2 + $0x58] sm:$0x1]
        %v524 = vld [vmem:[#allocation2 + $0x70] sm:$0x1]
        %v525 = vld [vmem:[#allocation2 + $0x88] sm:$0x1]
        %v526 = vld [vmem:[#allocation2 + $0xa0] sm:$0x1]
        %v527 = vld [vmem:[#allocation2 + $0xb8] sm:$0x1]
        %v528 = vld [vmem:[#allocation2 + $0xd0] sm:$0x1]
        %v529 = vld [vmem:[#allocation2 + $0xe8] sm:$0x1]
        %s530 = scalar_lea.vmem [#allocation2], 24
        %v531 = vld [vmem:[%s530 + $0x4] sm:$0x8]
        %v532 = vld [vmem:[%s530 + $0x8] sm:$0xf]
        %v533 = vld [vmem:[%s530 + $0xc] sm:$0xf]
        %v534 = vld [vmem:[%s530 + $0x1c] sm:$0x8]
        %v535 = vld [vmem:[%s530 + $0x20] sm:$0xf]
        %v536 = vld [vmem:[%s530 + $0x24] sm:$0xf]
        %v537 = vld [vmem:[%s530 + $0x34] sm:$0x8]
        %v538 = vld [vmem:[%s530 + $0x38] sm:$0xf]
        %v539 = vld [vmem:[%s530 + $0x3c] sm:$0xf]
        %v540 = vld [vmem:[%s530 + $0x4c] sm:$0x8]
        %v541 = vld [vmem:[%s530 + $0x50] sm:$0xf]
        %v542 = vld [vmem:[%s530 + $0x54] sm:$0xf]
        %v543 = vld [vmem:[%s530 + $0x64] sm:$0x8]
        %v544 = vld [vmem:[%s530 + $0x68] sm:$0xf]
        %v545 = vld [vmem:[%s530 + $0x6c] sm:$0xf]
        %v546 = vld [vmem:[%s530 + $0x7c] sm:$0x8]
        %v547 = vld [vmem:[%s530 + $0x80] sm:$0xf]
        %v548 = vld [vmem:[%s530 + $0x84] sm:$0xf]
        %v549 = vld [vmem:[%s530 + $0x94] sm:$0x8]
        %v550 = vld [vmem:[%s530 + $0x98] sm:$0xf]
        %v551 = vld [vmem:[%s530 + $0x9c] sm:$0xf]
        %v552 = vld [vmem:[%s530 + $0xac] sm:$0x8]
        %v553 = vld [vmem:[%s530 + $0xb0] sm:$0xf]
        %v554 = vld [vmem:[%s530 + $0xb4] sm:$0xf]
        %v555 = vld [vmem:[%s530 + $0xc4] sm:$0x8]
        %v556 = vld [vmem:[%s530 + $0xc8] sm:$0xf]
        %v557 = vld [vmem:[%s530 + $0xcc] sm:$0xf]
        %v558 = vld [vmem:[%s530 + $0xdc] sm:$0x8]
        %v559 = vld [vmem:[%s530 + $0xe0] sm:$0xf]
        %v560 = vld [vmem:[%s530 + $0xe4] sm:$0xf]
        %v561 = vld [vmem:[%s530 + $0x10] sm:$0x1]
        %v562 = vld [vmem:[%s530 + $0x28] sm:$0x1]
        %v563 = vld [vmem:[%s530 + $0x40] sm:$0x1]
        %v564 = vld [vmem:[%s530 + $0x58] sm:$0x1]
        %v565 = vld [vmem:[%s530 + $0x70] sm:$0x1]
        %v566 = vld [vmem:[%s530 + $0x88] sm:$0x1]
        %v567 = vld [vmem:[%s530 + $0xa0] sm:$0x1]
        %v568 = vld [vmem:[%s530 + $0xb8] sm:$0x1]
        %v569 = vld [vmem:[%s530 + $0xd0] sm:$0x1]
        %v570 = vld [vmem:[%s530 + $0xe8] sm:$0x1]
        %v571 = vld [vmem:[%s417 + $0x4] sm:$0x8]
        %v572 = vld [vmem:[%s417 + $0x8] sm:$0xf]
        %v573 = vld [vmem:[%s417 + $0xc] sm:$0xf]
        %v574 = vld [vmem:[%s417 + $0x1c] sm:$0x8]
        %v575 = vld [vmem:[%s417 + $0x20] sm:$0xf]
        %v576 = vld [vmem:[%s417 + $0x24] sm:$0xf]
        %v577 = vld [vmem:[%s417 + $0x34] sm:$0x8]
        %v578 = vld [vmem:[%s417 + $0x38] sm:$0xf]
        %v579 = vld [vmem:[%s417 + $0x3c] sm:$0xf]
        %v580 = vld [vmem:[%s417 + $0x4c] sm:$0x8]
        %v581 = vld [vmem:[%s417 + $0x50] sm:$0xf]
        %v582 = vld [vmem:[%s417 + $0x54] sm:$0xf]
        %v583 = vld [vmem:[%s417 + $0x64] sm:$0x8]
        %v584 = vld [vmem:[%s417 + $0x68] sm:$0xf]
        %v585 = vld [vmem:[%s417 + $0x6c] sm:$0xf]
        %v586 = vld [vmem:[%s417 + $0x7c] sm:$0x8]
        %v587 = vld [vmem:[%s417 + $0x80] sm:$0xf]
        %v588 = vld [vmem:[%s417 + $0x84] sm:$0xf]
        %v589 = vld [vmem:[%s417 + $0x94] sm:$0x8]
        %v590 = vld [vmem:[%s417 + $0x98] sm:$0xf]
        %v591 = vld [vmem:[%s417 + $0x9c] sm:$0xf]
        %v592 = vld [vmem:[%s417 + $0xac] sm:$0x8]
        %v593 = vld [vmem:[%s417 + $0xb0] sm:$0xf]
        %v594 = vld [vmem:[%s417 + $0xb4] sm:$0xf]
        %v595 = vld [vmem:[%s417 + $0xc4] sm:$0x8]
        %v596 = vld [vmem:[%s417 + $0xc8] sm:$0xf]
        %v597 = vld [vmem:[%s417 + $0xcc] sm:$0xf]
        %v598 = vld [vmem:[%s417 + $0xdc] sm:$0x8]
        %v599 = vld [vmem:[%s417 + $0xe0] sm:$0xf]
        %v600 = vld [vmem:[%s417 + $0xe4] sm:$0xf]
        %v601 = vld [vmem:[%s417 + $0x10] sm:$0x1]
        %v602 = vld [vmem:[%s417 + $0x28] sm:$0x1]
        %v603 = vld [vmem:[%s417 + $0x40] sm:$0x1]
        %v604 = vld [vmem:[%s417 + $0x58] sm:$0x1]
        %v605 = vld [vmem:[%s417 + $0x70] sm:$0x1]
        %v606 = vld [vmem:[%s417 + $0x88] sm:$0x1]
        %v607 = vld [vmem:[%s417 + $0xa0] sm:$0x1]
        %v608 = vld [vmem:[%s417 + $0xb8] sm:$0x1]
        %v609 = vld [vmem:[%s417 + $0xd0] sm:$0x1]
        %v610 = vld [vmem:[%s417 + $0xe8] sm:$0x1]
        %v641 = vunpack.c.l.b16 %v490
        %v642 = vunpack.c.l.b16 %v491
        %v643 = vunpack.c.l.b16 %v492
        %v644 = vunpack.c.l.b16 %v493
        %v645 = vunpack.c.l.b16 %v494
        %v646 = vunpack.c.l.b16 %v495
        %v647 = vunpack.c.l.b16 %v496
        %v648 = vunpack.c.l.b16 %v497
        %v649 = vunpack.c.l.b16 %v498
        %v650 = vunpack.c.l.b16 %v499
        %v651 = vunpack.c.l.b16 %v500
        %v652 = vunpack.c.l.b16 %v501
        %v653 = vunpack.c.l.b16 %v502
        %v654 = vunpack.c.l.b16 %v503
        %v655 = vunpack.c.l.b16 %v504
        %v656 = vunpack.c.l.b16 %v505
        %v657 = vunpack.c.l.b16 %v506
        %v658 = vunpack.c.l.b16 %v507
        %v659 = vunpack.c.l.b16 %v508
        %v660 = vunpack.c.l.b16 %v509
        %v661 = vunpack.c.l.b16 %v510
        %v662 = vunpack.c.l.b16 %v511
        %v663 = vunpack.c.l.b16 %v512
        %v664 = vunpack.c.l.b16 %v513
        %v665 = vunpack.c.l.b16 %v514
        %v666 = vunpack.c.l.b16 %v515
        %v667 = vunpack.c.l.b16 %v516
        %v668 = vunpack.c.l.b16 %v517
        %v669 = vunpack.c.l.b16 %v518
        %v670 = vunpack.c.l.b16 %v519
        %v671 = vpack.c.b16 %v642, %v641
        %v672 = vpack.c.b16 %v643, %v643
        %v673 = vpack.c.b16 %v645, %v644
        %v674 = vpack.c.b16 %v646, %v646
        %v675 = vpack.c.b16 %v648, %v647
        %v676 = vpack.c.b16 %v649, %v649
        %v677 = vpack.c.b16 %v651, %v650
        %v678 = vpack.c.b16 %v652, %v652
        %v679 = vpack.c.b16 %v654, %v653
        %v680 = vpack.c.b16 %v655, %v655
        %v681 = vpack.c.b16 %v657, %v656
        %v682 = vpack.c.b16 %v658, %v658
        %v683 = vpack.c.b16 %v660, %v659
        %v684 = vpack.c.b16 %v661, %v661
        %v685 = vpack.c.b16 %v663, %v662
        %v686 = vpack.c.b16 %v664, %v664
        %v687 = vpack.c.b16 %v666, %v665
        %v688 = vpack.c.b16 %v667, %v667
        %v689 = vpack.c.b16 %v669, %v668
        %v690 = vpack.c.b16 %v670, %v670
        %v691 = vpack.c.b16 %v643, %v642
        %v692 = vpack.c.b16 %v646, %v645
        %v693 = vpack.c.b16 %v649, %v648
        %v694 = vpack.c.b16 %v652, %v651
        %v695 = vpack.c.b16 %v655, %v654
        %v696 = vpack.c.b16 %v658, %v657
        %v697 = vpack.c.b16 %v661, %v660
        %v698 = vpack.c.b16 %v664, %v663
        %v699 = vpack.c.b16 %v667, %v666
        %v700 = vpack.c.b16 %v670, %v669
        %v702 = vshrl.u32 %v691, 16
        %v704 = vrot.slane %v702, 4
        %v705 = vshll.u32 %v691, 16
        %v707 = vrot.slane %v705, 5
        %v708 = vor.u32 %v704, %v707
        %v710 = vshrl.u32 %v692, 16
        %v712 = vrot.slane %v710, 4
        %v713 = vshll.u32 %v692, 16
        %v715 = vrot.slane %v713, 5
        %v716 = vor.u32 %v712, %v715
        %v718 = vshrl.u32 %v693, 16
        %v720 = vrot.slane %v718, 4
        %v721 = vshll.u32 %v693, 16
        %v723 = vrot.slane %v721, 5
        %v724 = vor.u32 %v720, %v723
        %v726 = vshrl.u32 %v694, 16
        %v728 = vrot.slane %v726, 4
        %v729 = vshll.u32 %v694, 16
        %v731 = vrot.slane %v729, 5
        %v732 = vor.u32 %v728, %v731
        %v734 = vshrl.u32 %v695, 16
        %v736 = vrot.slane %v734, 4
        %v737 = vshll.u32 %v695, 16
        %v739 = vrot.slane %v737, 5
        %v740 = vor.u32 %v736, %v739
        %v742 = vshrl.u32 %v696, 16
        %v744 = vrot.slane %v742, 4
        %v745 = vshll.u32 %v696, 16
        %v747 = vrot.slane %v745, 5
        %v748 = vor.u32 %v744, %v747
        %v750 = vshrl.u32 %v697, 16
        %v752 = vrot.slane %v750, 4
        %v753 = vshll.u32 %v697, 16
        %v755 = vrot.slane %v753, 5
        %v756 = vor.u32 %v752, %v755
        %v758 = vshrl.u32 %v698, 16
        %v760 = vrot.slane %v758, 4
        %v761 = vshll.u32 %v698, 16
        %v763 = vrot.slane %v761, 5
        %v764 = vor.u32 %v760, %v763
        %v766 = vshrl.u32 %v699, 16
        %v768 = vrot.slane %v766, 4
        %v769 = vshll.u32 %v699, 16
        %v771 = vrot.slane %v769, 5
        %v772 = vor.u32 %v768, %v771
        %v774 = vshrl.u32 %v700, 16
        %v776 = vrot.slane %v774, 4
        %v777 = vshll.u32 %v700, 16
        %v779 = vrot.slane %v777, 5
        %v780 = vor.u32 %v776, %v779
        %v791 = vunpack.c.l.b16 %v520
        %v792 = vunpack.c.l.b16 %v521
        %v793 = vunpack.c.l.b16 %v522
        %v794 = vunpack.c.l.b16 %v523
        %v795 = vunpack.c.l.b16 %v524
        %v796 = vunpack.c.l.b16 %v525
        %v797 = vunpack.c.l.b16 %v526
        %v798 = vunpack.c.l.b16 %v527
        %v799 = vunpack.c.l.b16 %v528
        %v800 = vunpack.c.l.b16 %v529
        %v801 = vpack.c.b16 %v791, %v791
        %v802 = vpack.c.b16 %v792, %v792
        %v803 = vpack.c.b16 %v793, %v793
        %v804 = vpack.c.b16 %v794, %v794
        %v805 = vpack.c.b16 %v795, %v795
        %v806 = vpack.c.b16 %v796, %v796
        %v807 = vpack.c.b16 %v797, %v797
        %v808 = vpack.c.b16 %v798, %v798
        %v809 = vpack.c.b16 %v799, %v799
        %v810 = vpack.c.b16 %v800, %v800
        %vm811 = vcmask 1042432
        %v812 = vrot.slane %v691, 5
        %v813 = vrot.slane %v801, 5
        %v814 = vsel %vm811, %v812, %v813
        %v815 = vrot.slane %v692, 5
        %v816 = vrot.slane %v802, 5
        %v817 = vsel %vm811, %v815, %v816
        %v818 = vrot.slane %v693, 5
        %v819 = vrot.slane %v803, 5
        %v820 = vsel %vm811, %v818, %v819
        %v821 = vrot.slane %v694, 5
        %v822 = vrot.slane %v804, 5
        %v823 = vsel %vm811, %v821, %v822
        %v824 = vrot.slane %v695, 5
        %v825 = vrot.slane %v805, 5
        %v826 = vsel %vm811, %v824, %v825
        %v827 = vrot.slane %v696, 5
        %v828 = vrot.slane %v806, 5
        %v829 = vsel %vm811, %v827, %v828
        %v830 = vrot.slane %v697, 5
        %v831 = vrot.slane %v807, 5
        %v832 = vsel %vm811, %v830, %v831
        %v833 = vrot.slane %v698, 5
        %v834 = vrot.slane %v808, 5
        %v835 = vsel %vm811, %v833, %v834
        %v836 = vrot.slane %v699, 5
        %v837 = vrot.slane %v809, 5
        %v838 = vsel %vm811, %v836, %v837
        %v839 = vrot.slane %v700, 5
        %v840 = vrot.slane %v810, 5
        %v841 = vsel %vm811, %v839, %v840
        %v872 = vunpack.c.l.b16 %v531
        %v873 = vunpack.c.l.b16 %v532
        %v874 = vunpack.c.l.b16 %v533
        %v875 = vunpack.c.l.b16 %v534
        %v876 = vunpack.c.l.b16 %v535
        %v877 = vunpack.c.l.b16 %v536
        %v878 = vunpack.c.l.b16 %v537
        %v879 = vunpack.c.l.b16 %v538
        %v880 = vunpack.c.l.b16 %v539
        %v881 = vunpack.c.l.b16 %v540
        %v882 = vunpack.c.l.b16 %v541
        %v883 = vunpack.c.l.b16 %v542
        %v884 = vunpack.c.l.b16 %v543
        %v885 = vunpack.c.l.b16 %v544
        %v886 = vunpack.c.l.b16 %v545
        %v887 = vunpack.c.l.b16 %v546
        %v888 = vunpack.c.l.b16 %v547
        %v889 = vunpack.c.l.b16 %v548
        %v890 = vunpack.c.l.b16 %v549
        %v891 = vunpack.c.l.b16 %v550
        %v892 = vunpack.c.l.b16 %v551
        %v893 = vunpack.c.l.b16 %v552
        %v894 = vunpack.c.l.b16 %v553
        %v895 = vunpack.c.l.b16 %v554
        %v896 = vunpack.c.l.b16 %v555
        %v897 = vunpack.c.l.b16 %v556
        %v898 = vunpack.c.l.b16 %v557
        %v899 = vunpack.c.l.b16 %v558
        %v900 = vunpack.c.l.b16 %v559
        %v901 = vunpack.c.l.b16 %v560
        %v902 = vpack.c.b16 %v873, %v872
        %v903 = vpack.c.b16 %v874, %v874
        %v904 = vpack.c.b16 %v876, %v875
        %v905 = vpack.c.b16 %v877, %v877
        %v906 = vpack.c.b16 %v879, %v878
        %v907 = vpack.c.b16 %v880, %v880
        %v908 = vpack.c.b16 %v882, %v881
        %v909 = vpack.c.b16 %v883, %v883
        %v910 = vpack.c.b16 %v885, %v884
        %v911 = vpack.c.b16 %v886, %v886
        %v912 = vpack.c.b16 %v888, %v887
        %v913 = vpack.c.b16 %v889, %v889
        %v914 = vpack.c.b16 %v891, %v890
        %v915 = vpack.c.b16 %v892, %v892
        %v916 = vpack.c.b16 %v894, %v893
        %v917 = vpack.c.b16 %v895, %v895
        %v918 = vpack.c.b16 %v897, %v896
        %v919 = vpack.c.b16 %v898, %v898
        %v920 = vpack.c.b16 %v900, %v899
        %v921 = vpack.c.b16 %v901, %v901
        %v922 = vpack.c.b16 %v874, %v873
        %v923 = vpack.c.b16 %v877, %v876
        %v924 = vpack.c.b16 %v880, %v879
        %v925 = vpack.c.b16 %v883, %v882
        %v926 = vpack.c.b16 %v886, %v885
        %v927 = vpack.c.b16 %v889, %v888
        %v928 = vpack.c.b16 %v892, %v891
        %v929 = vpack.c.b16 %v895, %v894
        %v930 = vpack.c.b16 %v898, %v897
        %v931 = vpack.c.b16 %v901, %v900
        %v933 = vshrl.u32 %v922, 16
        %v935 = vrot.slane %v933, 4
        %v936 = vshll.u32 %v922, 16
        %v938 = vrot.slane %v936, 5
        %v939 = vor.u32 %v935, %v938
        %v941 = vshrl.u32 %v923, 16
        %v943 = vrot.slane %v941, 4
        %v944 = vshll.u32 %v923, 16
        %v946 = vrot.slane %v944, 5
        %v947 = vor.u32 %v943, %v946
        %v949 = vshrl.u32 %v924, 16
        %v951 = vrot.slane %v949, 4
        %v952 = vshll.u32 %v924, 16
        %v954 = vrot.slane %v952, 5
        %v955 = vor.u32 %v951, %v954
        %v957 = vshrl.u32 %v925, 16
        %v959 = vrot.slane %v957, 4
        %v960 = vshll.u32 %v925, 16
        %v962 = vrot.slane %v960, 5
        %v963 = vor.u32 %v959, %v962
        %v965 = vshrl.u32 %v926, 16
        %v967 = vrot.slane %v965, 4
        %v968 = vshll.u32 %v926, 16
        %v970 = vrot.slane %v968, 5
        %v971 = vor.u32 %v967, %v970
        %v973 = vshrl.u32 %v927, 16
        %v975 = vrot.slane %v973, 4
        %v976 = vshll.u32 %v927, 16
        %v978 = vrot.slane %v976, 5
        %v979 = vor.u32 %v975, %v978
        %v981 = vshrl.u32 %v928, 16
        %v983 = vrot.slane %v981, 4
        %v984 = vshll.u32 %v928, 16
        %v986 = vrot.slane %v984, 5
        %v987 = vor.u32 %v983, %v986
        %v989 = vshrl.u32 %v929, 16
        %v991 = vrot.slane %v989, 4
        %v992 = vshll.u32 %v929, 16
        %v994 = vrot.slane %v992, 5
        %v995 = vor.u32 %v991, %v994
        %v997 = vshrl.u32 %v930, 16
        %v999 = vrot.slane %v997, 4
        %v1000 = vshll.u32 %v930, 16
        %v1002 = vrot.slane %v1000, 5
        %v1003 = vor.u32 %v999, %v1002
        %v1005 = vshrl.u32 %v931, 16
        %v1007 = vrot.slane %v1005, 4
        %v1008 = vshll.u32 %v931, 16
        %v1010 = vrot.slane %v1008, 5
        %v1011 = vor.u32 %v1007, %v1010
        %v1022 = vunpack.c.l.b16 %v561
        %v1023 = vunpack.c.l.b16 %v562
        %v1024 = vunpack.c.l.b16 %v563
        %v1025 = vunpack.c.l.b16 %v564
        %v1026 = vunpack.c.l.b16 %v565
        %v1027 = vunpack.c.l.b16 %v566
        %v1028 = vunpack.c.l.b16 %v567
        %v1029 = vunpack.c.l.b16 %v568
        %v1030 = vunpack.c.l.b16 %v569
        %v1031 = vunpack.c.l.b16 %v570
        %v1032 = vpack.c.b16 %v1022, %v1022
        %v1033 = vpack.c.b16 %v1023, %v1023
        %v1034 = vpack.c.b16 %v1024, %v1024
        %v1035 = vpack.c.b16 %v1025, %v1025
        %v1036 = vpack.c.b16 %v1026, %v1026
        %v1037 = vpack.c.b16 %v1027, %v1027
        %v1038 = vpack.c.b16 %v1028, %v1028
        %v1039 = vpack.c.b16 %v1029, %v1029
        %v1040 = vpack.c.b16 %v1030, %v1030
        %v1041 = vpack.c.b16 %v1031, %v1031
        %v1042 = vrot.slane %v922, 5
        %v1043 = vrot.slane %v1032, 5
        %v1044 = vsel %vm811, %v1042, %v1043
        %v1045 = vrot.slane %v923, 5
        %v1046 = vrot.slane %v1033, 5
        %v1047 = vsel %vm811, %v1045, %v1046
        %v1048 = vrot.slane %v924, 5
        %v1049 = vrot.slane %v1034, 5
        %v1050 = vsel %vm811, %v1048, %v1049
        %v1051 = vrot.slane %v925, 5
        %v1052 = vrot.slane %v1035, 5
        %v1053 = vsel %vm811, %v1051, %v1052
        %v1054 = vrot.slane %v926, 5
        %v1055 = vrot.slane %v1036, 5
        %v1056 = vsel %vm811, %v1054, %v1055
        %v1057 = vrot.slane %v927, 5
        %v1058 = vrot.slane %v1037, 5
        %v1059 = vsel %vm811, %v1057, %v1058
        %v1060 = vrot.slane %v928, 5
        %v1061 = vrot.slane %v1038, 5
        %v1062 = vsel %vm811, %v1060, %v1061
        %v1063 = vrot.slane %v929, 5
        %v1064 = vrot.slane %v1039, 5
        %v1065 = vsel %vm811, %v1063, %v1064
        %v1066 = vrot.slane %v930, 5
        %v1067 = vrot.slane %v1040, 5
        %v1068 = vsel %vm811, %v1066, %v1067
        %v1069 = vrot.slane %v931, 5
        %v1070 = vrot.slane %v1041, 5
        %v1071 = vsel %vm811, %v1069, %v1070
        %v1102 = vunpack.c.l.b16 %v571
        %v1103 = vunpack.c.l.b16 %v572
        %v1104 = vunpack.c.l.b16 %v573
        %v1105 = vunpack.c.l.b16 %v574
        %v1106 = vunpack.c.l.b16 %v575
        %v1107 = vunpack.c.l.b16 %v576
        %v1108 = vunpack.c.l.b16 %v577
        %v1109 = vunpack.c.l.b16 %v578
        %v1110 = vunpack.c.l.b16 %v579
        %v1111 = vunpack.c.l.b16 %v580
        %v1112 = vunpack.c.l.b16 %v581
        %v1113 = vunpack.c.l.b16 %v582
        %v1114 = vunpack.c.l.b16 %v583
        %v1115 = vunpack.c.l.b16 %v584
        %v1116 = vunpack.c.l.b16 %v585
        %v1117 = vunpack.c.l.b16 %v586
        %v1118 = vunpack.c.l.b16 %v587
        %v1119 = vunpack.c.l.b16 %v588
        %v1120 = vunpack.c.l.b16 %v589
        %v1121 = vunpack.c.l.b16 %v590
        %v1122 = vunpack.c.l.b16 %v591
        %v1123 = vunpack.c.l.b16 %v592
        %v1124 = vunpack.c.l.b16 %v593
        %v1125 = vunpack.c.l.b16 %v594
        %v1126 = vunpack.c.l.b16 %v595
        %v1127 = vunpack.c.l.b16 %v596
        %v1128 = vunpack.c.l.b16 %v597
        %v1129 = vunpack.c.l.b16 %v598
        %v1130 = vunpack.c.l.b16 %v599
        %v1131 = vunpack.c.l.b16 %v600
        %v1132 = vpack.c.b16 %v1103, %v1102
        %v1133 = vpack.c.b16 %v1104, %v1104
        %v1134 = vpack.c.b16 %v1106, %v1105
        %v1135 = vpack.c.b16 %v1107, %v1107
        %v1136 = vpack.c.b16 %v1109, %v1108
        %v1137 = vpack.c.b16 %v1110, %v1110
        %v1138 = vpack.c.b16 %v1112, %v1111
        %v1139 = vpack.c.b16 %v1113, %v1113
        %v1140 = vpack.c.b16 %v1115, %v1114
        %v1141 = vpack.c.b16 %v1116, %v1116
        %v1142 = vpack.c.b16 %v1118, %v1117
        %v1143 = vpack.c.b16 %v1119, %v1119
        %v1144 = vpack.c.b16 %v1121, %v1120
        %v1145 = vpack.c.b16 %v1122, %v1122
        %v1146 = vpack.c.b16 %v1124, %v1123
        %v1147 = vpack.c.b16 %v1125, %v1125
        %v1148 = vpack.c.b16 %v1127, %v1126
        %v1149 = vpack.c.b16 %v1128, %v1128
        %v1150 = vpack.c.b16 %v1130, %v1129
        %v1151 = vpack.c.b16 %v1131, %v1131
        %v1152 = vpack.c.b16 %v1104, %v1103
        %v1153 = vpack.c.b16 %v1107, %v1106
        %v1154 = vpack.c.b16 %v1110, %v1109
        %v1155 = vpack.c.b16 %v1113, %v1112
        %v1156 = vpack.c.b16 %v1116, %v1115
        %v1157 = vpack.c.b16 %v1119, %v1118
        %v1158 = vpack.c.b16 %v1122, %v1121
        %v1159 = vpack.c.b16 %v1125, %v1124
        %v1160 = vpack.c.b16 %v1128, %v1127
        %v1161 = vpack.c.b16 %v1131, %v1130
        %v1163 = vshrl.u32 %v1152, 16
        %v1165 = vrot.slane %v1163, 4
        %v1166 = vshll.u32 %v1152, 16
        %v1168 = vrot.slane %v1166, 5
        %v1169 = vor.u32 %v1165, %v1168
        %v1171 = vshrl.u32 %v1153, 16
        %v1173 = vrot.slane %v1171, 4
        %v1174 = vshll.u32 %v1153, 16
        %v1176 = vrot.slane %v1174, 5
        %v1177 = vor.u32 %v1173, %v1176
        %v1179 = vshrl.u32 %v1154, 16
        %v1181 = vrot.slane %v1179, 4
        %v1182 = vshll.u32 %v1154, 16
        %v1184 = vrot.slane %v1182, 5
        %v1185 = vor.u32 %v1181, %v1184
        %v1187 = vshrl.u32 %v1155, 16
        %v1189 = vrot.slane %v1187, 4
        %v1190 = vshll.u32 %v1155, 16
        %v1192 = vrot.slane %v1190, 5
        %v1193 = vor.u32 %v1189, %v1192
        %v1195 = vshrl.u32 %v1156, 16
        %v1197 = vrot.slane %v1195, 4
        %v1198 = vshll.u32 %v1156, 16
        %v1200 = vrot.slane %v1198, 5
        %v1201 = vor.u32 %v1197, %v1200
        %v1203 = vshrl.u32 %v1157, 16
        %v1205 = vrot.slane %v1203, 4
        %v1206 = vshll.u32 %v1157, 16
        %v1208 = vrot.slane %v1206, 5
        %v1209 = vor.u32 %v1205, %v1208
        %v1211 = vshrl.u32 %v1158, 16
        %v1213 = vrot.slane %v1211, 4
        %v1214 = vshll.u32 %v1158, 16
        %v1216 = vrot.slane %v1214, 5
        %v1217 = vor.u32 %v1213, %v1216
        %v1219 = vshrl.u32 %v1159, 16
        %v1221 = vrot.slane %v1219, 4
        %v1222 = vshll.u32 %v1159, 16
        %v1224 = vrot.slane %v1222, 5
        %v1225 = vor.u32 %v1221, %v1224
        %v1227 = vshrl.u32 %v1160, 16
        %v1229 = vrot.slane %v1227, 4
        %v1230 = vshll.u32 %v1160, 16
        %v1232 = vrot.slane %v1230, 5
        %v1233 = vor.u32 %v1229, %v1232
        %v1235 = vshrl.u32 %v1161, 16
        %v1237 = vrot.slane %v1235, 4
        %v1238 = vshll.u32 %v1161, 16
        %v1240 = vrot.slane %v1238, 5
        %v1241 = vor.u32 %v1237, %v1240
        %v1252 = vunpack.c.l.b16 %v601
        %v1253 = vunpack.c.l.b16 %v602
        %v1254 = vunpack.c.l.b16 %v603
        %v1255 = vunpack.c.l.b16 %v604
        %v1256 = vunpack.c.l.b16 %v605
        %v1257 = vunpack.c.l.b16 %v606
        %v1258 = vunpack.c.l.b16 %v607
        %v1259 = vunpack.c.l.b16 %v608
        %v1260 = vunpack.c.l.b16 %v609
        %v1261 = vunpack.c.l.b16 %v610
        %v1262 = vpack.c.b16 %v1252, %v1252
        %v1263 = vpack.c.b16 %v1253, %v1253
        %v1264 = vpack.c.b16 %v1254, %v1254
        %v1265 = vpack.c.b16 %v1255, %v1255
        %v1266 = vpack.c.b16 %v1256, %v1256
        %v1267 = vpack.c.b16 %v1257, %v1257
        %v1268 = vpack.c.b16 %v1258, %v1258
        %v1269 = vpack.c.b16 %v1259, %v1259
        %v1270 = vpack.c.b16 %v1260, %v1260
        %v1271 = vpack.c.b16 %v1261, %v1261
        %v1272 = vrot.slane %v1152, 5
        %v1273 = vrot.slane %v1262, 5
        %v1274 = vsel %vm811, %v1272, %v1273
        %v1275 = vrot.slane %v1153, 5
        %v1276 = vrot.slane %v1263, 5
        %v1277 = vsel %vm811, %v1275, %v1276
        %v1278 = vrot.slane %v1154, 5
        %v1279 = vrot.slane %v1264, 5
        %v1280 = vsel %vm811, %v1278, %v1279
        %v1281 = vrot.slane %v1155, 5
        %v1282 = vrot.slane %v1265, 5
        %v1283 = vsel %vm811, %v1281, %v1282
        %v1284 = vrot.slane %v1156, 5
        %v1285 = vrot.slane %v1266, 5
        %v1286 = vsel %vm811, %v1284, %v1285
        %v1287 = vrot.slane %v1157, 5
        %v1288 = vrot.slane %v1267, 5
        %v1289 = vsel %vm811, %v1287, %v1288
        %v1290 = vrot.slane %v1158, 5
        %v1291 = vrot.slane %v1268, 5
        %v1292 = vsel %vm811, %v1290, %v1291
        %v1293 = vrot.slane %v1159, 5
        %v1294 = vrot.slane %v1269, 5
        %v1295 = vsel %vm811, %v1293, %v1294
        %v1296 = vrot.slane %v1160, 5
        %v1297 = vrot.slane %v1270, 5
        %v1298 = vsel %vm811, %v1296, %v1297
        %v1299 = vrot.slane %v1161, 5
        %v1300 = vrot.slane %v1271, 5
        %v1301 = vsel %vm811, %v1299, %v1300
        %vm1302 = vsmask.f32 4352
        %v1304 = vshrl.u32 %v671, 16
        %v1306 = vrot.slane %v1304, 3
        %v1307 = vshll.u32 %v671, 16
        %v1309 = vrot.slane %v1307, 4
        %v1310 = vor.u32 %v1306, %v1309
        %v1312 = vshrl.u32 %v672, 16
        %v1314 = vrot.slane %v1312, 3
        %v1315 = vshll.u32 %v672, 16
        %v1317 = vrot.slane %v1315, 4
        %v1318 = vor.u32 %v1314, %v1317
        %v1319 = vsel %vm1302, %v1310, %v1318
        %v1321 = vshrl.u32 %v708, 16
        %v1323 = vrot.slane %v1321, 3
        %v1324 = vshll.u32 %v708, 16
        %v1326 = vrot.slane %v1324, 4
        %v1327 = vor.u32 %v1323, %v1326
        %v1328 = vsel %vm1302, %v1327, %v1327
        %v1330 = vshrl.u32 %v812, 16
        %v1332 = vrot.slane %v1330, 3
        %v1333 = vshll.u32 %v812, 16
        %v1335 = vrot.slane %v1333, 4
        %v1336 = vor.u32 %v1332, %v1335
        %v1338 = vshrl.u32 %v814, 16
        %v1340 = vrot.slane %v1338, 3
        %v1341 = vshll.u32 %v814, 16
        %v1343 = vrot.slane %v1341, 4
        %v1344 = vor.u32 %v1340, %v1343
        %v1345 = vsel %vm1302, %v1336, %v1344
        %v1347 = vshrl.u32 %v902, 16
        %v1349 = vrot.slane %v1347, 3
        %v1350 = vshll.u32 %v902, 16
        %v1352 = vrot.slane %v1350, 4
        %v1353 = vor.u32 %v1349, %v1352
        %v1355 = vshrl.u32 %v903, 16
        %v1357 = vrot.slane %v1355, 3
        %v1358 = vshll.u32 %v903, 16
        %v1360 = vrot.slane %v1358, 4
        %v1361 = vor.u32 %v1357, %v1360
        %v1362 = vsel %vm1302, %v1353, %v1361
        %v1364 = vshrl.u32 %v939, 16
        %v1366 = vrot.slane %v1364, 3
        %v1367 = vshll.u32 %v939, 16
        %v1369 = vrot.slane %v1367, 4
        %v1370 = vor.u32 %v1366, %v1369
        %v1371 = vsel %vm1302, %v1370, %v1370
        %v1373 = vshrl.u32 %v1042, 16
        %v1375 = vrot.slane %v1373, 3
        %v1376 = vshll.u32 %v1042, 16
        %v1378 = vrot.slane %v1376, 4
        %v1379 = vor.u32 %v1375, %v1378
        %v1381 = vshrl.u32 %v1044, 16
        %v1383 = vrot.slane %v1381, 3
        %v1384 = vshll.u32 %v1044, 16
        %v1386 = vrot.slane %v1384, 4
        %v1387 = vor.u32 %v1383, %v1386
        %v1388 = vsel %vm1302, %v1379, %v1387
        %v1390 = vshrl.u32 %v1132, 16
        %v1392 = vrot.slane %v1390, 3
        %v1393 = vshll.u32 %v1132, 16
        %v1395 = vrot.slane %v1393, 4
        %v1396 = vor.u32 %v1392, %v1395
        %v1398 = vshrl.u32 %v1133, 16
        %v1400 = vrot.slane %v1398, 3
        %v1401 = vshll.u32 %v1133, 16
        %v1403 = vrot.slane %v1401, 4
        %v1404 = vor.u32 %v1400, %v1403
        %v1405 = vsel %vm1302, %v1396, %v1404
        %v1407 = vshrl.u32 %v1169, 16
        %v1409 = vrot.slane %v1407, 3
        %v1410 = vshll.u32 %v1169, 16
        %v1412 = vrot.slane %v1410, 4
        %v1413 = vor.u32 %v1409, %v1412
        %v1414 = vsel %vm1302, %v1413, %v1413
        %v1416 = vshrl.u32 %v1272, 16
        %v1418 = vrot.slane %v1416, 3
        %v1419 = vshll.u32 %v1272, 16
        %v1421 = vrot.slane %v1419, 4
        %v1422 = vor.u32 %v1418, %v1421
        %v1424 = vshrl.u32 %v1274, 16
        %v1426 = vrot.slane %v1424, 3
        %v1427 = vshll.u32 %v1274, 16
        %v1429 = vrot.slane %v1427, 4
        %v1430 = vor.u32 %v1426, %v1429
        %v1431 = vsel %vm1302, %v1422, %v1430
        %v1433 = vshrl.u32 %v673, 16
        %v1435 = vrot.slane %v1433, 3
        %v1436 = vshll.u32 %v673, 16
        %v1438 = vrot.slane %v1436, 4
        %v1439 = vor.u32 %v1435, %v1438
        %v1441 = vshrl.u32 %v674, 16
        %v1443 = vrot.slane %v1441, 3
        %v1444 = vshll.u32 %v674, 16
        %v1446 = vrot.slane %v1444, 4
        %v1447 = vor.u32 %v1443, %v1446
        %v1448 = vsel %vm1302, %v1439, %v1447
        %v1450 = vshrl.u32 %v716, 16
        %v1452 = vrot.slane %v1450, 3
        %v1453 = vshll.u32 %v716, 16
        %v1455 = vrot.slane %v1453, 4
        %v1456 = vor.u32 %v1452, %v1455
        %v1457 = vsel %vm1302, %v1456, %v1456
        %v1459 = vshrl.u32 %v815, 16
        %v1461 = vrot.slane %v1459, 3
        %v1462 = vshll.u32 %v815, 16
        %v1464 = vrot.slane %v1462, 4
        %v1465 = vor.u32 %v1461, %v1464
        %v1467 = vshrl.u32 %v817, 16
        %v1469 = vrot.slane %v1467, 3
        %v1470 = vshll.u32 %v817, 16
        %v1472 = vrot.slane %v1470, 4
        %v1473 = vor.u32 %v1469, %v1472
        %v1474 = vsel %vm1302, %v1465, %v1473
        %v1476 = vshrl.u32 %v904, 16
        %v1478 = vrot.slane %v1476, 3
        %v1479 = vshll.u32 %v904, 16
        %v1481 = vrot.slane %v1479, 4
        %v1482 = vor.u32 %v1478, %v1481
        %v1484 = vshrl.u32 %v905, 16
        %v1486 = vrot.slane %v1484, 3
        %v1487 = vshll.u32 %v905, 16
        %v1489 = vrot.slane %v1487, 4
        %v1490 = vor.u32 %v1486, %v1489
        %v1491 = vsel %vm1302, %v1482, %v1490
        %v1493 = vshrl.u32 %v947, 16
        %v1495 = vrot.slane %v1493, 3
        %v1496 = vshll.u32 %v947, 16
        %v1498 = vrot.slane %v1496, 4
        %v1499 = vor.u32 %v1495, %v1498
        %v1500 = vsel %vm1302, %v1499, %v1499
        %v1502 = vshrl.u32 %v1045, 16
        %v1504 = vrot.slane %v1502, 3
        %v1505 = vshll.u32 %v1045, 16
        %v1507 = vrot.slane %v1505, 4
        %v1508 = vor.u32 %v1504, %v1507
        %v1510 = vshrl.u32 %v1047, 16
        %v1512 = vrot.slane %v1510, 3
        %v1513 = vshll.u32 %v1047, 16
        %v1515 = vrot.slane %v1513, 4
        %v1516 = vor.u32 %v1512, %v1515
        %v1517 = vsel %vm1302, %v1508, %v1516
        %v1519 = vshrl.u32 %v1134, 16
        %v1521 = vrot.slane %v1519, 3
        %v1522 = vshll.u32 %v1134, 16
        %v1524 = vrot.slane %v1522, 4
        %v1525 = vor.u32 %v1521, %v1524
        %v1527 = vshrl.u32 %v1135, 16
        %v1529 = vrot.slane %v1527, 3
        %v1530 = vshll.u32 %v1135, 16
        %v1532 = vrot.slane %v1530, 4
        %v1533 = vor.u32 %v1529, %v1532
        %v1534 = vsel %vm1302, %v1525, %v1533
        %v1536 = vshrl.u32 %v1177, 16
        %v1538 = vrot.slane %v1536, 3
        %v1539 = vshll.u32 %v1177, 16
        %v1541 = vrot.slane %v1539, 4
        %v1542 = vor.u32 %v1538, %v1541
        %v1543 = vsel %vm1302, %v1542, %v1542
        %v1545 = vshrl.u32 %v1275, 16
        %v1547 = vrot.slane %v1545, 3
        %v1548 = vshll.u32 %v1275, 16
        %v1550 = vrot.slane %v1548, 4
        %v1551 = vor.u32 %v1547, %v1550
        %v1553 = vshrl.u32 %v1277, 16
        %v1555 = vrot.slane %v1553, 3
        %v1556 = vshll.u32 %v1277, 16
        %v1558 = vrot.slane %v1556, 4
        %v1559 = vor.u32 %v1555, %v1558
        %v1560 = vsel %vm1302, %v1551, %v1559
        %v1562 = vshrl.u32 %v675, 16
        %v1564 = vrot.slane %v1562, 3
        %v1565 = vshll.u32 %v675, 16
        %v1567 = vrot.slane %v1565, 4
        %v1568 = vor.u32 %v1564, %v1567
        %v1570 = vshrl.u32 %v676, 16
        %v1572 = vrot.slane %v1570, 3
        %v1573 = vshll.u32 %v676, 16
        %v1575 = vrot.slane %v1573, 4
        %v1576 = vor.u32 %v1572, %v1575
        %v1577 = vsel %vm1302, %v1568, %v1576
        %v1579 = vshrl.u32 %v724, 16
        %v1581 = vrot.slane %v1579, 3
        %v1582 = vshll.u32 %v724, 16
        %v1584 = vrot.slane %v1582, 4
        %v1585 = vor.u32 %v1581, %v1584
        %v1586 = vsel %vm1302, %v1585, %v1585
        %v1588 = vshrl.u32 %v818, 16
        %v1590 = vrot.slane %v1588, 3
        %v1591 = vshll.u32 %v818, 16
        %v1593 = vrot.slane %v1591, 4
        %v1594 = vor.u32 %v1590, %v1593
        %v1596 = vshrl.u32 %v820, 16
        %v1598 = vrot.slane %v1596, 3
        %v1599 = vshll.u32 %v820, 16
        %v1601 = vrot.slane %v1599, 4
        %v1602 = vor.u32 %v1598, %v1601
        %v1603 = vsel %vm1302, %v1594, %v1602
        %v1605 = vshrl.u32 %v906, 16
        %v1607 = vrot.slane %v1605, 3
        %v1608 = vshll.u32 %v906, 16
        %v1610 = vrot.slane %v1608, 4
        %v1611 = vor.u32 %v1607, %v1610
        %v1613 = vshrl.u32 %v907, 16
        %v1615 = vrot.slane %v1613, 3
        %v1616 = vshll.u32 %v907, 16
        %v1618 = vrot.slane %v1616, 4
        %v1619 = vor.u32 %v1615, %v1618
        %v1620 = vsel %vm1302, %v1611, %v1619
        %v1622 = vshrl.u32 %v955, 16
        %v1624 = vrot.slane %v1622, 3
        %v1625 = vshll.u32 %v955, 16
        %v1627 = vrot.slane %v1625, 4
        %v1628 = vor.u32 %v1624, %v1627
        %v1629 = vsel %vm1302, %v1628, %v1628
        %v1631 = vshrl.u32 %v1048, 16
        %v1633 = vrot.slane %v1631, 3
        %v1634 = vshll.u32 %v1048, 16
        %v1636 = vrot.slane %v1634, 4
        %v1637 = vor.u32 %v1633, %v1636
        %v1639 = vshrl.u32 %v1050, 16
        %v1641 = vrot.slane %v1639, 3
        %v1642 = vshll.u32 %v1050, 16
        %v1644 = vrot.slane %v1642, 4
        %v1645 = vor.u32 %v1641, %v1644
        %v1646 = vsel %vm1302, %v1637, %v1645
        %v1648 = vshrl.u32 %v1136, 16
        %v1650 = vrot.slane %v1648, 3
        %v1651 = vshll.u32 %v1136, 16
        %v1653 = vrot.slane %v1651, 4
        %v1654 = vor.u32 %v1650, %v1653
        %v1656 = vshrl.u32 %v1137, 16
        %v1658 = vrot.slane %v1656, 3
        %v1659 = vshll.u32 %v1137, 16
        %v1661 = vrot.slane %v1659, 4
        %v1662 = vor.u32 %v1658, %v1661
        %v1663 = vsel %vm1302, %v1654, %v1662
        %v1665 = vshrl.u32 %v1185, 16
        %v1667 = vrot.slane %v1665, 3
        %v1668 = vshll.u32 %v1185, 16
        %v1670 = vrot.slane %v1668, 4
        %v1671 = vor.u32 %v1667, %v1670
        %v1672 = vsel %vm1302, %v1671, %v1671
        %v1674 = vshrl.u32 %v1278, 16
        %v1676 = vrot.slane %v1674, 3
        %v1677 = vshll.u32 %v1278, 16
        %v1679 = vrot.slane %v1677, 4
        %v1680 = vor.u32 %v1676, %v1679
        %v1682 = vshrl.u32 %v1280, 16
        %v1684 = vrot.slane %v1682, 3
        %v1685 = vshll.u32 %v1280, 16
        %v1687 = vrot.slane %v1685, 4
        %v1688 = vor.u32 %v1684, %v1687
        %v1689 = vsel %vm1302, %v1680, %v1688
        %v1691 = vshrl.u32 %v677, 16
        %v1693 = vrot.slane %v1691, 3
        %v1694 = vshll.u32 %v677, 16
        %v1696 = vrot.slane %v1694, 4
        %v1697 = vor.u32 %v1693, %v1696
        %v1699 = vshrl.u32 %v678, 16
        %v1701 = vrot.slane %v1699, 3
        %v1702 = vshll.u32 %v678, 16
        %v1704 = vrot.slane %v1702, 4
        %v1705 = vor.u32 %v1701, %v1704
        %v1706 = vsel %vm1302, %v1697, %v1705
        %v1708 = vshrl.u32 %v732, 16
        %v1710 = vrot.slane %v1708, 3
        %v1711 = vshll.u32 %v732, 16
        %v1713 = vrot.slane %v1711, 4
        %v1714 = vor.u32 %v1710, %v1713
        %v1715 = vsel %vm1302, %v1714, %v1714
        %v1717 = vshrl.u32 %v821, 16
        %v1719 = vrot.slane %v1717, 3
        %v1720 = vshll.u32 %v821, 16
        %v1722 = vrot.slane %v1720, 4
        %v1723 = vor.u32 %v1719, %v1722
        %v1725 = vshrl.u32 %v823, 16
        %v1727 = vrot.slane %v1725, 3
        %v1728 = vshll.u32 %v823, 16
        %v1730 = vrot.slane %v1728, 4
        %v1731 = vor.u32 %v1727, %v1730
        %v1732 = vsel %vm1302, %v1723, %v1731
        %v1734 = vshrl.u32 %v908, 16
        %v1736 = vrot.slane %v1734, 3
        %v1737 = vshll.u32 %v908, 16
        %v1739 = vrot.slane %v1737, 4
        %v1740 = vor.u32 %v1736, %v1739
        %v1742 = vshrl.u32 %v909, 16
        %v1744 = vrot.slane %v1742, 3
        %v1745 = vshll.u32 %v909, 16
        %v1747 = vrot.slane %v1745, 4
        %v1748 = vor.u32 %v1744, %v1747
        %v1749 = vsel %vm1302, %v1740, %v1748
        %v1751 = vshrl.u32 %v963, 16
        %v1753 = vrot.slane %v1751, 3
        %v1754 = vshll.u32 %v963, 16
        %v1756 = vrot.slane %v1754, 4
        %v1757 = vor.u32 %v1753, %v1756
        %v1758 = vsel %vm1302, %v1757, %v1757
        %v1760 = vshrl.u32 %v1051, 16
        %v1762 = vrot.slane %v1760, 3
        %v1763 = vshll.u32 %v1051, 16
        %v1765 = vrot.slane %v1763, 4
        %v1766 = vor.u32 %v1762, %v1765
        %v1768 = vshrl.u32 %v1053, 16
        %v1770 = vrot.slane %v1768, 3
        %v1771 = vshll.u32 %v1053, 16
        %v1773 = vrot.slane %v1771, 4
        %v1774 = vor.u32 %v1770, %v1773
        %v1775 = vsel %vm1302, %v1766, %v1774
        %v1777 = vshrl.u32 %v1138, 16
        %v1779 = vrot.slane %v1777, 3
        %v1780 = vshll.u32 %v1138, 16
        %v1782 = vrot.slane %v1780, 4
        %v1783 = vor.u32 %v1779, %v1782
        %v1785 = vshrl.u32 %v1139, 16
        %v1787 = vrot.slane %v1785, 3
        %v1788 = vshll.u32 %v1139, 16
        %v1790 = vrot.slane %v1788, 4
        %v1791 = vor.u32 %v1787, %v1790
        %v1792 = vsel %vm1302, %v1783, %v1791
        %v1794 = vshrl.u32 %v1193, 16
        %v1796 = vrot.slane %v1794, 3
        %v1797 = vshll.u32 %v1193, 16
        %v1799 = vrot.slane %v1797, 4
        %v1800 = vor.u32 %v1796, %v1799
        %v1801 = vsel %vm1302, %v1800, %v1800
        %v1803 = vshrl.u32 %v1281, 16
        %v1805 = vrot.slane %v1803, 3
        %v1806 = vshll.u32 %v1281, 16
        %v1808 = vrot.slane %v1806, 4
        %v1809 = vor.u32 %v1805, %v1808
        %v1811 = vshrl.u32 %v1283, 16
        %v1813 = vrot.slane %v1811, 3
        %v1814 = vshll.u32 %v1283, 16
        %v1816 = vrot.slane %v1814, 4
        %v1817 = vor.u32 %v1813, %v1816
        %v1818 = vsel %vm1302, %v1809, %v1817
        %v1820 = vshrl.u32 %v679, 16
        %v1822 = vrot.slane %v1820, 3
        %v1823 = vshll.u32 %v679, 16
        %v1825 = vrot.slane %v1823, 4
        %v1826 = vor.u32 %v1822, %v1825
        %v1828 = vshrl.u32 %v680, 16
        %v1830 = vrot.slane %v1828, 3
        %v1831 = vshll.u32 %v680, 16
        %v1833 = vrot.slane %v1831, 4
        %v1834 = vor.u32 %v1830, %v1833
        %v1835 = vsel %vm1302, %v1826, %v1834
        %v1837 = vshrl.u32 %v740, 16
        %v1839 = vrot.slane %v1837, 3
        %v1840 = vshll.u32 %v740, 16
        %v1842 = vrot.slane %v1840, 4
        %v1843 = vor.u32 %v1839, %v1842
        %v1844 = vsel %vm1302, %v1843, %v1843
        %v1846 = vshrl.u32 %v824, 16
        %v1848 = vrot.slane %v1846, 3
        %v1849 = vshll.u32 %v824, 16
        %v1851 = vrot.slane %v1849, 4
        %v1852 = vor.u32 %v1848, %v1851
        %v1854 = vshrl.u32 %v826, 16
        %v1856 = vrot.slane %v1854, 3
        %v1857 = vshll.u32 %v826, 16
        %v1859 = vrot.slane %v1857, 4
        %v1860 = vor.u32 %v1856, %v1859
        %v1861 = vsel %vm1302, %v1852, %v1860
        %v1863 = vshrl.u32 %v910, 16
        %v1865 = vrot.slane %v1863, 3
        %v1866 = vshll.u32 %v910, 16
        %v1868 = vrot.slane %v1866, 4
        %v1869 = vor.u32 %v1865, %v1868
        %v1871 = vshrl.u32 %v911, 16
        %v1873 = vrot.slane %v1871, 3
        %v1874 = vshll.u32 %v911, 16
        %v1876 = vrot.slane %v1874, 4
        %v1877 = vor.u32 %v1873, %v1876
        %v1878 = vsel %vm1302, %v1869, %v1877
        %v1880 = vshrl.u32 %v971, 16
        %v1882 = vrot.slane %v1880, 3
        %v1883 = vshll.u32 %v971, 16
        %v1885 = vrot.slane %v1883, 4
        %v1886 = vor.u32 %v1882, %v1885
        %v1887 = vsel %vm1302, %v1886, %v1886
        %v1889 = vshrl.u32 %v1054, 16
        %v1891 = vrot.slane %v1889, 3
        %v1892 = vshll.u32 %v1054, 16
        %v1894 = vrot.slane %v1892, 4
        %v1895 = vor.u32 %v1891, %v1894
        %v1897 = vshrl.u32 %v1056, 16
        %v1899 = vrot.slane %v1897, 3
        %v1900 = vshll.u32 %v1056, 16
        %v1902 = vrot.slane %v1900, 4
        %v1903 = vor.u32 %v1899, %v1902
        %v1904 = vsel %vm1302, %v1895, %v1903
        %v1906 = vshrl.u32 %v1140, 16
        %v1908 = vrot.slane %v1906, 3
        %v1909 = vshll.u32 %v1140, 16
        %v1911 = vrot.slane %v1909, 4
        %v1912 = vor.u32 %v1908, %v1911
        %v1914 = vshrl.u32 %v1141, 16
        %v1916 = vrot.slane %v1914, 3
        %v1917 = vshll.u32 %v1141, 16
        %v1919 = vrot.slane %v1917, 4
        %v1920 = vor.u32 %v1916, %v1919
        %v1921 = vsel %vm1302, %v1912, %v1920
        %v1923 = vshrl.u32 %v1201, 16
        %v1925 = vrot.slane %v1923, 3
        %v1926 = vshll.u32 %v1201, 16
        %v1928 = vrot.slane %v1926, 4
        %v1929 = vor.u32 %v1925, %v1928
        %v1930 = vsel %vm1302, %v1929, %v1929
        %v1932 = vshrl.u32 %v1284, 16
        %v1934 = vrot.slane %v1932, 3
        %v1935 = vshll.u32 %v1284, 16
        %v1937 = vrot.slane %v1935, 4
        %v1938 = vor.u32 %v1934, %v1937
        %v1940 = vshrl.u32 %v1286, 16
        %v1942 = vrot.slane %v1940, 3
        %v1943 = vshll.u32 %v1286, 16
        %v1945 = vrot.slane %v1943, 4
        %v1946 = vor.u32 %v1942, %v1945
        %v1947 = vsel %vm1302, %v1938, %v1946
        %v1949 = vshrl.u32 %v681, 16
        %v1951 = vrot.slane %v1949, 3
        %v1952 = vshll.u32 %v681, 16
        %v1954 = vrot.slane %v1952, 4
        %v1955 = vor.u32 %v1951, %v1954
        %v1957 = vshrl.u32 %v682, 16
        %v1959 = vrot.slane %v1957, 3
        %v1960 = vshll.u32 %v682, 16
        %v1962 = vrot.slane %v1960, 4
        %v1963 = vor.u32 %v1959, %v1962
        %v1964 = vsel %vm1302, %v1955, %v1963
        %v1966 = vshrl.u32 %v748, 16
        %v1968 = vrot.slane %v1966, 3
        %v1969 = vshll.u32 %v748, 16
        %v1971 = vrot.slane %v1969, 4
        %v1972 = vor.u32 %v1968, %v1971
        %v1973 = vsel %vm1302, %v1972, %v1972
        %v1975 = vshrl.u32 %v827, 16
        %v1977 = vrot.slane %v1975, 3
        %v1978 = vshll.u32 %v827, 16
        %v1980 = vrot.slane %v1978, 4
        %v1981 = vor.u32 %v1977, %v1980
        %v1983 = vshrl.u32 %v829, 16
        %v1985 = vrot.slane %v1983, 3
        %v1986 = vshll.u32 %v829, 16
        %v1988 = vrot.slane %v1986, 4
        %v1989 = vor.u32 %v1985, %v1988
        %v1990 = vsel %vm1302, %v1981, %v1989
        %v1992 = vshrl.u32 %v912, 16
        %v1994 = vrot.slane %v1992, 3
        %v1995 = vshll.u32 %v912, 16
        %v1997 = vrot.slane %v1995, 4
        %v1998 = vor.u32 %v1994, %v1997
        %v2000 = vshrl.u32 %v913, 16
        %v2002 = vrot.slane %v2000, 3
        %v2003 = vshll.u32 %v913, 16
        %v2005 = vrot.slane %v2003, 4
        %v2006 = vor.u32 %v2002, %v2005
        %v2007 = vsel %vm1302, %v1998, %v2006
        %v2009 = vshrl.u32 %v979, 16
        %v2011 = vrot.slane %v2009, 3
        %v2012 = vshll.u32 %v979, 16
        %v2014 = vrot.slane %v2012, 4
        %v2015 = vor.u32 %v2011, %v2014
        %v2016 = vsel %vm1302, %v2015, %v2015
        %v2018 = vshrl.u32 %v1057, 16
        %v2020 = vrot.slane %v2018, 3
        %v2021 = vshll.u32 %v1057, 16
        %v2023 = vrot.slane %v2021, 4
        %v2024 = vor.u32 %v2020, %v2023
        %v2026 = vshrl.u32 %v1059, 16
        %v2028 = vrot.slane %v2026, 3
        %v2029 = vshll.u32 %v1059, 16
        %v2031 = vrot.slane %v2029, 4
        %v2032 = vor.u32 %v2028, %v2031
        %v2033 = vsel %vm1302, %v2024, %v2032
        %v2035 = vshrl.u32 %v1142, 16
        %v2037 = vrot.slane %v2035, 3
        %v2038 = vshll.u32 %v1142, 16
        %v2040 = vrot.slane %v2038, 4
        %v2041 = vor.u32 %v2037, %v2040
        %v2043 = vshrl.u32 %v1143, 16
        %v2045 = vrot.slane %v2043, 3
        %v2046 = vshll.u32 %v1143, 16
        %v2048 = vrot.slane %v2046, 4
        %v2049 = vor.u32 %v2045, %v2048
        %v2050 = vsel %vm1302, %v2041, %v2049
        %v2052 = vshrl.u32 %v1209, 16
        %v2054 = vrot.slane %v2052, 3
        %v2055 = vshll.u32 %v1209, 16
        %v2057 = vrot.slane %v2055, 4
        %v2058 = vor.u32 %v2054, %v2057
        %v2059 = vsel %vm1302, %v2058, %v2058
        %v2061 = vshrl.u32 %v1287, 16
        %v2063 = vrot.slane %v2061, 3
        %v2064 = vshll.u32 %v1287, 16
        %v2066 = vrot.slane %v2064, 4
        %v2067 = vor.u32 %v2063, %v2066
        %v2069 = vshrl.u32 %v1289, 16
        %v2071 = vrot.slane %v2069, 3
        %v2072 = vshll.u32 %v1289, 16
        %v2074 = vrot.slane %v2072, 4
        %v2075 = vor.u32 %v2071, %v2074
        %v2076 = vsel %vm1302, %v2067, %v2075
        %v2078 = vshrl.u32 %v683, 16
        %v2080 = vrot.slane %v2078, 3
        %v2081 = vshll.u32 %v683, 16
        %v2083 = vrot.slane %v2081, 4
        %v2084 = vor.u32 %v2080, %v2083
        %v2086 = vshrl.u32 %v684, 16
        %v2088 = vrot.slane %v2086, 3
        %v2089 = vshll.u32 %v684, 16
        %v2091 = vrot.slane %v2089, 4
        %v2092 = vor.u32 %v2088, %v2091
        %v2093 = vsel %vm1302, %v2084, %v2092
        %v2095 = vshrl.u32 %v756, 16
        %v2097 = vrot.slane %v2095, 3
        %v2098 = vshll.u32 %v756, 16
        %v2100 = vrot.slane %v2098, 4
        %v2101 = vor.u32 %v2097, %v2100
        %v2102 = vsel %vm1302, %v2101, %v2101
        %v2104 = vshrl.u32 %v830, 16
        %v2106 = vrot.slane %v2104, 3
        %v2107 = vshll.u32 %v830, 16
        %v2109 = vrot.slane %v2107, 4
        %v2110 = vor.u32 %v2106, %v2109
        %v2112 = vshrl.u32 %v832, 16
        %v2114 = vrot.slane %v2112, 3
        %v2115 = vshll.u32 %v832, 16
        %v2117 = vrot.slane %v2115, 4
        %v2118 = vor.u32 %v2114, %v2117
        %v2119 = vsel %vm1302, %v2110, %v2118
        %v2121 = vshrl.u32 %v914, 16
        %v2123 = vrot.slane %v2121, 3
        %v2124 = vshll.u32 %v914, 16
        %v2126 = vrot.slane %v2124, 4
        %v2127 = vor.u32 %v2123, %v2126
        %v2129 = vshrl.u32 %v915, 16
        %v2131 = vrot.slane %v2129, 3
        %v2132 = vshll.u32 %v915, 16
        %v2134 = vrot.slane %v2132, 4
        %v2135 = vor.u32 %v2131, %v2134
        %v2136 = vsel %vm1302, %v2127, %v2135
        %v2138 = vshrl.u32 %v987, 16
        %v2140 = vrot.slane %v2138, 3
        %v2141 = vshll.u32 %v987, 16
        %v2143 = vrot.slane %v2141, 4
        %v2144 = vor.u32 %v2140, %v2143
        %v2145 = vsel %vm1302, %v2144, %v2144
        %v2147 = vshrl.u32 %v1060, 16
        %v2149 = vrot.slane %v2147, 3
        %v2150 = vshll.u32 %v1060, 16
        %v2152 = vrot.slane %v2150, 4
        %v2153 = vor.u32 %v2149, %v2152
        %v2155 = vshrl.u32 %v1062, 16
        %v2157 = vrot.slane %v2155, 3
        %v2158 = vshll.u32 %v1062, 16
        %v2160 = vrot.slane %v2158, 4
        %v2161 = vor.u32 %v2157, %v2160
        %v2162 = vsel %vm1302, %v2153, %v2161
        %v2164 = vshrl.u32 %v1144, 16
        %v2166 = vrot.slane %v2164, 3
        %v2167 = vshll.u32 %v1144, 16
        %v2169 = vrot.slane %v2167, 4
        %v2170 = vor.u32 %v2166, %v2169
        %v2172 = vshrl.u32 %v1145, 16
        %v2174 = vrot.slane %v2172, 3
        %v2175 = vshll.u32 %v1145, 16
        %v2177 = vrot.slane %v2175, 4
        %v2178 = vor.u32 %v2174, %v2177
        %v2179 = vsel %vm1302, %v2170, %v2178
        %v2181 = vshrl.u32 %v1217, 16
        %v2183 = vrot.slane %v2181, 3
        %v2184 = vshll.u32 %v1217, 16
        %v2186 = vrot.slane %v2184, 4
        %v2187 = vor.u32 %v2183, %v2186
        %v2188 = vsel %vm1302, %v2187, %v2187
        %v2190 = vshrl.u32 %v1290, 16
        %v2192 = vrot.slane %v2190, 3
        %v2193 = vshll.u32 %v1290, 16
        %v2195 = vrot.slane %v2193, 4
        %v2196 = vor.u32 %v2192, %v2195
        %v2198 = vshrl.u32 %v1292, 16
        %v2200 = vrot.slane %v2198, 3
        %v2201 = vshll.u32 %v1292, 16
        %v2203 = vrot.slane %v2201, 4
        %v2204 = vor.u32 %v2200, %v2203
        %v2205 = vsel %vm1302, %v2196, %v2204
        %v2207 = vshrl.u32 %v685, 16
        %v2209 = vrot.slane %v2207, 3
        %v2210 = vshll.u32 %v685, 16
        %v2212 = vrot.slane %v2210, 4
        %v2213 = vor.u32 %v2209, %v2212
        %v2215 = vshrl.u32 %v686, 16
        %v2217 = vrot.slane %v2215, 3
        %v2218 = vshll.u32 %v686, 16
        %v2220 = vrot.slane %v2218, 4
        %v2221 = vor.u32 %v2217, %v2220
        %v2222 = vsel %vm1302, %v2213, %v2221
        %v2224 = vshrl.u32 %v764, 16
        %v2226 = vrot.slane %v2224, 3
        %v2227 = vshll.u32 %v764, 16
        %v2229 = vrot.slane %v2227, 4
        %v2230 = vor.u32 %v2226, %v2229
        %v2231 = vsel %vm1302, %v2230, %v2230
        %v2233 = vshrl.u32 %v833, 16
        %v2235 = vrot.slane %v2233, 3
        %v2236 = vshll.u32 %v833, 16
        %v2238 = vrot.slane %v2236, 4
        %v2239 = vor.u32 %v2235, %v2238
        %v2241 = vshrl.u32 %v835, 16
        %v2243 = vrot.slane %v2241, 3
        %v2244 = vshll.u32 %v835, 16
        %v2246 = vrot.slane %v2244, 4
        %v2247 = vor.u32 %v2243, %v2246
        %v2248 = vsel %vm1302, %v2239, %v2247
        %v2250 = vshrl.u32 %v916, 16
        %v2252 = vrot.slane %v2250, 3
        %v2253 = vshll.u32 %v916, 16
        %v2255 = vrot.slane %v2253, 4
        %v2256 = vor.u32 %v2252, %v2255
        %v2258 = vshrl.u32 %v917, 16
        %v2260 = vrot.slane %v2258, 3
        %v2261 = vshll.u32 %v917, 16
        %v2263 = vrot.slane %v2261, 4
        %v2264 = vor.u32 %v2260, %v2263
        %v2265 = vsel %vm1302, %v2256, %v2264
        %v2267 = vshrl.u32 %v995, 16
        %v2269 = vrot.slane %v2267, 3
        %v2270 = vshll.u32 %v995, 16
        %v2272 = vrot.slane %v2270, 4
        %v2273 = vor.u32 %v2269, %v2272
        %v2274 = vsel %vm1302, %v2273, %v2273
        %v2276 = vshrl.u32 %v1063, 16
        %v2278 = vrot.slane %v2276, 3
        %v2279 = vshll.u32 %v1063, 16
        %v2281 = vrot.slane %v2279, 4
        %v2282 = vor.u32 %v2278, %v2281
        %v2284 = vshrl.u32 %v1065, 16
        %v2286 = vrot.slane %v2284, 3
        %v2287 = vshll.u32 %v1065, 16
        %v2289 = vrot.slane %v2287, 4
        %v2290 = vor.u32 %v2286, %v2289
        %v2291 = vsel %vm1302, %v2282, %v2290
        %v2293 = vshrl.u32 %v1146, 16
        %v2295 = vrot.slane %v2293, 3
        %v2296 = vshll.u32 %v1146, 16
        %v2298 = vrot.slane %v2296, 4
        %v2299 = vor.u32 %v2295, %v2298
        %v2301 = vshrl.u32 %v1147, 16
        %v2303 = vrot.slane %v2301, 3
        %v2304 = vshll.u32 %v1147, 16
        %v2306 = vrot.slane %v2304, 4
        %v2307 = vor.u32 %v2303, %v2306
        %v2308 = vsel %vm1302, %v2299, %v2307
        %v2310 = vshrl.u32 %v1225, 16
        %v2312 = vrot.slane %v2310, 3
        %v2313 = vshll.u32 %v1225, 16
        %v2315 = vrot.slane %v2313, 4
        %v2316 = vor.u32 %v2312, %v2315
        %v2317 = vsel %vm1302, %v2316, %v2316
        %v2319 = vshrl.u32 %v1293, 16
        %v2321 = vrot.slane %v2319, 3
        %v2322 = vshll.u32 %v1293, 16
        %v2324 = vrot.slane %v2322, 4
        %v2325 = vor.u32 %v2321, %v2324
        %v2327 = vshrl.u32 %v1295, 16
        %v2329 = vrot.slane %v2327, 3
        %v2330 = vshll.u32 %v1295, 16
        %v2332 = vrot.slane %v2330, 4
        %v2333 = vor.u32 %v2329, %v2332
        %v2334 = vsel %vm1302, %v2325, %v2333
        %v2336 = vshrl.u32 %v687, 16
        %v2338 = vrot.slane %v2336, 3
        %v2339 = vshll.u32 %v687, 16
        %v2341 = vrot.slane %v2339, 4
        %v2342 = vor.u32 %v2338, %v2341
        %v2344 = vshrl.u32 %v688, 16
        %v2346 = vrot.slane %v2344, 3
        %v2347 = vshll.u32 %v688, 16
        %v2349 = vrot.slane %v2347, 4
        %v2350 = vor.u32 %v2346, %v2349
        %v2351 = vsel %vm1302, %v2342, %v2350
        %v2353 = vshrl.u32 %v772, 16
        %v2355 = vrot.slane %v2353, 3
        %v2356 = vshll.u32 %v772, 16
        %v2358 = vrot.slane %v2356, 4
        %v2359 = vor.u32 %v2355, %v2358
        %v2360 = vsel %vm1302, %v2359, %v2359
        %v2362 = vshrl.u32 %v836, 16
        %v2364 = vrot.slane %v2362, 3
        %v2365 = vshll.u32 %v836, 16
        %v2367 = vrot.slane %v2365, 4
        %v2368 = vor.u32 %v2364, %v2367
        %v2370 = vshrl.u32 %v838, 16
        %v2372 = vrot.slane %v2370, 3
        %v2373 = vshll.u32 %v838, 16
        %v2375 = vrot.slane %v2373, 4
        %v2376 = vor.u32 %v2372, %v2375
        %v2377 = vsel %vm1302, %v2368, %v2376
        %v2379 = vshrl.u32 %v918, 16
        %v2381 = vrot.slane %v2379, 3
        %v2382 = vshll.u32 %v918, 16
        %v2384 = vrot.slane %v2382, 4
        %v2385 = vor.u32 %v2381, %v2384
        %v2387 = vshrl.u32 %v919, 16
        %v2389 = vrot.slane %v2387, 3
        %v2390 = vshll.u32 %v919, 16
        %v2392 = vrot.slane %v2390, 4
        %v2393 = vor.u32 %v2389, %v2392
        %v2394 = vsel %vm1302, %v2385, %v2393
        %v2396 = vshrl.u32 %v1003, 16
        %v2398 = vrot.slane %v2396, 3
        %v2399 = vshll.u32 %v1003, 16
        %v2401 = vrot.slane %v2399, 4
        %v2402 = vor.u32 %v2398, %v2401
        %v2403 = vsel %vm1302, %v2402, %v2402
        %v2405 = vshrl.u32 %v1066, 16
        %v2407 = vrot.slane %v2405, 3
        %v2408 = vshll.u32 %v1066, 16
        %v2410 = vrot.slane %v2408, 4
        %v2411 = vor.u32 %v2407, %v2410
        %v2413 = vshrl.u32 %v1068, 16
        %v2415 = vrot.slane %v2413, 3
        %v2416 = vshll.u32 %v1068, 16
        %v2418 = vrot.slane %v2416, 4
        %v2419 = vor.u32 %v2415, %v2418
        %v2420 = vsel %vm1302, %v2411, %v2419
        %v2422 = vshrl.u32 %v1148, 16
        %v2424 = vrot.slane %v2422, 3
        %v2425 = vshll.u32 %v1148, 16
        %v2427 = vrot.slane %v2425, 4
        %v2428 = vor.u32 %v2424, %v2427
        %v2430 = vshrl.u32 %v1149, 16
        %v2432 = vrot.slane %v2430, 3
        %v2433 = vshll.u32 %v1149, 16
        %v2435 = vrot.slane %v2433, 4
        %v2436 = vor.u32 %v2432, %v2435
        %v2437 = vsel %vm1302, %v2428, %v2436
        %v2439 = vshrl.u32 %v1233, 16
        %v2441 = vrot.slane %v2439, 3
        %v2442 = vshll.u32 %v1233, 16
        %v2444 = vrot.slane %v2442, 4
        %v2445 = vor.u32 %v2441, %v2444
        %v2446 = vsel %vm1302, %v2445, %v2445
        %v2448 = vshrl.u32 %v1296, 16
        %v2450 = vrot.slane %v2448, 3
        %v2451 = vshll.u32 %v1296, 16
        %v2453 = vrot.slane %v2451, 4
        %v2454 = vor.u32 %v2450, %v2453
        %v2456 = vshrl.u32 %v1298, 16
        %v2458 = vrot.slane %v2456, 3
        %v2459 = vshll.u32 %v1298, 16
        %v2461 = vrot.slane %v2459, 4
        %v2462 = vor.u32 %v2458, %v2461
        %v2463 = vsel %vm1302, %v2454, %v2462
        %v2465 = vshrl.u32 %v689, 16
        %v2467 = vrot.slane %v2465, 3
        %v2468 = vshll.u32 %v689, 16
        %v2470 = vrot.slane %v2468, 4
        %v2471 = vor.u32 %v2467, %v2470
        %v2473 = vshrl.u32 %v690, 16
        %v2475 = vrot.slane %v2473, 3
        %v2476 = vshll.u32 %v690, 16
        %v2478 = vrot.slane %v2476, 4
        %v2479 = vor.u32 %v2475, %v2478
        %v2480 = vsel %vm1302, %v2471, %v2479
        %v2482 = vshrl.u32 %v780, 16
        %v2484 = vrot.slane %v2482, 3
        %v2485 = vshll.u32 %v780, 16
        %v2487 = vrot.slane %v2485, 4
        %v2488 = vor.u32 %v2484, %v2487
        %v2489 = vsel %vm1302, %v2488, %v2488
        %v2491 = vshrl.u32 %v839, 16
        %v2493 = vrot.slane %v2491, 3
        %v2494 = vshll.u32 %v839, 16
        %v2496 = vrot.slane %v2494, 4
        %v2497 = vor.u32 %v2493, %v2496
        %v2499 = vshrl.u32 %v841, 16
        %v2501 = vrot.slane %v2499, 3
        %v2502 = vshll.u32 %v841, 16
        %v2504 = vrot.slane %v2502, 4
        %v2505 = vor.u32 %v2501, %v2504
        %v2506 = vsel %vm1302, %v2497, %v2505
        %v2508 = vshrl.u32 %v920, 16
        %v2510 = vrot.slane %v2508, 3
        %v2511 = vshll.u32 %v920, 16
        %v2513 = vrot.slane %v2511, 4
        %v2514 = vor.u32 %v2510, %v2513
        %v2516 = vshrl.u32 %v921, 16
        %v2518 = vrot.slane %v2516, 3
        %v2519 = vshll.u32 %v921, 16
        %v2521 = vrot.slane %v2519, 4
        %v2522 = vor.u32 %v2518, %v2521
        %v2523 = vsel %vm1302, %v2514, %v2522
        %v2525 = vshrl.u32 %v1011, 16
        %v2527 = vrot.slane %v2525, 3
        %v2528 = vshll.u32 %v1011, 16
        %v2530 = vrot.slane %v2528, 4
        %v2531 = vor.u32 %v2527, %v2530
        %v2532 = vsel %vm1302, %v2531, %v2531
        %v2534 = vshrl.u32 %v1069, 16
        %v2536 = vrot.slane %v2534, 3
        %v2537 = vshll.u32 %v1069, 16
        %v2539 = vrot.slane %v2537, 4
        %v2540 = vor.u32 %v2536, %v2539
        %v2542 = vshrl.u32 %v1071, 16
        %v2544 = vrot.slane %v2542, 3
        %v2545 = vshll.u32 %v1071, 16
        %v2547 = vrot.slane %v2545, 4
        %v2548 = vor.u32 %v2544, %v2547
        %v2549 = vsel %vm1302, %v2540, %v2548
        %v2551 = vshrl.u32 %v1150, 16
        %v2553 = vrot.slane %v2551, 3
        %v2554 = vshll.u32 %v1150, 16
        %v2556 = vrot.slane %v2554, 4
        %v2557 = vor.u32 %v2553, %v2556
        %v2559 = vshrl.u32 %v1151, 16
        %v2561 = vrot.slane %v2559, 3
        %v2562 = vshll.u32 %v1151, 16
        %v2564 = vrot.slane %v2562, 4
        %v2565 = vor.u32 %v2561, %v2564
        %v2566 = vsel %vm1302, %v2557, %v2565
        %v2568 = vshrl.u32 %v1241, 16
        %v2570 = vrot.slane %v2568, 3
        %v2571 = vshll.u32 %v1241, 16
        %v2573 = vrot.slane %v2571, 4
        %v2574 = vor.u32 %v2570, %v2573
        %v2575 = vsel %vm1302, %v2574, %v2574
        %v2577 = vshrl.u32 %v1299, 16
        %v2579 = vrot.slane %v2577, 3
        %v2580 = vshll.u32 %v1299, 16
        %v2582 = vrot.slane %v2580, 4
        %v2583 = vor.u32 %v2579, %v2582
        %v2585 = vshrl.u32 %v1301, 16
        %v2587 = vrot.slane %v2585, 3
        %v2588 = vshll.u32 %v1301, 16
        %v2590 = vrot.slane %v2588, 4
        %v2591 = vor.u32 %v2587, %v2590
        %v2592 = vsel %vm1302, %v2583, %v2591
        %v2683 = vld [vmem:[#allocation7] sm:$0xf]
        %v2684 = vld [vmem:[#allocation7 + $0x4] sm:$0xf]
        %v2685 = vld [vmem:[#allocation7 + $0x8] sm:$0xf]
        %v2686 = vld [vmem:[#allocation7 + $0xc] sm:$0xf]
        %v2687 = vld [vmem:[#allocation7 + $0x10] sm:$0xf]
        %v2688 = vld [vmem:[#allocation7 + $0x14] sm:$0xf]
        %v2689 = vld [vmem:[#allocation7 + $0x18] sm:$0xf]
        %v2690 = vld [vmem:[#allocation7 + $0x1c] sm:$0xf]
        %v2691 = vld [vmem:[#allocation7 + $0x20] sm:$0xf]
        %v2692 = vld [vmem:[#allocation7 + $0x24] sm:$0xf]
        %v2693 = vld [vmem:[#allocation7 + $0x28] sm:$0xf]
        %v2694 = vld [vmem:[#allocation7 + $0x2c] sm:$0xf]
        %v2695 = vld [vmem:[#allocation7 + $0x30] sm:$0xf]
        %v2696 = vld [vmem:[#allocation7 + $0x34] sm:$0xf]
        %v2697 = vld [vmem:[#allocation7 + $0x38] sm:$0xf]
        %v2698 = vld [vmem:[#allocation7 + $0x3c] sm:$0xf]
        %v2699 = vld [vmem:[#allocation7 + $0x40] sm:$0xf]
        %v2700 = vld [vmem:[#allocation7 + $0x44] sm:$0xf]
        %v2701 = vld [vmem:[#allocation7 + $0x48] sm:$0xf]
        %v2702 = vld [vmem:[#allocation7 + $0x4c] sm:$0xf]
        %v2703 = vld [vmem:[#allocation7 + $0x50] sm:$0xf]
        %v2704 = vld [vmem:[#allocation7 + $0x54] sm:$0xf]
        %v2705 = vld [vmem:[#allocation7 + $0x58] sm:$0xf]
        %v2706 = vld [vmem:[#allocation7 + $0x5c] sm:$0xf]
        %v2707 = vld [vmem:[#allocation7 + $0x60] sm:$0xf]
        %v2708 = vld [vmem:[#allocation7 + $0x64] sm:$0xf]
        %v2709 = vld [vmem:[#allocation7 + $0x68] sm:$0xf]
        %v2710 = vld [vmem:[#allocation7 + $0x6c] sm:$0xf]
        %v2711 = vld [vmem:[#allocation7 + $0x70] sm:$0xf]
        %v2712 = vld [vmem:[#allocation7 + $0x74] sm:$0xf]
        %v2713 = vld [vmem:[#allocation7 + $0x78] sm:$0xf]
        %v2714 = vld [vmem:[#allocation7 + $0x7c] sm:$0xf]
        %v2715 = vld [vmem:[#allocation7 + $0x80] sm:$0xf]
        %v2716 = vld [vmem:[#allocation7 + $0x84] sm:$0xf]
        %v2717 = vld [vmem:[#allocation7 + $0x88] sm:$0xf]
        %v2718 = vld [vmem:[#allocation7 + $0x8c] sm:$0xf]
        %v2719 = vld [vmem:[#allocation7 + $0x90] sm:$0xf]
        %v2720 = vld [vmem:[#allocation7 + $0x94] sm:$0xf]
        %v2721 = vld [vmem:[#allocation7 + $0x98] sm:$0xf]
        %v2722 = vld [vmem:[#allocation7 + $0x9c] sm:$0xf]
        %v2723 = vld [vmem:[#allocation7 + $0xa0] sm:$0xf]
        %v2724 = vld [vmem:[#allocation7 + $0xa4] sm:$0xf]
        %v2725 = vld [vmem:[#allocation7 + $0xa8] sm:$0xf]
        %v2726 = vld [vmem:[#allocation7 + $0xac] sm:$0xf]
        %v2727 = vld [vmem:[#allocation7 + $0xb0] sm:$0xf]
        %v2728 = vld [vmem:[#allocation7 + $0xb4] sm:$0xf]
        %v2729 = vld [vmem:[#allocation7 + $0xb8] sm:$0xf]
        %v2730 = vld [vmem:[#allocation7 + $0xbc] sm:$0xf]
        %v2731 = vld [vmem:[#allocation7 + $0xc0] sm:$0xf]
        %v2732 = vld [vmem:[#allocation7 + $0xc4] sm:$0xf]
        %v2733 = vld [vmem:[#allocation7 + $0xc8] sm:$0xf]
        %v2734 = vld [vmem:[#allocation7 + $0xcc] sm:$0xf]
        %v2735 = vld [vmem:[#allocation7 + $0xd0] sm:$0xf]
        %v2736 = vld [vmem:[#allocation7 + $0xd4] sm:$0xf]
        %v2737 = vld [vmem:[#allocation7 + $0xd8] sm:$0xf]
        %v2738 = vld [vmem:[#allocation7 + $0xdc] sm:$0xf]
        %v2739 = vld [vmem:[#allocation7 + $0xe0] sm:$0xf]
        %v2740 = vld [vmem:[#allocation7 + $0xe4] sm:$0xf]
        %v2741 = vld [vmem:[#allocation7 + $0xe8] sm:$0xf]
        %v2742 = vld [vmem:[#allocation7 + $0xec] sm:$0xf]
        %v2743 = vld [vmem:[#allocation7 + $0xf0] sm:$0xf]
        %v2744 = vld [vmem:[#allocation7 + $0xf4] sm:$0xf]
        %v2745 = vld [vmem:[#allocation7 + $0xf8] sm:$0xf]
        %v2746 = vld [vmem:[#allocation7 + $0xfc] sm:$0xf]
        %v2747 = vld [vmem:[#allocation7 + $0x100] sm:$0xf]
        %v2748 = vld [vmem:[#allocation7 + $0x104] sm:$0xf]
        %v2749 = vld [vmem:[#allocation7 + $0x108] sm:$0xf]
        %v2750 = vld [vmem:[#allocation7 + $0x10c] sm:$0xf]
        %v2751 = vld [vmem:[#allocation7 + $0x110] sm:$0xf]
        %v2752 = vld [vmem:[#allocation7 + $0x114] sm:$0xf]
        %v2753 = vld [vmem:[#allocation7 + $0x118] sm:$0xf]
        %v2754 = vld [vmem:[#allocation7 + $0x11c] sm:$0xf]
        %v2755 = vld [vmem:[#allocation7 + $0x120] sm:$0xf]
        %v2756 = vld [vmem:[#allocation7 + $0x124] sm:$0xf]
        %v2757 = vld [vmem:[#allocation7 + $0x128] sm:$0xf]
        %v2758 = vld [vmem:[#allocation7 + $0x12c] sm:$0xf]
        %v2759 = vld [vmem:[#allocation7 + $0x130] sm:$0xf]
        %v2760 = vld [vmem:[#allocation7 + $0x134] sm:$0xf]
        %v2761 = vld [vmem:[#allocation7 + $0x138] sm:$0xf]
        %v2762 = vld [vmem:[#allocation7 + $0x13c] sm:$0xf]
        %v2763 = vld [vmem:[#allocation7 + $0x140] sm:$0xf]
        %v2764 = vld [vmem:[#allocation7 + $0x144] sm:$0xf]
        %v2765 = vld [vmem:[#allocation7 + $0x148] sm:$0xf]
        %v2766 = vld [vmem:[#allocation7 + $0x14c] sm:$0xf]
        %v2767 = vld [vmem:[#allocation7 + $0x150] sm:$0xf]
        %v2768 = vld [vmem:[#allocation7 + $0x154] sm:$0xf]
        %v2769 = vld [vmem:[#allocation7 + $0x158] sm:$0xf]
        %v2770 = vld [vmem:[#allocation7 + $0x15c] sm:$0xf]
        %v2771 = vld [vmem:[#allocation7 + $0x160] sm:$0xf]
        %v2772 = vld [vmem:[#allocation7 + $0x164] sm:$0xf]
        %v2773 = vld [vmem:[#allocation7 + $0x168] sm:$0xf]
        %v2774 = vld [vmem:[#allocation7 + $0x16c] sm:$0xf]
        %v2775 = vld [vmem:[#allocation7 + $0x170] sm:$0xf]
        %v2776 = vld [vmem:[#allocation7 + $0x174] sm:$0xf]
        %v2777 = vld [vmem:[#allocation7 + $0x178] sm:$0xf]
        %v2778 = vld [vmem:[#allocation7 + $0x17c] sm:$0xf]
        %v2779 = vld [vmem:[#allocation7 + $0x180] sm:$0xf]
        %v2780 = vld [vmem:[#allocation7 + $0x184] sm:$0xf]
        %v2781 = vld [vmem:[#allocation7 + $0x188] sm:$0xf]
        %v2782 = vld [vmem:[#allocation7 + $0x18c] sm:$0xf]
        %v2783 = vld [vmem:[#allocation7 + $0x190] sm:$0xf]
        %v2784 = vld [vmem:[#allocation7 + $0x194] sm:$0xf]
        %v2785 = vld [vmem:[#allocation7 + $0x198] sm:$0xf]
        %v2786 = vld [vmem:[#allocation7 + $0x19c] sm:$0xf]
        %v2787 = vld [vmem:[#allocation7 + $0x1a0] sm:$0xf]
        %v2788 = vld [vmem:[#allocation7 + $0x1a4] sm:$0xf]
        %v2789 = vld [vmem:[#allocation7 + $0x1a8] sm:$0xf]
        %v2790 = vld [vmem:[#allocation7 + $0x1ac] sm:$0xf]
        %v2791 = vld [vmem:[#allocation7 + $0x1b0] sm:$0xf]
        %v2792 = vld [vmem:[#allocation7 + $0x1b4] sm:$0xf]
        %v2793 = vld [vmem:[#allocation7 + $0x1b8] sm:$0xf]
        %v2794 = vld [vmem:[#allocation7 + $0x1bc] sm:$0xf]
        %v2795 = vld [vmem:[#allocation7 + $0x1c0] sm:$0xf]
        %v2796 = vld [vmem:[#allocation7 + $0x1c4] sm:$0xf]
        %v2797 = vld [vmem:[#allocation7 + $0x1c8] sm:$0xf]
        %v2798 = vld [vmem:[#allocation7 + $0x1cc] sm:$0xf]
        %v2799 = vld [vmem:[#allocation7 + $0x1d0] sm:$0xf]
        %v2800 = vld [vmem:[#allocation7 + $0x1d4] sm:$0xf]
        %v2801 = vld [vmem:[#allocation7 + $0x1d8] sm:$0xf]
        %v2802 = vld [vmem:[#allocation7 + $0x1dc] sm:$0xf]
        %v2803 = vld [vmem:[#allocation7 + $0x1e0] sm:$0xf]
        %v2804 = vld [vmem:[#allocation7 + $0x1e4] sm:$0xf]
        %v2805 = vld [vmem:[#allocation7 + $0x1e8] sm:$0xf]
        %v2806 = vld [vmem:[#allocation7 + $0x1ec] sm:$0xf]
        %v2807 = vld [vmem:[#allocation7 + $0x1f0] sm:$0xf]
        %v2808 = vld [vmem:[#allocation7 + $0x1f4] sm:$0xf]
        %v2809 = vld [vmem:[#allocation7 + $0x1f8] sm:$0xf]
        %v2810 = vld [vmem:[#allocation7 + $0x1fc] sm:$0xf]
        %v2811 = vld [vmem:[#allocation7 + $0x200] sm:$0xf]
        %v2812 = vld [vmem:[#allocation7 + $0x204] sm:$0xf]
        %v2813 = vld [vmem:[#allocation7 + $0x208] sm:$0xf]
        %v2814 = vld [vmem:[#allocation7 + $0x20c] sm:$0xf]
        %v2815 = vld [vmem:[#allocation7 + $0x210] sm:$0xf]
        %v2816 = vld [vmem:[#allocation7 + $0x214] sm:$0xf]
        %v2817 = vld [vmem:[#allocation7 + $0x218] sm:$0xf]
        %v2818 = vld [vmem:[#allocation7 + $0x21c] sm:$0xf]
        %v2819 = vld [vmem:[#allocation7 + $0x220] sm:$0xf]
        %v2820 = vld [vmem:[#allocation7 + $0x224] sm:$0xf]
        %v2821 = vld [vmem:[#allocation7 + $0x228] sm:$0xf]
        %v2822 = vld [vmem:[#allocation7 + $0x22c] sm:$0xf]
        %v2823 = vld [vmem:[#allocation7 + $0x230] sm:$0xf]
        %v2824 = vld [vmem:[#allocation7 + $0x234] sm:$0xf]
        %v2825 = vld [vmem:[#allocation7 + $0x238] sm:$0xf]
        %v2826 = vld [vmem:[#allocation7 + $0x23c] sm:$0xf]
        %v2827 = vld [vmem:[%s2] sm:$0x1]
        %v2829 = vperm.slane %v2827, 0
        %v2975 = vunpack.c.l.b16 %v2683
        %v2976 = vunpack.c.l.b16 %v2684
        %v2977 = vunpack.c.l.b16 %v2685
        %v2978 = vunpack.c.l.b16 %v2686
        %v2979 = vunpack.c.l.b16 %v2687
        %v2980 = vunpack.c.l.b16 %v2688
        %v2981 = vunpack.c.l.b16 %v2689
        %v2982 = vunpack.c.l.b16 %v2690
        %v2983 = vunpack.c.l.b16 %v2691
        %v2984 = vunpack.c.l.b16 %v2692
        %v2985 = vunpack.c.l.b16 %v2693
        %v2986 = vunpack.c.l.b16 %v2694
        %v2987 = vunpack.c.l.b16 %v2695
        %v2988 = vunpack.c.l.b16 %v2696
        %v2989 = vunpack.c.l.b16 %v2697
        %v2990 = vunpack.c.l.b16 %v2698
        %v2991 = vunpack.c.l.b16 %v2699
        %v2992 = vunpack.c.l.b16 %v2700
        %v2993 = vunpack.c.l.b16 %v2701
        %v2994 = vunpack.c.l.b16 %v2702
        %v2995 = vunpack.c.l.b16 %v2703
        %v2996 = vunpack.c.l.b16 %v2704
        %v2997 = vunpack.c.l.b16 %v2705
        %v2998 = vunpack.c.l.b16 %v2706
        %v2999 = vunpack.c.l.b16 %v2707
        %v3000 = vunpack.c.l.b16 %v2708
        %v3001 = vunpack.c.l.b16 %v2709
        %v3002 = vunpack.c.l.b16 %v2710
        %v3003 = vunpack.c.l.b16 %v2711
        %v3004 = vunpack.c.l.b16 %v2712
        %v3005 = vunpack.c.l.b16 %v2713
        %v3006 = vunpack.c.l.b16 %v2714
        %v3007 = vunpack.c.l.b16 %v2715
        %v3008 = vunpack.c.l.b16 %v2716
        %v3009 = vunpack.c.l.b16 %v2717
        %v3010 = vunpack.c.l.b16 %v2718
        %v3011 = vunpack.c.l.b16 %v2719
        %v3012 = vunpack.c.l.b16 %v2720
        %v3013 = vunpack.c.l.b16 %v2721
        %v3014 = vunpack.c.l.b16 %v2722
        %v3015 = vunpack.c.l.b16 %v2723
        %v3016 = vunpack.c.l.b16 %v2724
        %v3017 = vunpack.c.l.b16 %v2725
        %v3018 = vunpack.c.l.b16 %v2726
        %v3019 = vunpack.c.l.b16 %v2727
        %v3020 = vunpack.c.l.b16 %v2728
        %v3021 = vunpack.c.l.b16 %v2729
        %v3022 = vunpack.c.l.b16 %v2730
        %v3023 = vunpack.c.l.b16 %v2731
        %v3024 = vunpack.c.l.b16 %v2732
        %v3025 = vunpack.c.l.b16 %v2733
        %v3026 = vunpack.c.l.b16 %v2734
        %v3027 = vunpack.c.l.b16 %v2735
        %v3028 = vunpack.c.l.b16 %v2736
        %v3029 = vunpack.c.l.b16 %v2737
        %v3030 = vunpack.c.l.b16 %v2738
        %v3031 = vunpack.c.l.b16 %v2739
        %v3032 = vunpack.c.l.b16 %v2740
        %v3033 = vunpack.c.l.b16 %v2741
        %v3034 = vunpack.c.l.b16 %v2742
        %v3035 = vunpack.c.l.b16 %v2743
        %v3036 = vunpack.c.l.b16 %v2744
        %v3037 = vunpack.c.l.b16 %v2745
        %v3038 = vunpack.c.l.b16 %v2746
        %v3039 = vunpack.c.l.b16 %v2747
        %v3040 = vunpack.c.l.b16 %v2748
        %v3041 = vunpack.c.l.b16 %v2749
        %v3042 = vunpack.c.l.b16 %v2750
        %v3043 = vunpack.c.l.b16 %v2751
        %v3044 = vunpack.c.l.b16 %v2752
        %v3045 = vunpack.c.l.b16 %v2753
        %v3046 = vunpack.c.l.b16 %v2754
        %v3047 = vunpack.c.l.b16 %v2755
        %v3048 = vunpack.c.l.b16 %v2756
        %v3049 = vunpack.c.l.b16 %v2757
        %v3050 = vunpack.c.l.b16 %v2758
        %v3051 = vunpack.c.l.b16 %v2759
        %v3052 = vunpack.c.l.b16 %v2760
        %v3053 = vunpack.c.l.b16 %v2761
        %v3054 = vunpack.c.l.b16 %v2762
        %v3055 = vunpack.c.l.b16 %v2763
        %v3056 = vunpack.c.l.b16 %v2764
        %v3057 = vunpack.c.l.b16 %v2765
        %v3058 = vunpack.c.l.b16 %v2766
        %v3059 = vunpack.c.l.b16 %v2767
        %v3060 = vunpack.c.l.b16 %v2768
        %v3061 = vunpack.c.l.b16 %v2769
        %v3062 = vunpack.c.l.b16 %v2770
        %v3063 = vunpack.c.l.b16 %v2771
        %v3064 = vunpack.c.l.b16 %v2772
        %v3065 = vunpack.c.l.b16 %v2773
        %v3066 = vunpack.c.l.b16 %v2774
        %v3067 = vunpack.c.l.b16 %v2775
        %v3068 = vunpack.c.l.b16 %v2776
        %v3069 = vunpack.c.l.b16 %v2777
        %v3070 = vunpack.c.l.b16 %v2778
        %v3071 = vunpack.c.l.b16 %v2779
        %v3072 = vunpack.c.l.b16 %v2780
        %v3073 = vunpack.c.l.b16 %v2781
        %v3074 = vunpack.c.l.b16 %v2782
        %v3075 = vunpack.c.l.b16 %v2783
        %v3076 = vunpack.c.l.b16 %v2784
        %v3077 = vunpack.c.l.b16 %v2785
        %v3078 = vunpack.c.l.b16 %v2786
        %v3079 = vunpack.c.l.b16 %v2787
        %v3080 = vunpack.c.l.b16 %v2788
        %v3081 = vunpack.c.l.b16 %v2789
        %v3082 = vunpack.c.l.b16 %v2790
        %v3083 = vunpack.c.l.b16 %v2791
        %v3084 = vunpack.c.l.b16 %v2792
        %v3085 = vunpack.c.l.b16 %v2793
        %v3086 = vunpack.c.l.b16 %v2794
        %v3087 = vunpack.c.l.b16 %v2795
        %v3088 = vunpack.c.l.b16 %v2796
        %v3089 = vunpack.c.l.b16 %v2797
        %v3090 = vunpack.c.l.b16 %v2798
        %v3091 = vunpack.c.l.b16 %v2799
        %v3092 = vunpack.c.l.b16 %v2800
        %v3093 = vunpack.c.l.b16 %v2801
        %v3094 = vunpack.c.l.b16 %v2802
        %v3095 = vunpack.c.l.b16 %v2803
        %v3096 = vunpack.c.l.b16 %v2804
        %v3097 = vunpack.c.l.b16 %v2805
        %v3098 = vunpack.c.l.b16 %v2806
        %v3099 = vunpack.c.l.b16 %v2807
        %v3100 = vunpack.c.l.b16 %v2808
        %v3101 = vunpack.c.l.b16 %v2809
        %v3102 = vunpack.c.l.b16 %v2810
        %v3103 = vunpack.c.l.b16 %v2811
        %v3104 = vunpack.c.l.b16 %v2812
        %v3105 = vunpack.c.l.b16 %v2813
        %v3106 = vunpack.c.l.b16 %v2814
        %v3107 = vunpack.c.l.b16 %v2815
        %v3108 = vunpack.c.l.b16 %v2816
        %v3109 = vunpack.c.l.b16 %v2817
        %v3110 = vunpack.c.l.b16 %v2818
        %v3111 = vunpack.c.l.b16 %v2819
        %v3112 = vunpack.c.l.b16 %v2820
        %v3113 = vunpack.c.l.b16 %v2821
        %v3114 = vunpack.c.l.b16 %v2822
        %v3115 = vunpack.c.l.b16 %v2823
        %v3116 = vunpack.c.l.b16 %v2824
        %v3117 = vunpack.c.l.b16 %v2825
        %v3118 = vunpack.c.l.b16 %v2826
        %v3119 = vpack.c.b16 %v2976, %v2975
        %v3120 = vpack.c.b16 %v2978, %v2977
        %v3121 = vpack.c.b16 %v2980, %v2979
        %v3122 = vpack.c.b16 %v2982, %v2981
        %v3123 = vpack.c.b16 %v2984, %v2983
        %v3124 = vpack.c.b16 %v2986, %v2985
        %v3125 = vpack.c.b16 %v2988, %v2987
        %v3126 = vpack.c.b16 %v2990, %v2989
        %v3127 = vpack.c.b16 %v2992, %v2991
        %v3128 = vpack.c.b16 %v2994, %v2993
        %v3129 = vpack.c.b16 %v2996, %v2995
        %v3130 = vpack.c.b16 %v2998, %v2997
        %v3131 = vpack.c.b16 %v3000, %v2999
        %v3132 = vpack.c.b16 %v3002, %v3001
        %v3133 = vpack.c.b16 %v3004, %v3003
        %v3134 = vpack.c.b16 %v3006, %v3005
        %v3135 = vpack.c.b16 %v3008, %v3007
        %v3136 = vpack.c.b16 %v3010, %v3009
        %v3137 = vpack.c.b16 %v3012, %v3011
        %v3138 = vpack.c.b16 %v3014, %v3013
        %v3139 = vpack.c.b16 %v3016, %v3015
        %v3140 = vpack.c.b16 %v3018, %v3017
        %v3141 = vpack.c.b16 %v3020, %v3019
        %v3142 = vpack.c.b16 %v3022, %v3021
        %v3143 = vpack.c.b16 %v3024, %v3023
        %v3144 = vpack.c.b16 %v3026, %v3025
        %v3145 = vpack.c.b16 %v3028, %v3027
        %v3146 = vpack.c.b16 %v3030, %v3029
        %v3147 = vpack.c.b16 %v3032, %v3031
        %v3148 = vpack.c.b16 %v3034, %v3033
        %v3149 = vpack.c.b16 %v3036, %v3035
        %v3150 = vpack.c.b16 %v3038, %v3037
        %v3151 = vpack.c.b16 %v3040, %v3039
        %v3152 = vpack.c.b16 %v3042, %v3041
        %v3153 = vpack.c.b16 %v3044, %v3043
        %v3154 = vpack.c.b16 %v3046, %v3045
        %v3155 = vpack.c.b16 %v3048, %v3047
        %v3156 = vpack.c.b16 %v3050, %v3049
        %v3157 = vpack.c.b16 %v3052, %v3051
        %v3158 = vpack.c.b16 %v3054, %v3053
        %v3159 = vpack.c.b16 %v3056, %v3055
        %v3160 = vpack.c.b16 %v3058, %v3057
        %v3161 = vpack.c.b16 %v3060, %v3059
        %v3162 = vpack.c.b16 %v3062, %v3061
        %v3163 = vpack.c.b16 %v3064, %v3063
        %v3164 = vpack.c.b16 %v3066, %v3065
        %v3165 = vpack.c.b16 %v3068, %v3067
        %v3166 = vpack.c.b16 %v3070, %v3069
        %v3167 = vpack.c.b16 %v3072, %v3071
        %v3168 = vpack.c.b16 %v3074, %v3073
        %v3169 = vpack.c.b16 %v3076, %v3075
        %v3170 = vpack.c.b16 %v3078, %v3077
        %v3171 = vpack.c.b16 %v3080, %v3079
        %v3172 = vpack.c.b16 %v3082, %v3081
        %v3173 = vpack.c.b16 %v3084, %v3083
        %v3174 = vpack.c.b16 %v3086, %v3085
        %v3175 = vpack.c.b16 %v3088, %v3087
        %v3176 = vpack.c.b16 %v3090, %v3089
        %v3177 = vpack.c.b16 %v3092, %v3091
        %v3178 = vpack.c.b16 %v3094, %v3093
        %v3179 = vpack.c.b16 %v3096, %v3095
        %v3180 = vpack.c.b16 %v3098, %v3097
        %v3181 = vpack.c.b16 %v3100, %v3099
        %v3182 = vpack.c.b16 %v3102, %v3101
        %v3183 = vpack.c.b16 %v3104, %v3103
        %v3184 = vpack.c.b16 %v3106, %v3105
        %v3185 = vpack.c.b16 %v3108, %v3107
        %v3186 = vpack.c.b16 %v3110, %v3109
        %v3187 = vpack.c.b16 %v3112, %v3111
        %v3188 = vpack.c.b16 %v3114, %v3113
        %v3189 = vpack.c.b16 %v3116, %v3115
        %v3190 = vpack.c.b16 %v3118, %v3117
        %3263 = vmatpush.bf16.msra.mxu0 %v3126
        %3264 = vmatpush.bf16.msra.mxu0 %v3125
        %3265 = vmatpush.bf16.msra.mxu0 %v3124
        %3266 = vmatpush.bf16.msra.mxu0 %v3123
        %3267 = vmatpush.bf16.msra.mxu0 %v3122
        %3268 = vmatpush.bf16.msra.mxu0 %v3121
        %3269 = vmatpush.bf16.msra.mxu0 %v3120
        %3270 = vmatpush.bf16.msra.mxu0 %v3119
        %3271 = vmatmul.bf16.gmra.mxu0 %v1319
        %v3272 = vpop.f32.mrf.mxu0
        %v3273 = vadd.f32 %v2829, %v3272
        %v3274 = vpop.f32.mrf.mxu0
        %v3275 = vadd.f32 %v2829, %v3274
        %3276 = vmatmul.bf16.gmra.mxu0 %v1448
        %v3277 = vpop.f32.mrf.mxu0
        %v3278 = vadd.f32 %v2829, %v3277
        %v3279 = vpop.f32.mrf.mxu0
        %v3280 = vadd.f32 %v2829, %v3279
        %3281 = vmatmul.bf16.gmra.mxu0 %v1577
        %v3282 = vpop.f32.mrf.mxu0
        %v3283 = vadd.f32 %v2829, %v3282
        %v3284 = vpop.f32.mrf.mxu0
        %v3285 = vadd.f32 %v2829, %v3284
        %3286 = vmatmul.bf16.gmra.mxu0 %v1706
        %v3287 = vpop.f32.mrf.mxu0
        %v3288 = vadd.f32 %v2829, %v3287
        %v3289 = vpop.f32.mrf.mxu0
        %v3290 = vadd.f32 %v2829, %v3289
        %3291 = vmatmul.bf16.gmra.mxu0 %v1835
        %v3292 = vpop.f32.mrf.mxu0
        %v3293 = vadd.f32 %v2829, %v3292
        %v3294 = vpop.f32.mrf.mxu0
        %v3295 = vadd.f32 %v2829, %v3294
        %3296 = vmatmul.bf16.gmra.mxu0 %v1964
        %v3297 = vpop.f32.mrf.mxu0
        %v3298 = vadd.f32 %v2829, %v3297
        %v3299 = vpop.f32.mrf.mxu0
        %v3300 = vadd.f32 %v2829, %v3299
        %3301 = vmatmul.bf16.gmra.mxu0 %v2093
        %v3302 = vpop.f32.mrf.mxu0
        %v3303 = vadd.f32 %v2829, %v3302
        %v3304 = vpop.f32.mrf.mxu0
        %v3305 = vadd.f32 %v2829, %v3304
        %3306 = vmatmul.bf16.gmra.mxu0 %v2222
        %v3307 = vpop.f32.mrf.mxu0
        %v3308 = vadd.f32 %v2829, %v3307
        %v3309 = vpop.f32.mrf.mxu0
        %v3310 = vadd.f32 %v2829, %v3309
        %3311 = vmatmul.bf16.gmra.mxu0 %v2351
        %v3312 = vpop.f32.mrf.mxu0
        %v3313 = vadd.f32 %v2829, %v3312
        %v3314 = vpop.f32.mrf.mxu0
        %v3315 = vadd.f32 %v2829, %v3314
        %3316 = vmatmul.bf16.gmra.mxu0 %v2480
        %v3317 = vpop.f32.mrf.mxu0
        %v3318 = vadd.f32 %v2829, %v3317
        %v3319 = vpop.f32.mrf.mxu0
        %v3320 = vadd.f32 %v2829, %v3319
        %3321 = vdwg.mxu0
        %3322 = vmatpush.bf16.msra.mxu0 %v3134
        %3323 = vmatpush.bf16.msra.mxu0 %v3133
        %3324 = vmatpush.bf16.msra.mxu0 %v3132
        %3325 = vmatpush.bf16.msra.mxu0 %v3131
        %3326 = vmatpush.bf16.msra.mxu0 %v3130
        %3327 = vmatpush.bf16.msra.mxu0 %v3129
        %3328 = vmatpush.bf16.msra.mxu0 %v3128
        %3329 = vmatpush.bf16.msra.mxu0 %v3127
        %3330 = vmatmul.bf16.gmra.mxu0 %v1328
        %v3331 = vpop.f32.mrf.mxu0
        %v3332 = vadd.f32 %v3273, %v3331
        %v3333 = vpop.f32.mrf.mxu0
        %v3334 = vadd.f32 %v3275, %v3333
        %3335 = vmatmul.bf16.gmra.mxu0 %v1457
        %v3336 = vpop.f32.mrf.mxu0
        %v3337 = vadd.f32 %v3278, %v3336
        %v3338 = vpop.f32.mrf.mxu0
        %v3339 = vadd.f32 %v3280, %v3338
        %3340 = vmatmul.bf16.gmra.mxu0 %v1586
        %v3341 = vpop.f32.mrf.mxu0
        %v3342 = vadd.f32 %v3283, %v3341
        %v3343 = vpop.f32.mrf.mxu0
        %v3344 = vadd.f32 %v3285, %v3343
        %3345 = vmatmul.bf16.gmra.mxu0 %v1715
        %v3346 = vpop.f32.mrf.mxu0
        %v3347 = vadd.f32 %v3288, %v3346
        %v3348 = vpop.f32.mrf.mxu0
        %v3349 = vadd.f32 %v3290, %v3348
        %3350 = vmatmul.bf16.gmra.mxu0 %v1844
        %v3351 = vpop.f32.mrf.mxu0
        %v3352 = vadd.f32 %v3293, %v3351
        %v3353 = vpop.f32.mrf.mxu0
        %v3354 = vadd.f32 %v3295, %v3353
        %3355 = vmatmul.bf16.gmra.mxu0 %v1973
        %v3356 = vpop.f32.mrf.mxu0
        %v3357 = vadd.f32 %v3298, %v3356
        %v3358 = vpop.f32.mrf.mxu0
        %v3359 = vadd.f32 %v3300, %v3358
        %3360 = vmatmul.bf16.gmra.mxu0 %v2102
        %v3361 = vpop.f32.mrf.mxu0
        %v3362 = vadd.f32 %v3303, %v3361
        %v3363 = vpop.f32.mrf.mxu0
        %v3364 = vadd.f32 %v3305, %v3363
        %3365 = vmatmul.bf16.gmra.mxu0 %v2231
        %v3366 = vpop.f32.mrf.mxu0
        %v3367 = vadd.f32 %v3308, %v3366
        %v3368 = vpop.f32.mrf.mxu0
        %v3369 = vadd.f32 %v3310, %v3368
        %3370 = vmatmul.bf16.gmra.mxu0 %v2360
        %v3371 = vpop.f32.mrf.mxu0
        %v3372 = vadd.f32 %v3313, %v3371
        %v3373 = vpop.f32.mrf.mxu0
        %v3374 = vadd.f32 %v3315, %v3373
        %3375 = vmatmul.bf16.gmra.mxu0 %v2489
        %v3376 = vpop.f32.mrf.mxu0
        %v3377 = vadd.f32 %v3318, %v3376
        %v3378 = vpop.f32.mrf.mxu0
        %v3379 = vadd.f32 %v3320, %v3378
        %3380 = vdwg.mxu0
        %3381 = vmatpush.bf16.msra.mxu0 %v3142
        %3382 = vmatpush.bf16.msra.mxu0 %v3141
        %3383 = vmatpush.bf16.msra.mxu0 %v3140
        %3384 = vmatpush.bf16.msra.mxu0 %v3139
        %3385 = vmatpush.bf16.msra.mxu0 %v3138
        %3386 = vmatpush.bf16.msra.mxu0 %v3137
        %3387 = vmatpush.bf16.msra.mxu0 %v3136
        %3388 = vmatpush.bf16.msra.mxu0 %v3135
        %3389 = vmatmul.bf16.gmra.mxu0 %v1345
        %v3390 = vpop.f32.mrf.mxu0
        %v3391 = vadd.f32 %v3332, %v3390
        %v3392 = vpop.f32.mrf.mxu0
        %v3393 = vadd.f32 %v3334, %v3392
        %3394 = vmatmul.bf16.gmra.mxu0 %v1474
        %v3395 = vpop.f32.mrf.mxu0
        %v3396 = vadd.f32 %v3337, %v3395
        %v3397 = vpop.f32.mrf.mxu0
        %v3398 = vadd.f32 %v3339, %v3397
        %3399 = vmatmul.bf16.gmra.mxu0 %v1603
        %v3400 = vpop.f32.mrf.mxu0
        %v3401 = vadd.f32 %v3342, %v3400
        %v3402 = vpop.f32.mrf.mxu0
        %v3403 = vadd.f32 %v3344, %v3402
        %3404 = vmatmul.bf16.gmra.mxu0 %v1732
        %v3405 = vpop.f32.mrf.mxu0
        %v3406 = vadd.f32 %v3347, %v3405
        %v3407 = vpop.f32.mrf.mxu0
        %v3408 = vadd.f32 %v3349, %v3407
        %3409 = vmatmul.bf16.gmra.mxu0 %v1861
        %v3410 = vpop.f32.mrf.mxu0
        %v3411 = vadd.f32 %v3352, %v3410
        %v3412 = vpop.f32.mrf.mxu0
        %v3413 = vadd.f32 %v3354, %v3412
        %3414 = vmatmul.bf16.gmra.mxu0 %v1990
        %v3415 = vpop.f32.mrf.mxu0
        %v3416 = vadd.f32 %v3357, %v3415
        %v3417 = vpop.f32.mrf.mxu0
        %v3418 = vadd.f32 %v3359, %v3417
        %3419 = vmatmul.bf16.gmra.mxu0 %v2119
        %v3420 = vpop.f32.mrf.mxu0
        %v3421 = vadd.f32 %v3362, %v3420
        %v3422 = vpop.f32.mrf.mxu0
        %v3423 = vadd.f32 %v3364, %v3422
        %3424 = vmatmul.bf16.gmra.mxu0 %v2248
        %v3425 = vpop.f32.mrf.mxu0
        %v3426 = vadd.f32 %v3367, %v3425
        %v3427 = vpop.f32.mrf.mxu0
        %v3428 = vadd.f32 %v3369, %v3427
        %3429 = vmatmul.bf16.gmra.mxu0 %v2377
        %v3430 = vpop.f32.mrf.mxu0
        %v3431 = vadd.f32 %v3372, %v3430
        %v3432 = vpop.f32.mrf.mxu0
        %v3433 = vadd.f32 %v3374, %v3432
        %3434 = vmatmul.bf16.gmra.mxu0 %v2506
        %v3435 = vpop.f32.mrf.mxu0
        %v3436 = vadd.f32 %v3377, %v3435
        %v3437 = vpop.f32.mrf.mxu0
        %v3438 = vadd.f32 %v3379, %v3437
        %3439 = vdwg.mxu0
        %3440 = vmatpush.bf16.msra.mxu0 %v3150
        %3441 = vmatpush.bf16.msra.mxu0 %v3149
        %3442 = vmatpush.bf16.msra.mxu0 %v3148
        %3443 = vmatpush.bf16.msra.mxu0 %v3147
        %3444 = vmatpush.bf16.msra.mxu0 %v3146
        %3445 = vmatpush.bf16.msra.mxu0 %v3145
        %3446 = vmatpush.bf16.msra.mxu0 %v3144
        %3447 = vmatpush.bf16.msra.mxu0 %v3143
        %3448 = vmatmul.bf16.gmra.mxu0 %v1362
        %v3449 = vpop.f32.mrf.mxu0
        %v3450 = vadd.f32 %v3391, %v3449
        %v3451 = vpop.f32.mrf.mxu0
        %v3452 = vadd.f32 %v3393, %v3451
        %3453 = vmatmul.bf16.gmra.mxu0 %v1491
        %v3454 = vpop.f32.mrf.mxu0
        %v3455 = vadd.f32 %v3396, %v3454
        %v3456 = vpop.f32.mrf.mxu0
        %v3457 = vadd.f32 %v3398, %v3456
        %3458 = vmatmul.bf16.gmra.mxu0 %v1620
        %v3459 = vpop.f32.mrf.mxu0
        %v3460 = vadd.f32 %v3401, %v3459
        %v3461 = vpop.f32.mrf.mxu0
        %v3462 = vadd.f32 %v3403, %v3461
        %3463 = vmatmul.bf16.gmra.mxu0 %v1749
        %v3464 = vpop.f32.mrf.mxu0
        %v3465 = vadd.f32 %v3406, %v3464
        %v3466 = vpop.f32.mrf.mxu0
        %v3467 = vadd.f32 %v3408, %v3466
        %3468 = vmatmul.bf16.gmra.mxu0 %v1878
        %v3469 = vpop.f32.mrf.mxu0
        %v3470 = vadd.f32 %v3411, %v3469
        %v3471 = vpop.f32.mrf.mxu0
        %v3472 = vadd.f32 %v3413, %v3471
        %3473 = vmatmul.bf16.gmra.mxu0 %v2007
        %v3474 = vpop.f32.mrf.mxu0
        %v3475 = vadd.f32 %v3416, %v3474
        %v3476 = vpop.f32.mrf.mxu0
        %v3477 = vadd.f32 %v3418, %v3476
        %3478 = vmatmul.bf16.gmra.mxu0 %v2136
        %v3479 = vpop.f32.mrf.mxu0
        %v3480 = vadd.f32 %v3421, %v3479
        %v3481 = vpop.f32.mrf.mxu0
        %v3482 = vadd.f32 %v3423, %v3481
        %3483 = vmatmul.bf16.gmra.mxu0 %v2265
        %v3484 = vpop.f32.mrf.mxu0
        %v3485 = vadd.f32 %v3426, %v3484
        %v3486 = vpop.f32.mrf.mxu0
        %v3487 = vadd.f32 %v3428, %v3486
        %3488 = vmatmul.bf16.gmra.mxu0 %v2394
        %v3489 = vpop.f32.mrf.mxu0
        %v3490 = vadd.f32 %v3431, %v3489
        %v3491 = vpop.f32.mrf.mxu0
        %v3492 = vadd.f32 %v3433, %v3491
        %3493 = vmatmul.bf16.gmra.mxu0 %v2523
        %v3494 = vpop.f32.mrf.mxu0
        %v3495 = vadd.f32 %v3436, %v3494
        %v3496 = vpop.f32.mrf.mxu0
        %v3497 = vadd.f32 %v3438, %v3496
        %3498 = vdwg.mxu0
        %3499 = vmatpush.bf16.msra.mxu0 %v3158
        %3500 = vmatpush.bf16.msra.mxu0 %v3157
        %3501 = vmatpush.bf16.msra.mxu0 %v3156
        %3502 = vmatpush.bf16.msra.mxu0 %v3155
        %3503 = vmatpush.bf16.msra.mxu0 %v3154
        %3504 = vmatpush.bf16.msra.mxu0 %v3153
        %3505 = vmatpush.bf16.msra.mxu0 %v3152
        %3506 = vmatpush.bf16.msra.mxu0 %v3151
        %3507 = vmatmul.bf16.gmra.mxu0 %v1371
        %v3508 = vpop.f32.mrf.mxu0
        %v3509 = vadd.f32 %v3450, %v3508
        %v3510 = vpop.f32.mrf.mxu0
        %v3511 = vadd.f32 %v3452, %v3510
        %3512 = vmatmul.bf16.gmra.mxu0 %v1500
        %v3513 = vpop.f32.mrf.mxu0
        %v3514 = vadd.f32 %v3455, %v3513
        %v3515 = vpop.f32.mrf.mxu0
        %v3516 = vadd.f32 %v3457, %v3515
        %3517 = vmatmul.bf16.gmra.mxu0 %v1629
        %v3518 = vpop.f32.mrf.mxu0
        %v3519 = vadd.f32 %v3460, %v3518
        %v3520 = vpop.f32.mrf.mxu0
        %v3521 = vadd.f32 %v3462, %v3520
        %3522 = vmatmul.bf16.gmra.mxu0 %v1758
        %v3523 = vpop.f32.mrf.mxu0
        %v3524 = vadd.f32 %v3465, %v3523
        %v3525 = vpop.f32.mrf.mxu0
        %v3526 = vadd.f32 %v3467, %v3525
        %3527 = vmatmul.bf16.gmra.mxu0 %v1887
        %v3528 = vpop.f32.mrf.mxu0
        %v3529 = vadd.f32 %v3470, %v3528
        %v3530 = vpop.f32.mrf.mxu0
        %v3531 = vadd.f32 %v3472, %v3530
        %3532 = vmatmul.bf16.gmra.mxu0 %v2016
        %v3533 = vpop.f32.mrf.mxu0
        %v3534 = vadd.f32 %v3475, %v3533
        %v3535 = vpop.f32.mrf.mxu0
        %v3536 = vadd.f32 %v3477, %v3535
        %3537 = vmatmul.bf16.gmra.mxu0 %v2145
        %v3538 = vpop.f32.mrf.mxu0
        %v3539 = vadd.f32 %v3480, %v3538
        %v3540 = vpop.f32.mrf.mxu0
        %v3541 = vadd.f32 %v3482, %v3540
        %3542 = vmatmul.bf16.gmra.mxu0 %v2274
        %v3543 = vpop.f32.mrf.mxu0
        %v3544 = vadd.f32 %v3485, %v3543
        %v3545 = vpop.f32.mrf.mxu0
        %v3546 = vadd.f32 %v3487, %v3545
        %3547 = vmatmul.bf16.gmra.mxu0 %v2403
        %v3548 = vpop.f32.mrf.mxu0
        %v3549 = vadd.f32 %v3490, %v3548
        %v3550 = vpop.f32.mrf.mxu0
        %v3551 = vadd.f32 %v3492, %v3550
        %3552 = vmatmul.bf16.gmra.mxu0 %v2532
        %v3553 = vpop.f32.mrf.mxu0
        %v3554 = vadd.f32 %v3495, %v3553
        %v3555 = vpop.f32.mrf.mxu0
        %v3556 = vadd.f32 %v3497, %v3555
        %3557 = vdwg.mxu0
        %3558 = vmatpush.bf16.msra.mxu0 %v3166
        %3559 = vmatpush.bf16.msra.mxu0 %v3165
        %3560 = vmatpush.bf16.msra.mxu0 %v3164
        %3561 = vmatpush.bf16.msra.mxu0 %v3163
        %3562 = vmatpush.bf16.msra.mxu0 %v3162
        %3563 = vmatpush.bf16.msra.mxu0 %v3161
        %3564 = vmatpush.bf16.msra.mxu0 %v3160
        %3565 = vmatpush.bf16.msra.mxu0 %v3159
        %3566 = vmatmul.bf16.gmra.mxu0 %v1388
        %v3567 = vpop.f32.mrf.mxu0
        %v3568 = vadd.f32 %v3509, %v3567
        %v3569 = vpop.f32.mrf.mxu0
        %v3570 = vadd.f32 %v3511, %v3569
        %3571 = vmatmul.bf16.gmra.mxu0 %v1517
        %v3572 = vpop.f32.mrf.mxu0
        %v3573 = vadd.f32 %v3514, %v3572
        %v3574 = vpop.f32.mrf.mxu0
        %v3575 = vadd.f32 %v3516, %v3574
        %3576 = vmatmul.bf16.gmra.mxu0 %v1646
        %v3577 = vpop.f32.mrf.mxu0
        %v3578 = vadd.f32 %v3519, %v3577
        %v3579 = vpop.f32.mrf.mxu0
        %v3580 = vadd.f32 %v3521, %v3579
        %3581 = vmatmul.bf16.gmra.mxu0 %v1775
        %v3582 = vpop.f32.mrf.mxu0
        %v3583 = vadd.f32 %v3524, %v3582
        %v3584 = vpop.f32.mrf.mxu0
        %v3585 = vadd.f32 %v3526, %v3584
        %3586 = vmatmul.bf16.gmra.mxu0 %v1904
        %v3587 = vpop.f32.mrf.mxu0
        %v3588 = vadd.f32 %v3529, %v3587
        %v3589 = vpop.f32.mrf.mxu0
        %v3590 = vadd.f32 %v3531, %v3589
        %3591 = vmatmul.bf16.gmra.mxu0 %v2033
        %v3592 = vpop.f32.mrf.mxu0
        %v3593 = vadd.f32 %v3534, %v3592
        %v3594 = vpop.f32.mrf.mxu0
        %v3595 = vadd.f32 %v3536, %v3594
        %3596 = vmatmul.bf16.gmra.mxu0 %v2162
        %v3597 = vpop.f32.mrf.mxu0
        %v3598 = vadd.f32 %v3539, %v3597
        %v3599 = vpop.f32.mrf.mxu0
        %v3600 = vadd.f32 %v3541, %v3599
        %3601 = vmatmul.bf16.gmra.mxu0 %v2291
        %v3602 = vpop.f32.mrf.mxu0
        %v3603 = vadd.f32 %v3544, %v3602
        %v3604 = vpop.f32.mrf.mxu0
        %v3605 = vadd.f32 %v3546, %v3604
        %3606 = vmatmul.bf16.gmra.mxu0 %v2420
        %v3607 = vpop.f32.mrf.mxu0
        %v3608 = vadd.f32 %v3549, %v3607
        %v3609 = vpop.f32.mrf.mxu0
        %v3610 = vadd.f32 %v3551, %v3609
        %3611 = vmatmul.bf16.gmra.mxu0 %v2549
        %v3612 = vpop.f32.mrf.mxu0
        %v3613 = vadd.f32 %v3554, %v3612
        %v3614 = vpop.f32.mrf.mxu0
        %v3615 = vadd.f32 %v3556, %v3614
        %3616 = vdwg.mxu0
        %3617 = vmatpush.bf16.msra.mxu0 %v3174
        %3618 = vmatpush.bf16.msra.mxu0 %v3173
        %3619 = vmatpush.bf16.msra.mxu0 %v3172
        %3620 = vmatpush.bf16.msra.mxu0 %v3171
        %3621 = vmatpush.bf16.msra.mxu0 %v3170
        %3622 = vmatpush.bf16.msra.mxu0 %v3169
        %3623 = vmatpush.bf16.msra.mxu0 %v3168
        %3624 = vmatpush.bf16.msra.mxu0 %v3167
        %3625 = vmatmul.bf16.gmra.mxu0 %v1405
        %v3626 = vpop.f32.mrf.mxu0
        %v3627 = vadd.f32 %v3568, %v3626
        %v3628 = vpop.f32.mrf.mxu0
        %v3629 = vadd.f32 %v3570, %v3628
        %3630 = vmatmul.bf16.gmra.mxu0 %v1534
        %v3631 = vpop.f32.mrf.mxu0
        %v3632 = vadd.f32 %v3573, %v3631
        %v3633 = vpop.f32.mrf.mxu0
        %v3634 = vadd.f32 %v3575, %v3633
        %3635 = vmatmul.bf16.gmra.mxu0 %v1663
        %v3636 = vpop.f32.mrf.mxu0
        %v3637 = vadd.f32 %v3578, %v3636
        %v3638 = vpop.f32.mrf.mxu0
        %v3639 = vadd.f32 %v3580, %v3638
        %3640 = vmatmul.bf16.gmra.mxu0 %v1792
        %v3641 = vpop.f32.mrf.mxu0
        %v3642 = vadd.f32 %v3583, %v3641
        %v3643 = vpop.f32.mrf.mxu0
        %v3644 = vadd.f32 %v3585, %v3643
        %3645 = vmatmul.bf16.gmra.mxu0 %v1921
        %v3646 = vpop.f32.mrf.mxu0
        %v3647 = vadd.f32 %v3588, %v3646
        %v3648 = vpop.f32.mrf.mxu0
        %v3649 = vadd.f32 %v3590, %v3648
        %3650 = vmatmul.bf16.gmra.mxu0 %v2050
        %v3651 = vpop.f32.mrf.mxu0
        %v3652 = vadd.f32 %v3593, %v3651
        %v3653 = vpop.f32.mrf.mxu0
        %v3654 = vadd.f32 %v3595, %v3653
        %3655 = vmatmul.bf16.gmra.mxu0 %v2179
        %v3656 = vpop.f32.mrf.mxu0
        %v3657 = vadd.f32 %v3598, %v3656
        %v3658 = vpop.f32.mrf.mxu0
        %v3659 = vadd.f32 %v3600, %v3658
        %3660 = vmatmul.bf16.gmra.mxu0 %v2308
        %v3661 = vpop.f32.mrf.mxu0
        %v3662 = vadd.f32 %v3603, %v3661
        %v3663 = vpop.f32.mrf.mxu0
        %v3664 = vadd.f32 %v3605, %v3663
        %3665 = vmatmul.bf16.gmra.mxu0 %v2437
        %v3666 = vpop.f32.mrf.mxu0
        %v3667 = vadd.f32 %v3608, %v3666
        %v3668 = vpop.f32.mrf.mxu0
        %v3669 = vadd.f32 %v3610, %v3668
        %3670 = vmatmul.bf16.gmra.mxu0 %v2566
        %v3671 = vpop.f32.mrf.mxu0
        %v3672 = vadd.f32 %v3613, %v3671
        %v3673 = vpop.f32.mrf.mxu0
        %v3674 = vadd.f32 %v3615, %v3673
        %3675 = vdwg.mxu0
        %3676 = vmatpush.bf16.msra.mxu0 %v3182
        %3677 = vmatpush.bf16.msra.mxu0 %v3181
        %3678 = vmatpush.bf16.msra.mxu0 %v3180
        %3679 = vmatpush.bf16.msra.mxu0 %v3179
        %3680 = vmatpush.bf16.msra.mxu0 %v3178
        %3681 = vmatpush.bf16.msra.mxu0 %v3177
        %3682 = vmatpush.bf16.msra.mxu0 %v3176
        %3683 = vmatpush.bf16.msra.mxu0 %v3175
        %3684 = vmatmul.bf16.gmra.mxu0 %v1414
        %v3685 = vpop.f32.mrf.mxu0
        %v3686 = vadd.f32 %v3627, %v3685
        %v3687 = vpop.f32.mrf.mxu0
        %v3688 = vadd.f32 %v3629, %v3687
        %3689 = vmatmul.bf16.gmra.mxu0 %v1543
        %v3690 = vpop.f32.mrf.mxu0
        %v3691 = vadd.f32 %v3632, %v3690
        %v3692 = vpop.f32.mrf.mxu0
        %v3693 = vadd.f32 %v3634, %v3692
        %3694 = vmatmul.bf16.gmra.mxu0 %v1672
        %v3695 = vpop.f32.mrf.mxu0
        %v3696 = vadd.f32 %v3637, %v3695
        %v3697 = vpop.f32.mrf.mxu0
        %v3698 = vadd.f32 %v3639, %v3697
        %3699 = vmatmul.bf16.gmra.mxu0 %v1801
        %v3700 = vpop.f32.mrf.mxu0
        %v3701 = vadd.f32 %v3642, %v3700
        %v3702 = vpop.f32.mrf.mxu0
        %v3703 = vadd.f32 %v3644, %v3702
        %3704 = vmatmul.bf16.gmra.mxu0 %v1930
        %v3705 = vpop.f32.mrf.mxu0
        %v3706 = vadd.f32 %v3647, %v3705
        %v3707 = vpop.f32.mrf.mxu0
        %v3708 = vadd.f32 %v3649, %v3707
        %3709 = vmatmul.bf16.gmra.mxu0 %v2059
        %v3710 = vpop.f32.mrf.mxu0
        %v3711 = vadd.f32 %v3652, %v3710
        %v3712 = vpop.f32.mrf.mxu0
        %v3713 = vadd.f32 %v3654, %v3712
        %3714 = vmatmul.bf16.gmra.mxu0 %v2188
        %v3715 = vpop.f32.mrf.mxu0
        %v3716 = vadd.f32 %v3657, %v3715
        %v3717 = vpop.f32.mrf.mxu0
        %v3718 = vadd.f32 %v3659, %v3717
        %3719 = vmatmul.bf16.gmra.mxu0 %v2317
        %v3720 = vpop.f32.mrf.mxu0
        %v3721 = vadd.f32 %v3662, %v3720
        %v3722 = vpop.f32.mrf.mxu0
        %v3723 = vadd.f32 %v3664, %v3722
        %3724 = vmatmul.bf16.gmra.mxu0 %v2446
        %v3725 = vpop.f32.mrf.mxu0
        %v3726 = vadd.f32 %v3667, %v3725
        %v3727 = vpop.f32.mrf.mxu0
        %v3728 = vadd.f32 %v3669, %v3727
        %3729 = vmatmul.bf16.gmra.mxu0 %v2575
        %v3730 = vpop.f32.mrf.mxu0
        %v3731 = vadd.f32 %v3672, %v3730
        %v3732 = vpop.f32.mrf.mxu0
        %v3733 = vadd.f32 %v3674, %v3732
        %3734 = vdwg.mxu0
        %3735 = vmatpush.bf16.msra.mxu0 %v3190
        %3736 = vmatpush.bf16.msra.mxu0 %v3189
        %3737 = vmatpush.bf16.msra.mxu0 %v3188
        %3738 = vmatpush.bf16.msra.mxu0 %v3187
        %3739 = vmatpush.bf16.msra.mxu0 %v3186
        %3740 = vmatpush.bf16.msra.mxu0 %v3185
        %3741 = vmatpush.bf16.msra.mxu0 %v3184
        %3742 = vmatpush.bf16.msra.mxu0 %v3183
        %3743 = vmatmul.bf16.gmra.mxu0 %v1431
        %v3744 = vpop.f32.mrf.mxu0
        %v3745 = vadd.f32 %v3686, %v3744
        %v3746 = vpop.f32.mrf.mxu0
        %v3747 = vadd.f32 %v3688, %v3746
        %3748 = vmatmul.bf16.gmra.mxu0 %v1560
        %v3749 = vpop.f32.mrf.mxu0
        %v3750 = vadd.f32 %v3691, %v3749
        %v3751 = vpop.f32.mrf.mxu0
        %v3752 = vadd.f32 %v3693, %v3751
        %3753 = vmatmul.bf16.gmra.mxu0 %v1689
        %v3754 = vpop.f32.mrf.mxu0
        %v3755 = vadd.f32 %v3696, %v3754
        %v3756 = vpop.f32.mrf.mxu0
        %v3757 = vadd.f32 %v3698, %v3756
        %3758 = vmatmul.bf16.gmra.mxu0 %v1818
        %v3759 = vpop.f32.mrf.mxu0
        %v3760 = vadd.f32 %v3701, %v3759
        %v3761 = vpop.f32.mrf.mxu0
        %v3762 = vadd.f32 %v3703, %v3761
        %3763 = vmatmul.bf16.gmra.mxu0 %v1947
        %v3764 = vpop.f32.mrf.mxu0
        %v3765 = vadd.f32 %v3706, %v3764
        %v3766 = vpop.f32.mrf.mxu0
        %v3767 = vadd.f32 %v3708, %v3766
        %3768 = vmatmul.bf16.gmra.mxu0 %v2076
        %v3769 = vpop.f32.mrf.mxu0
        %v3770 = vadd.f32 %v3711, %v3769
        %v3771 = vpop.f32.mrf.mxu0
        %v3772 = vadd.f32 %v3713, %v3771
        %3773 = vmatmul.bf16.gmra.mxu0 %v2205
        %v3774 = vpop.f32.mrf.mxu0
        %v3775 = vadd.f32 %v3716, %v3774
        %v3776 = vpop.f32.mrf.mxu0
        %v3777 = vadd.f32 %v3718, %v3776
        %3778 = vmatmul.bf16.gmra.mxu0 %v2334
        %v3779 = vpop.f32.mrf.mxu0
        %v3780 = vadd.f32 %v3721, %v3779
        %v3781 = vpop.f32.mrf.mxu0
        %v3782 = vadd.f32 %v3723, %v3781
        %3783 = vmatmul.bf16.gmra.mxu0 %v2463
        %v3784 = vpop.f32.mrf.mxu0
        %v3785 = vadd.f32 %v3726, %v3784
        %v3786 = vpop.f32.mrf.mxu0
        %v3787 = vadd.f32 %v3728, %v3786
        %3788 = vmatmul.bf16.gmra.mxu0 %v2592
        %v3789 = vpop.f32.mrf.mxu0
        %v3790 = vadd.f32 %v3731, %v3789
        %v3791 = vpop.f32.mrf.mxu0
        %v3792 = vadd.f32 %v3733, %v3791
        %3793 = vdwg.mxu0
        %v3794 = vmax.f32 %v3745, 0.0
        %v3795 = vmax.f32 %v3747, 0.0
        %v3796 = vmax.f32 %v3750, 0.0
        %v3797 = vmax.f32 %v3752, 0.0
        %v3798 = vmax.f32 %v3755, 0.0
        %v3799 = vmax.f32 %v3757, 0.0
        %v3800 = vmax.f32 %v3760, 0.0
        %v3801 = vmax.f32 %v3762, 0.0
        %v3802 = vmax.f32 %v3765, 0.0
        %v3803 = vmax.f32 %v3767, 0.0
        %v3804 = vmax.f32 %v3770, 0.0
        %v3805 = vmax.f32 %v3772, 0.0
        %v3806 = vmax.f32 %v3775, 0.0
        %v3807 = vmax.f32 %v3777, 0.0
        %v3808 = vmax.f32 %v3780, 0.0
        %v3809 = vmax.f32 %v3782, 0.0
        %v3810 = vmax.f32 %v3785, 0.0
        %v3811 = vmax.f32 %v3787, 0.0
        %v3812 = vmax.f32 %v3790, 0.0
        %v3813 = vmax.f32 %v3792, 0.0
        %v3814 = vpack.c.bf16 %v3794, %v3794
        %v3815 = vpack.c.bf16 %v3795, %v3795
        %v3816 = vpack.c.bf16 %v3796, %v3796
        %v3817 = vpack.c.bf16 %v3797, %v3797
        %v3818 = vpack.c.bf16 %v3798, %v3798
        %v3819 = vpack.c.bf16 %v3799, %v3799
        %v3820 = vpack.c.bf16 %v3800, %v3800
        %v3821 = vpack.c.bf16 %v3801, %v3801
        %v3822 = vpack.c.bf16 %v3802, %v3802
        %v3823 = vpack.c.bf16 %v3803, %v3803
        %v3824 = vpack.c.bf16 %v3804, %v3804
        %v3825 = vpack.c.bf16 %v3805, %v3805
        %v3826 = vpack.c.bf16 %v3806, %v3806
        %v3827 = vpack.c.bf16 %v3807, %v3807
        %v3828 = vpack.c.bf16 %v3808, %v3808
        %v3829 = vpack.c.bf16 %v3809, %v3809
        %v3830 = vpack.c.bf16 %v3810, %v3810
        %v3831 = vpack.c.bf16 %v3811, %v3811
        %v3832 = vpack.c.bf16 %v3812, %v3812
        %v3833 = vpack.c.bf16 %v3813, %v3813
        %3834 = vst [vmem:[#allocation3 + $0x8] sm:$0xf] %v3814
        %3835 = vst [vmem:[#allocation3 + $0xc] sm:$0xf] %v3815
        %3836 = vst [vmem:[#allocation3 + $0x20] sm:$0xf] %v3816
        %3837 = vst [vmem:[#allocation3 + $0x24] sm:$0xf] %v3817
        %3838 = vst [vmem:[#allocation3 + $0x38] sm:$0xf] %v3818
        %3839 = vst [vmem:[#allocation3 + $0x3c] sm:$0xf] %v3819
        %3840 = vst [vmem:[#allocation3 + $0x50] sm:$0xf] %v3820
        %3841 = vst [vmem:[#allocation3 + $0x54] sm:$0xf] %v3821
        %3842 = vst [vmem:[#allocation3 + $0x68] sm:$0xf] %v3822
        %3843 = vst [vmem:[#allocation3 + $0x6c] sm:$0xf] %v3823
        %3844 = vst [vmem:[#allocation3 + $0x80] sm:$0xf] %v3824
        %3845 = vst [vmem:[#allocation3 + $0x84] sm:$0xf] %v3825
        %3846 = vst [vmem:[#allocation3 + $0x98] sm:$0xf] %v3826
        %3847 = vst [vmem:[#allocation3 + $0x9c] sm:$0xf] %v3827
        %3848 = vst [vmem:[#allocation3 + $0xb0] sm:$0xf] %v3828
        %3849 = vst [vmem:[#allocation3 + $0xb4] sm:$0xf] %v3829
        %3850 = vst [vmem:[#allocation3 + $0xc8] sm:$0xf] %v3830
        %3851 = vst [vmem:[#allocation3 + $0xcc] sm:$0xf] %v3831
        %3852 = vst [vmem:[#allocation3 + $0xe0] sm:$0xf] %v3832
        %3853 = vst [vmem:[#allocation3 + $0xe4] sm:$0xf] %v3833
        // Predicated region
        $region69: #{tpu_custom_call.1} parent=39 // pred_check
          %p3854 = pneg %p434
        $region70: #{tpu_custom_call.1} parent=39 // pred_check_branch
          %3856 = sbr.rel (%p3854) target = $region72
        $region71: #{tpu_custom_call.1} parent=39 // pred_region
          %3857 = vst [vmem:[#allocation3 + $0x8] sm:$0xf] 0
          %3858 = vst [vmem:[#allocation3 + $0xc] sm:$0xf] 0
        $region72: #{tpu_custom_call.1} parent=39 // pred_fallthru
          _
        // Predicated region
        $region73: #{tpu_custom_call.1} parent=39 // pred_check
          %p3859 = pneg %p461
        $region74: #{tpu_custom_call.1} parent=39 // pred_check_branch
          %3861 = sbr.rel (%p3859) target = $region76
        $region75: #{tpu_custom_call.1} parent=39 // pred_region
          %s3862 = scalar_lea.vmem [#allocation3], 216
          %3863 = vst [vmem:[%s3862 + $0x8] sm:$0xf] 0
          %3864 = vst [vmem:[%s3862 + $0xc] sm:$0xf] 0
        $region76: #{tpu_custom_call.1} parent=39 // pred_fallthru
          _
        %v3865 = vld [vmem:[#allocation3 + $0x4] sm:$0x8]
        %v3866 = vld [vmem:[#allocation3 + $0x8] sm:$0xf]
        %v3867 = vld [vmem:[#allocation3 + $0xc] sm:$0xf]
        %v3868 = vld [vmem:[#allocation3 + $0x1c] sm:$0x8]
        %v3869 = vld [vmem:[#allocation3 + $0x20] sm:$0xf]
        %v3870 = vld [vmem:[#allocation3 + $0x24] sm:$0xf]
        %v3871 = vld [vmem:[#allocation3 + $0x34] sm:$0x8]
        %v3872 = vld [vmem:[#allocation3 + $0x38] sm:$0xf]
        %v3873 = vld [vmem:[#allocation3 + $0x3c] sm:$0xf]
        %v3874 = vld [vmem:[#allocation3 + $0x4c] sm:$0x8]
        %v3875 = vld [vmem:[#allocation3 + $0x50] sm:$0xf]
        %v3876 = vld [vmem:[#allocation3 + $0x54] sm:$0xf]
        %v3877 = vld [vmem:[#allocation3 + $0x64] sm:$0x8]
        %v3878 = vld [vmem:[#allocation3 + $0x68] sm:$0xf]
        %v3879 = vld [vmem:[#allocation3 + $0x6c] sm:$0xf]
        %v3880 = vld [vmem:[#allocation3 + $0x7c] sm:$0x8]
        %v3881 = vld [vmem:[#allocation3 + $0x80] sm:$0xf]
        %v3882 = vld [vmem:[#allocation3 + $0x84] sm:$0xf]
        %v3883 = vld [vmem:[#allocation3 + $0x94] sm:$0x8]
        %v3884 = vld [vmem:[#allocation3 + $0x98] sm:$0xf]
        %v3885 = vld [vmem:[#allocation3 + $0x9c] sm:$0xf]
        %v3886 = vld [vmem:[#allocation3 + $0xac] sm:$0x8]
        %v3887 = vld [vmem:[#allocation3 + $0xb0] sm:$0xf]
        %v3888 = vld [vmem:[#allocation3 + $0xb4] sm:$0xf]
        %v3889 = vld [vmem:[#allocation3 + $0x10] sm:$0x1]
        %v3890 = vld [vmem:[#allocation3 + $0x28] sm:$0x1]
        %v3891 = vld [vmem:[#allocation3 + $0x40] sm:$0x1]
        %v3892 = vld [vmem:[#allocation3 + $0x58] sm:$0x1]
        %v3893 = vld [vmem:[#allocation3 + $0x70] sm:$0x1]
        %v3894 = vld [vmem:[#allocation3 + $0x88] sm:$0x1]
        %v3895 = vld [vmem:[#allocation3 + $0xa0] sm:$0x1]
        %v3896 = vld [vmem:[#allocation3 + $0xb8] sm:$0x1]
        %s3897 = scalar_lea.vmem [#allocation3], 24
        %v3898 = vld [vmem:[%s3897 + $0x4] sm:$0x8]
        %v3899 = vld [vmem:[%s3897 + $0x8] sm:$0xf]
        %v3900 = vld [vmem:[%s3897 + $0xc] sm:$0xf]
        %v3901 = vld [vmem:[%s3897 + $0x1c] sm:$0x8]
        %v3902 = vld [vmem:[%s3897 + $0x20] sm:$0xf]
        %v3903 = vld [vmem:[%s3897 + $0x24] sm:$0xf]
        %v3904 = vld [vmem:[%s3897 + $0x34] sm:$0x8]
        %v3905 = vld [vmem:[%s3897 + $0x38] sm:$0xf]
        %v3906 = vld [vmem:[%s3897 + $0x3c] sm:$0xf]
        %v3907 = vld [vmem:[%s3897 + $0x4c] sm:$0x8]
        %v3908 = vld [vmem:[%s3897 + $0x50] sm:$0xf]
        %v3909 = vld [vmem:[%s3897 + $0x54] sm:$0xf]
        %v3910 = vld [vmem:[%s3897 + $0x64] sm:$0x8]
        %v3911 = vld [vmem:[%s3897 + $0x68] sm:$0xf]
        %v3912 = vld [vmem:[%s3897 + $0x6c] sm:$0xf]
        %v3913 = vld [vmem:[%s3897 + $0x7c] sm:$0x8]
        %v3914 = vld [vmem:[%s3897 + $0x80] sm:$0xf]
        %v3915 = vld [vmem:[%s3897 + $0x84] sm:$0xf]
        %v3916 = vld [vmem:[%s3897 + $0x94] sm:$0x8]
        %v3917 = vld [vmem:[%s3897 + $0x98] sm:$0xf]
        %v3918 = vld [vmem:[%s3897 + $0x9c] sm:$0xf]
        %v3919 = vld [vmem:[%s3897 + $0xac] sm:$0x8]
        %v3920 = vld [vmem:[%s3897 + $0xb0] sm:$0xf]
        %v3921 = vld [vmem:[%s3897 + $0xb4] sm:$0xf]
        %v3922 = vld [vmem:[%s3897 + $0x10] sm:$0x1]
        %v3923 = vld [vmem:[%s3897 + $0x28] sm:$0x1]
        %v3924 = vld [vmem:[%s3897 + $0x40] sm:$0x1]
        %v3925 = vld [vmem:[%s3897 + $0x58] sm:$0x1]
        %v3926 = vld [vmem:[%s3897 + $0x70] sm:$0x1]
        %v3927 = vld [vmem:[%s3897 + $0x88] sm:$0x1]
        %v3928 = vld [vmem:[%s3897 + $0xa0] sm:$0x1]
        %v3929 = vld [vmem:[%s3897 + $0xb8] sm:$0x1]
        %s3930 = scalar_lea.vmem [#allocation3], 48
        %v3931 = vld [vmem:[%s3930 + $0x4] sm:$0x8]
        %v3932 = vld [vmem:[%s3930 + $0x8] sm:$0xf]
        %v3933 = vld [vmem:[%s3930 + $0xc] sm:$0xf]
        %v3934 = vld [vmem:[%s3930 + $0x1c] sm:$0x8]
        %v3935 = vld [vmem:[%s3930 + $0x20] sm:$0xf]
        %v3936 = vld [vmem:[%s3930 + $0x24] sm:$0xf]
        %v3937 = vld [vmem:[%s3930 + $0x34] sm:$0x8]
        %v3938 = vld [vmem:[%s3930 + $0x38] sm:$0xf]
        %v3939 = vld [vmem:[%s3930 + $0x3c] sm:$0xf]
        %v3940 = vld [vmem:[%s3930 + $0x4c] sm:$0x8]
        %v3941 = vld [vmem:[%s3930 + $0x50] sm:$0xf]
        %v3942 = vld [vmem:[%s3930 + $0x54] sm:$0xf]
        %v3943 = vld [vmem:[%s3930 + $0x64] sm:$0x8]
        %v3944 = vld [vmem:[%s3930 + $0x68] sm:$0xf]
        %v3945 = vld [vmem:[%s3930 + $0x6c] sm:$0xf]
        %v3946 = vld [vmem:[%s3930 + $0x7c] sm:$0x8]
        %v3947 = vld [vmem:[%s3930 + $0x80] sm:$0xf]
        %v3948 = vld [vmem:[%s3930 + $0x84] sm:$0xf]
        %v3949 = vld [vmem:[%s3930 + $0x94] sm:$0x8]
        %v3950 = vld [vmem:[%s3930 + $0x98] sm:$0xf]
        %v3951 = vld [vmem:[%s3930 + $0x9c] sm:$0xf]
        %v3952 = vld [vmem:[%s3930 + $0xac] sm:$0x8]
        %v3953 = vld [vmem:[%s3930 + $0xb0] sm:$0xf]
        %v3954 = vld [vmem:[%s3930 + $0xb4] sm:$0xf]
        %v3955 = vld [vmem:[%s3930 + $0x10] sm:$0x1]
        %v3956 = vld [vmem:[%s3930 + $0x28] sm:$0x1]
        %v3957 = vld [vmem:[%s3930 + $0x40] sm:$0x1]
        %v3958 = vld [vmem:[%s3930 + $0x58] sm:$0x1]
        %v3959 = vld [vmem:[%s3930 + $0x70] sm:$0x1]
        %v3960 = vld [vmem:[%s3930 + $0x88] sm:$0x1]
        %v3961 = vld [vmem:[%s3930 + $0xa0] sm:$0x1]
        %v3962 = vld [vmem:[%s3930 + $0xb8] sm:$0x1]
        %v3987 = vunpack.c.l.b16 %v3865
        %v3988 = vunpack.c.l.b16 %v3866
        %v3989 = vunpack.c.l.b16 %v3867
        %v3990 = vunpack.c.l.b16 %v3868
        %v3991 = vunpack.c.l.b16 %v3869
        %v3992 = vunpack.c.l.b16 %v3870
        %v3993 = vunpack.c.l.b16 %v3871
        %v3994 = vunpack.c.l.b16 %v3872
        %v3995 = vunpack.c.l.b16 %v3873
        %v3996 = vunpack.c.l.b16 %v3874
        %v3997 = vunpack.c.l.b16 %v3875
        %v3998 = vunpack.c.l.b16 %v3876
        %v3999 = vunpack.c.l.b16 %v3877
        %v4000 = vunpack.c.l.b16 %v3878
        %v4001 = vunpack.c.l.b16 %v3879
        %v4002 = vunpack.c.l.b16 %v3880
        %v4003 = vunpack.c.l.b16 %v3881
        %v4004 = vunpack.c.l.b16 %v3882
        %v4005 = vunpack.c.l.b16 %v3883
        %v4006 = vunpack.c.l.b16 %v3884
        %v4007 = vunpack.c.l.b16 %v3885
        %v4008 = vunpack.c.l.b16 %v3886
        %v4009 = vunpack.c.l.b16 %v3887
        %v4010 = vunpack.c.l.b16 %v3888
        %v4011 = vpack.c.b16 %v3988, %v3987
        %v4012 = vpack.c.b16 %v3989, %v3989
        %v4013 = vpack.c.b16 %v3991, %v3990
        %v4014 = vpack.c.b16 %v3992, %v3992
        %v4015 = vpack.c.b16 %v3994, %v3993
        %v4016 = vpack.c.b16 %v3995, %v3995
        %v4017 = vpack.c.b16 %v3997, %v3996
        %v4018 = vpack.c.b16 %v3998, %v3998
        %v4019 = vpack.c.b16 %v4000, %v3999
        %v4020 = vpack.c.b16 %v4001, %v4001
        %v4021 = vpack.c.b16 %v4003, %v4002
        %v4022 = vpack.c.b16 %v4004, %v4004
        %v4023 = vpack.c.b16 %v4006, %v4005
        %v4024 = vpack.c.b16 %v4007, %v4007
        %v4025 = vpack.c.b16 %v4009, %v4008
        %v4026 = vpack.c.b16 %v4010, %v4010
        %v4027 = vpack.c.b16 %v3989, %v3988
        %v4028 = vpack.c.b16 %v3992, %v3991
        %v4029 = vpack.c.b16 %v3995, %v3994
        %v4030 = vpack.c.b16 %v3998, %v3997
        %v4031 = vpack.c.b16 %v4001, %v4000
        %v4032 = vpack.c.b16 %v4004, %v4003
        %v4033 = vpack.c.b16 %v4007, %v4006
        %v4034 = vpack.c.b16 %v4010, %v4009
        %v4036 = vshrl.u32 %v4027, 16
        %v4038 = vrot.slane %v4036, 4
        %v4039 = vshll.u32 %v4027, 16
        %v4041 = vrot.slane %v4039, 5
        %v4042 = vor.u32 %v4038, %v4041
        %v4044 = vshrl.u32 %v4028, 16
        %v4046 = vrot.slane %v4044, 4
        %v4047 = vshll.u32 %v4028, 16
        %v4049 = vrot.slane %v4047, 5
        %v4050 = vor.u32 %v4046, %v4049
        %v4052 = vshrl.u32 %v4029, 16
        %v4054 = vrot.slane %v4052, 4
        %v4055 = vshll.u32 %v4029, 16
        %v4057 = vrot.slane %v4055, 5
        %v4058 = vor.u32 %v4054, %v4057
        %v4060 = vshrl.u32 %v4030, 16
        %v4062 = vrot.slane %v4060, 4
        %v4063 = vshll.u32 %v4030, 16
        %v4065 = vrot.slane %v4063, 5
        %v4066 = vor.u32 %v4062, %v4065
        %v4068 = vshrl.u32 %v4031, 16
        %v4070 = vrot.slane %v4068, 4
        %v4071 = vshll.u32 %v4031, 16
        %v4073 = vrot.slane %v4071, 5
        %v4074 = vor.u32 %v4070, %v4073
        %v4076 = vshrl.u32 %v4032, 16
        %v4078 = vrot.slane %v4076, 4
        %v4079 = vshll.u32 %v4032, 16
        %v4081 = vrot.slane %v4079, 5
        %v4082 = vor.u32 %v4078, %v4081
        %v4084 = vshrl.u32 %v4033, 16
        %v4086 = vrot.slane %v4084, 4
        %v4087 = vshll.u32 %v4033, 16
        %v4089 = vrot.slane %v4087, 5
        %v4090 = vor.u32 %v4086, %v4089
        %v4092 = vshrl.u32 %v4034, 16
        %v4094 = vrot.slane %v4092, 4
        %v4095 = vshll.u32 %v4034, 16
        %v4097 = vrot.slane %v4095, 5
        %v4098 = vor.u32 %v4094, %v4097
        %v4107 = vunpack.c.l.b16 %v3889
        %v4108 = vunpack.c.l.b16 %v3890
        %v4109 = vunpack.c.l.b16 %v3891
        %v4110 = vunpack.c.l.b16 %v3892
        %v4111 = vunpack.c.l.b16 %v3893
        %v4112 = vunpack.c.l.b16 %v3894
        %v4113 = vunpack.c.l.b16 %v3895
        %v4114 = vunpack.c.l.b16 %v3896
        %v4115 = vpack.c.b16 %v4107, %v4107
        %v4116 = vpack.c.b16 %v4108, %v4108
        %v4117 = vpack.c.b16 %v4109, %v4109
        %v4118 = vpack.c.b16 %v4110, %v4110
        %v4119 = vpack.c.b16 %v4111, %v4111
        %v4120 = vpack.c.b16 %v4112, %v4112
        %v4121 = vpack.c.b16 %v4113, %v4113
        %v4122 = vpack.c.b16 %v4114, %v4114
        %v4123 = vrot.slane %v4027, 5
        %v4124 = vrot.slane %v4115, 5
        %v4125 = vsel %vm811, %v4123, %v4124
        %v4126 = vrot.slane %v4028, 5
        %v4127 = vrot.slane %v4116, 5
        %v4128 = vsel %vm811, %v4126, %v4127
        %v4129 = vrot.slane %v4029, 5
        %v4130 = vrot.slane %v4117, 5
        %v4131 = vsel %vm811, %v4129, %v4130
        %v4132 = vrot.slane %v4030, 5
        %v4133 = vrot.slane %v4118, 5
        %v4134 = vsel %vm811, %v4132, %v4133
        %v4135 = vrot.slane %v4031, 5
        %v4136 = vrot.slane %v4119, 5
        %v4137 = vsel %vm811, %v4135, %v4136
        %v4138 = vrot.slane %v4032, 5
        %v4139 = vrot.slane %v4120, 5
        %v4140 = vsel %vm811, %v4138, %v4139
        %v4141 = vrot.slane %v4033, 5
        %v4142 = vrot.slane %v4121, 5
        %v4143 = vsel %vm811, %v4141, %v4142
        %v4144 = vrot.slane %v4034, 5
        %v4145 = vrot.slane %v4122, 5
        %v4146 = vsel %vm811, %v4144, %v4145
        %v4171 = vunpack.c.l.b16 %v3898
        %v4172 = vunpack.c.l.b16 %v3899
        %v4173 = vunpack.c.l.b16 %v3900
        %v4174 = vunpack.c.l.b16 %v3901
        %v4175 = vunpack.c.l.b16 %v3902
        %v4176 = vunpack.c.l.b16 %v3903
        %v4177 = vunpack.c.l.b16 %v3904
        %v4178 = vunpack.c.l.b16 %v3905
        %v4179 = vunpack.c.l.b16 %v3906
        %v4180 = vunpack.c.l.b16 %v3907
        %v4181 = vunpack.c.l.b16 %v3908
        %v4182 = vunpack.c.l.b16 %v3909
        %v4183 = vunpack.c.l.b16 %v3910
        %v4184 = vunpack.c.l.b16 %v3911
        %v4185 = vunpack.c.l.b16 %v3912
        %v4186 = vunpack.c.l.b16 %v3913
        %v4187 = vunpack.c.l.b16 %v3914
        %v4188 = vunpack.c.l.b16 %v3915
        %v4189 = vunpack.c.l.b16 %v3916
        %v4190 = vunpack.c.l.b16 %v3917
        %v4191 = vunpack.c.l.b16 %v3918
        %v4192 = vunpack.c.l.b16 %v3919
        %v4193 = vunpack.c.l.b16 %v3920
        %v4194 = vunpack.c.l.b16 %v3921
        %v4195 = vpack.c.b16 %v4172, %v4171
        %v4196 = vpack.c.b16 %v4173, %v4173
        %v4197 = vpack.c.b16 %v4175, %v4174
        %v4198 = vpack.c.b16 %v4176, %v4176
        %v4199 = vpack.c.b16 %v4178, %v4177
        %v4200 = vpack.c.b16 %v4179, %v4179
        %v4201 = vpack.c.b16 %v4181, %v4180
        %v4202 = vpack.c.b16 %v4182, %v4182
        %v4203 = vpack.c.b16 %v4184, %v4183
        %v4204 = vpack.c.b16 %v4185, %v4185
        %v4205 = vpack.c.b16 %v4187, %v4186
        %v4206 = vpack.c.b16 %v4188, %v4188
        %v4207 = vpack.c.b16 %v4190, %v4189
        %v4208 = vpack.c.b16 %v4191, %v4191
        %v4209 = vpack.c.b16 %v4193, %v4192
        %v4210 = vpack.c.b16 %v4194, %v4194
        %v4211 = vpack.c.b16 %v4173, %v4172
        %v4212 = vpack.c.b16 %v4176, %v4175
        %v4213 = vpack.c.b16 %v4179, %v4178
        %v4214 = vpack.c.b16 %v4182, %v4181
        %v4215 = vpack.c.b16 %v4185, %v4184
        %v4216 = vpack.c.b16 %v4188, %v4187
        %v4217 = vpack.c.b16 %v4191, %v4190
        %v4218 = vpack.c.b16 %v4194, %v4193
        %v4220 = vshrl.u32 %v4211, 16
        %v4222 = vrot.slane %v4220, 4
        %v4223 = vshll.u32 %v4211, 16
        %v4225 = vrot.slane %v4223, 5
        %v4226 = vor.u32 %v4222, %v4225
        %v4228 = vshrl.u32 %v4212, 16
        %v4230 = vrot.slane %v4228, 4
        %v4231 = vshll.u32 %v4212, 16
        %v4233 = vrot.slane %v4231, 5
        %v4234 = vor.u32 %v4230, %v4233
        %v4236 = vshrl.u32 %v4213, 16
        %v4238 = vrot.slane %v4236, 4
        %v4239 = vshll.u32 %v4213, 16
        %v4241 = vrot.slane %v4239, 5
        %v4242 = vor.u32 %v4238, %v4241
        %v4244 = vshrl.u32 %v4214, 16
        %v4246 = vrot.slane %v4244, 4
        %v4247 = vshll.u32 %v4214, 16
        %v4249 = vrot.slane %v4247, 5
        %v4250 = vor.u32 %v4246, %v4249
        %v4252 = vshrl.u32 %v4215, 16
        %v4254 = vrot.slane %v4252, 4
        %v4255 = vshll.u32 %v4215, 16
        %v4257 = vrot.slane %v4255, 5
        %v4258 = vor.u32 %v4254, %v4257
        %v4260 = vshrl.u32 %v4216, 16
        %v4262 = vrot.slane %v4260, 4
        %v4263 = vshll.u32 %v4216, 16
        %v4265 = vrot.slane %v4263, 5
        %v4266 = vor.u32 %v4262, %v4265
        %v4268 = vshrl.u32 %v4217, 16
        %v4270 = vrot.slane %v4268, 4
        %v4271 = vshll.u32 %v4217, 16
        %v4273 = vrot.slane %v4271, 5
        %v4274 = vor.u32 %v4270, %v4273
        %v4276 = vshrl.u32 %v4218, 16
        %v4278 = vrot.slane %v4276, 4
        %v4279 = vshll.u32 %v4218, 16
        %v4281 = vrot.slane %v4279, 5
        %v4282 = vor.u32 %v4278, %v4281
        %v4291 = vunpack.c.l.b16 %v3922
        %v4292 = vunpack.c.l.b16 %v3923
        %v4293 = vunpack.c.l.b16 %v3924
        %v4294 = vunpack.c.l.b16 %v3925
        %v4295 = vunpack.c.l.b16 %v3926
        %v4296 = vunpack.c.l.b16 %v3927
        %v4297 = vunpack.c.l.b16 %v3928
        %v4298 = vunpack.c.l.b16 %v3929
        %v4299 = vpack.c.b16 %v4291, %v4291
        %v4300 = vpack.c.b16 %v4292, %v4292
        %v4301 = vpack.c.b16 %v4293, %v4293
        %v4302 = vpack.c.b16 %v4294, %v4294
        %v4303 = vpack.c.b16 %v4295, %v4295
        %v4304 = vpack.c.b16 %v4296, %v4296
        %v4305 = vpack.c.b16 %v4297, %v4297
        %v4306 = vpack.c.b16 %v4298, %v4298
        %v4307 = vrot.slane %v4211, 5
        %v4308 = vrot.slane %v4299, 5
        %v4309 = vsel %vm811, %v4307, %v4308
        %v4310 = vrot.slane %v4212, 5
        %v4311 = vrot.slane %v4300, 5
        %v4312 = vsel %vm811, %v4310, %v4311
        %v4313 = vrot.slane %v4213, 5
        %v4314 = vrot.slane %v4301, 5
        %v4315 = vsel %vm811, %v4313, %v4314
        %v4316 = vrot.slane %v4214, 5
        %v4317 = vrot.slane %v4302, 5
        %v4318 = vsel %vm811, %v4316, %v4317
        %v4319 = vrot.slane %v4215, 5
        %v4320 = vrot.slane %v4303, 5
        %v4321 = vsel %vm811, %v4319, %v4320
        %v4322 = vrot.slane %v4216, 5
        %v4323 = vrot.slane %v4304, 5
        %v4324 = vsel %vm811, %v4322, %v4323
        %v4325 = vrot.slane %v4217, 5
        %v4326 = vrot.slane %v4305, 5
        %v4327 = vsel %vm811, %v4325, %v4326
        %v4328 = vrot.slane %v4218, 5
        %v4329 = vrot.slane %v4306, 5
        %v4330 = vsel %vm811, %v4328, %v4329
        %v4355 = vunpack.c.l.b16 %v3931
        %v4356 = vunpack.c.l.b16 %v3932
        %v4357 = vunpack.c.l.b16 %v3933
        %v4358 = vunpack.c.l.b16 %v3934
        %v4359 = vunpack.c.l.b16 %v3935
        %v4360 = vunpack.c.l.b16 %v3936
        %v4361 = vunpack.c.l.b16 %v3937
        %v4362 = vunpack.c.l.b16 %v3938
        %v4363 = vunpack.c.l.b16 %v3939
        %v4364 = vunpack.c.l.b16 %v3940
        %v4365 = vunpack.c.l.b16 %v3941
        %v4366 = vunpack.c.l.b16 %v3942
        %v4367 = vunpack.c.l.b16 %v3943
        %v4368 = vunpack.c.l.b16 %v3944
        %v4369 = vunpack.c.l.b16 %v3945
        %v4370 = vunpack.c.l.b16 %v3946
        %v4371 = vunpack.c.l.b16 %v3947
        %v4372 = vunpack.c.l.b16 %v3948
        %v4373 = vunpack.c.l.b16 %v3949
        %v4374 = vunpack.c.l.b16 %v3950
        %v4375 = vunpack.c.l.b16 %v3951
        %v4376 = vunpack.c.l.b16 %v3952
        %v4377 = vunpack.c.l.b16 %v3953
        %v4378 = vunpack.c.l.b16 %v3954
        %v4379 = vpack.c.b16 %v4356, %v4355
        %v4380 = vpack.c.b16 %v4357, %v4357
        %v4381 = vpack.c.b16 %v4359, %v4358
        %v4382 = vpack.c.b16 %v4360, %v4360
        %v4383 = vpack.c.b16 %v4362, %v4361
        %v4384 = vpack.c.b16 %v4363, %v4363
        %v4385 = vpack.c.b16 %v4365, %v4364
        %v4386 = vpack.c.b16 %v4366, %v4366
        %v4387 = vpack.c.b16 %v4368, %v4367
        %v4388 = vpack.c.b16 %v4369, %v4369
        %v4389 = vpack.c.b16 %v4371, %v4370
        %v4390 = vpack.c.b16 %v4372, %v4372
        %v4391 = vpack.c.b16 %v4374, %v4373
        %v4392 = vpack.c.b16 %v4375, %v4375
        %v4393 = vpack.c.b16 %v4377, %v4376
        %v4394 = vpack.c.b16 %v4378, %v4378
        %v4395 = vpack.c.b16 %v4357, %v4356
        %v4396 = vpack.c.b16 %v4360, %v4359
        %v4397 = vpack.c.b16 %v4363, %v4362
        %v4398 = vpack.c.b16 %v4366, %v4365
        %v4399 = vpack.c.b16 %v4369, %v4368
        %v4400 = vpack.c.b16 %v4372, %v4371
        %v4401 = vpack.c.b16 %v4375, %v4374
        %v4402 = vpack.c.b16 %v4378, %v4377
        %v4404 = vshrl.u32 %v4395, 16
        %v4406 = vrot.slane %v4404, 4
        %v4407 = vshll.u32 %v4395, 16
        %v4409 = vrot.slane %v4407, 5
        %v4410 = vor.u32 %v4406, %v4409
        %v4412 = vshrl.u32 %v4396, 16
        %v4414 = vrot.slane %v4412, 4
        %v4415 = vshll.u32 %v4396, 16
        %v4417 = vrot.slane %v4415, 5
        %v4418 = vor.u32 %v4414, %v4417
        %v4420 = vshrl.u32 %v4397, 16
        %v4422 = vrot.slane %v4420, 4
        %v4423 = vshll.u32 %v4397, 16
        %v4425 = vrot.slane %v4423, 5
        %v4426 = vor.u32 %v4422, %v4425
        %v4428 = vshrl.u32 %v4398, 16
        %v4430 = vrot.slane %v4428, 4
        %v4431 = vshll.u32 %v4398, 16
        %v4433 = vrot.slane %v4431, 5
        %v4434 = vor.u32 %v4430, %v4433
        %v4436 = vshrl.u32 %v4399, 16
        %v4438 = vrot.slane %v4436, 4
        %v4439 = vshll.u32 %v4399, 16
        %v4441 = vrot.slane %v4439, 5
        %v4442 = vor.u32 %v4438, %v4441
        %v4444 = vshrl.u32 %v4400, 16
        %v4446 = vrot.slane %v4444, 4
        %v4447 = vshll.u32 %v4400, 16
        %v4449 = vrot.slane %v4447, 5
        %v4450 = vor.u32 %v4446, %v4449
        %v4452 = vshrl.u32 %v4401, 16
        %v4454 = vrot.slane %v4452, 4
        %v4455 = vshll.u32 %v4401, 16
        %v4457 = vrot.slane %v4455, 5
        %v4458 = vor.u32 %v4454, %v4457
        %v4460 = vshrl.u32 %v4402, 16
        %v4462 = vrot.slane %v4460, 4
        %v4463 = vshll.u32 %v4402, 16
        %v4465 = vrot.slane %v4463, 5
        %v4466 = vor.u32 %v4462, %v4465
        %v4475 = vunpack.c.l.b16 %v3955
        %v4476 = vunpack.c.l.b16 %v3956
        %v4477 = vunpack.c.l.b16 %v3957
        %v4478 = vunpack.c.l.b16 %v3958
        %v4479 = vunpack.c.l.b16 %v3959
        %v4480 = vunpack.c.l.b16 %v3960
        %v4481 = vunpack.c.l.b16 %v3961
        %v4482 = vunpack.c.l.b16 %v3962
        %v4483 = vpack.c.b16 %v4475, %v4475
        %v4484 = vpack.c.b16 %v4476, %v4476
        %v4485 = vpack.c.b16 %v4477, %v4477
        %v4486 = vpack.c.b16 %v4478, %v4478
        %v4487 = vpack.c.b16 %v4479, %v4479
        %v4488 = vpack.c.b16 %v4480, %v4480
        %v4489 = vpack.c.b16 %v4481, %v4481
        %v4490 = vpack.c.b16 %v4482, %v4482
        %v4491 = vrot.slane %v4395, 5
        %v4492 = vrot.slane %v4483, 5
        %v4493 = vsel %vm811, %v4491, %v4492
        %v4494 = vrot.slane %v4396, 5
        %v4495 = vrot.slane %v4484, 5
        %v4496 = vsel %vm811, %v4494, %v4495
        %v4497 = vrot.slane %v4397, 5
        %v4498 = vrot.slane %v4485, 5
        %v4499 = vsel %vm811, %v4497, %v4498
        %v4500 = vrot.slane %v4398, 5
        %v4501 = vrot.slane %v4486, 5
        %v4502 = vsel %vm811, %v4500, %v4501
        %v4503 = vrot.slane %v4399, 5
        %v4504 = vrot.slane %v4487, 5
        %v4505 = vsel %vm811, %v4503, %v4504
        %v4506 = vrot.slane %v4400, 5
        %v4507 = vrot.slane %v4488, 5
        %v4508 = vsel %vm811, %v4506, %v4507
        %v4509 = vrot.slane %v4401, 5
        %v4510 = vrot.slane %v4489, 5
        %v4511 = vsel %vm811, %v4509, %v4510
        %v4512 = vrot.slane %v4402, 5
        %v4513 = vrot.slane %v4490, 5
        %v4514 = vsel %vm811, %v4512, %v4513
        %v4516 = vshrl.u32 %v4011, 16
        %v4518 = vrot.slane %v4516, 3
        %v4519 = vshll.u32 %v4011, 16
        %v4521 = vrot.slane %v4519, 4
        %v4522 = vor.u32 %v4518, %v4521
        %v4524 = vshrl.u32 %v4012, 16
        %v4526 = vrot.slane %v4524, 3
        %v4527 = vshll.u32 %v4012, 16
        %v4529 = vrot.slane %v4527, 4
        %v4530 = vor.u32 %v4526, %v4529
        %v4531 = vsel %vm1302, %v4522, %v4530
        %v4533 = vshrl.u32 %v4042, 16
        %v4535 = vrot.slane %v4533, 3
        %v4536 = vshll.u32 %v4042, 16
        %v4538 = vrot.slane %v4536, 4
        %v4539 = vor.u32 %v4535, %v4538
        %v4540 = vsel %vm1302, %v4539, %v4539
        %v4542 = vshrl.u32 %v4123, 16
        %v4544 = vrot.slane %v4542, 3
        %v4545 = vshll.u32 %v4123, 16
        %v4547 = vrot.slane %v4545, 4
        %v4548 = vor.u32 %v4544, %v4547
        %v4550 = vshrl.u32 %v4125, 16
        %v4552 = vrot.slane %v4550, 3
        %v4553 = vshll.u32 %v4125, 16
        %v4555 = vrot.slane %v4553, 4
        %v4556 = vor.u32 %v4552, %v4555
        %v4557 = vsel %vm1302, %v4548, %v4556
        %v4559 = vshrl.u32 %v4195, 16
        %v4561 = vrot.slane %v4559, 3
        %v4562 = vshll.u32 %v4195, 16
        %v4564 = vrot.slane %v4562, 4
        %v4565 = vor.u32 %v4561, %v4564
        %v4567 = vshrl.u32 %v4196, 16
        %v4569 = vrot.slane %v4567, 3
        %v4570 = vshll.u32 %v4196, 16
        %v4572 = vrot.slane %v4570, 4
        %v4573 = vor.u32 %v4569, %v4572
        %v4574 = vsel %vm1302, %v4565, %v4573
        %v4576 = vshrl.u32 %v4226, 16
        %v4578 = vrot.slane %v4576, 3
        %v4579 = vshll.u32 %v4226, 16
        %v4581 = vrot.slane %v4579, 4
        %v4582 = vor.u32 %v4578, %v4581
        %v4583 = vsel %vm1302, %v4582, %v4582
        %v4585 = vshrl.u32 %v4307, 16
        %v4587 = vrot.slane %v4585, 3
        %v4588 = vshll.u32 %v4307, 16
        %v4590 = vrot.slane %v4588, 4
        %v4591 = vor.u32 %v4587, %v4590
        %v4593 = vshrl.u32 %v4309, 16
        %v4595 = vrot.slane %v4593, 3
        %v4596 = vshll.u32 %v4309, 16
        %v4598 = vrot.slane %v4596, 4
        %v4599 = vor.u32 %v4595, %v4598
        %v4600 = vsel %vm1302, %v4591, %v4599
        %v4602 = vshrl.u32 %v4379, 16
        %v4604 = vrot.slane %v4602, 3
        %v4605 = vshll.u32 %v4379, 16
        %v4607 = vrot.slane %v4605, 4
        %v4608 = vor.u32 %v4604, %v4607
        %v4610 = vshrl.u32 %v4380, 16
        %v4612 = vrot.slane %v4610, 3
        %v4613 = vshll.u32 %v4380, 16
        %v4615 = vrot.slane %v4613, 4
        %v4616 = vor.u32 %v4612, %v4615
        %v4617 = vsel %vm1302, %v4608, %v4616
        %v4619 = vshrl.u32 %v4410, 16
        %v4621 = vrot.slane %v4619, 3
        %v4622 = vshll.u32 %v4410, 16
        %v4624 = vrot.slane %v4622, 4
        %v4625 = vor.u32 %v4621, %v4624
        %v4626 = vsel %vm1302, %v4625, %v4625
        %v4628 = vshrl.u32 %v4491, 16
        %v4630 = vrot.slane %v4628, 3
        %v4631 = vshll.u32 %v4491, 16
        %v4633 = vrot.slane %v4631, 4
        %v4634 = vor.u32 %v4630, %v4633
        %v4636 = vshrl.u32 %v4493, 16
        %v4638 = vrot.slane %v4636, 3
        %v4639 = vshll.u32 %v4493, 16
        %v4641 = vrot.slane %v4639, 4
        %v4642 = vor.u32 %v4638, %v4641
        %v4643 = vsel %vm1302, %v4634, %v4642
        %v4645 = vshrl.u32 %v4013, 16
        %v4647 = vrot.slane %v4645, 3
        %v4648 = vshll.u32 %v4013, 16
        %v4650 = vrot.slane %v4648, 4
        %v4651 = vor.u32 %v4647, %v4650
        %v4653 = vshrl.u32 %v4014, 16
        %v4655 = vrot.slane %v4653, 3
        %v4656 = vshll.u32 %v4014, 16
        %v4658 = vrot.slane %v4656, 4
        %v4659 = vor.u32 %v4655, %v4658
        %v4660 = vsel %vm1302, %v4651, %v4659
        %v4662 = vshrl.u32 %v4050, 16
        %v4664 = vrot.slane %v4662, 3
        %v4665 = vshll.u32 %v4050, 16
        %v4667 = vrot.slane %v4665, 4
        %v4668 = vor.u32 %v4664, %v4667
        %v4669 = vsel %vm1302, %v4668, %v4668
        %v4671 = vshrl.u32 %v4126, 16
        %v4673 = vrot.slane %v4671, 3
        %v4674 = vshll.u32 %v4126, 16
        %v4676 = vrot.slane %v4674, 4
        %v4677 = vor.u32 %v4673, %v4676
        %v4679 = vshrl.u32 %v4128, 16
        %v4681 = vrot.slane %v4679, 3
        %v4682 = vshll.u32 %v4128, 16
        %v4684 = vrot.slane %v4682, 4
        %v4685 = vor.u32 %v4681, %v4684
        %v4686 = vsel %vm1302, %v4677, %v4685
        %v4688 = vshrl.u32 %v4197, 16
        %v4690 = vrot.slane %v4688, 3
        %v4691 = vshll.u32 %v4197, 16
        %v4693 = vrot.slane %v4691, 4
        %v4694 = vor.u32 %v4690, %v4693
        %v4696 = vshrl.u32 %v4198, 16
        %v4698 = vrot.slane %v4696, 3
        %v4699 = vshll.u32 %v4198, 16
        %v4701 = vrot.slane %v4699, 4
        %v4702 = vor.u32 %v4698, %v4701
        %v4703 = vsel %vm1302, %v4694, %v4702
        %v4705 = vshrl.u32 %v4234, 16
        %v4707 = vrot.slane %v4705, 3
        %v4708 = vshll.u32 %v4234, 16
        %v4710 = vrot.slane %v4708, 4
        %v4711 = vor.u32 %v4707, %v4710
        %v4712 = vsel %vm1302, %v4711, %v4711
        %v4714 = vshrl.u32 %v4310, 16
        %v4716 = vrot.slane %v4714, 3
        %v4717 = vshll.u32 %v4310, 16
        %v4719 = vrot.slane %v4717, 4
        %v4720 = vor.u32 %v4716, %v4719
        %v4722 = vshrl.u32 %v4312, 16
        %v4724 = vrot.slane %v4722, 3
        %v4725 = vshll.u32 %v4312, 16
        %v4727 = vrot.slane %v4725, 4
        %v4728 = vor.u32 %v4724, %v4727
        %v4729 = vsel %vm1302, %v4720, %v4728
        %v4731 = vshrl.u32 %v4381, 16
        %v4733 = vrot.slane %v4731, 3
        %v4734 = vshll.u32 %v4381, 16
        %v4736 = vrot.slane %v4734, 4
        %v4737 = vor.u32 %v4733, %v4736
        %v4739 = vshrl.u32 %v4382, 16
        %v4741 = vrot.slane %v4739, 3
        %v4742 = vshll.u32 %v4382, 16
        %v4744 = vrot.slane %v4742, 4
        %v4745 = vor.u32 %v4741, %v4744
        %v4746 = vsel %vm1302, %v4737, %v4745
        %v4748 = vshrl.u32 %v4418, 16
        %v4750 = vrot.slane %v4748, 3
        %v4751 = vshll.u32 %v4418, 16
        %v4753 = vrot.slane %v4751, 4
        %v4754 = vor.u32 %v4750, %v4753
        %v4755 = vsel %vm1302, %v4754, %v4754
        %v4757 = vshrl.u32 %v4494, 16
        %v4759 = vrot.slane %v4757, 3
        %v4760 = vshll.u32 %v4494, 16
        %v4762 = vrot.slane %v4760, 4
        %v4763 = vor.u32 %v4759, %v4762
        %v4765 = vshrl.u32 %v4496, 16
        %v4767 = vrot.slane %v4765, 3
        %v4768 = vshll.u32 %v4496, 16
        %v4770 = vrot.slane %v4768, 4
        %v4771 = vor.u32 %v4767, %v4770
        %v4772 = vsel %vm1302, %v4763, %v4771
        %v4774 = vshrl.u32 %v4015, 16
        %v4776 = vrot.slane %v4774, 3
        %v4777 = vshll.u32 %v4015, 16
        %v4779 = vrot.slane %v4777, 4
        %v4780 = vor.u32 %v4776, %v4779
        %v4782 = vshrl.u32 %v4016, 16
        %v4784 = vrot.slane %v4782, 3
        %v4785 = vshll.u32 %v4016, 16
        %v4787 = vrot.slane %v4785, 4
        %v4788 = vor.u32 %v4784, %v4787
        %v4789 = vsel %vm1302, %v4780, %v4788
        %v4791 = vshrl.u32 %v4058, 16
        %v4793 = vrot.slane %v4791, 3
        %v4794 = vshll.u32 %v4058, 16
        %v4796 = vrot.slane %v4794, 4
        %v4797 = vor.u32 %v4793, %v4796
        %v4798 = vsel %vm1302, %v4797, %v4797
        %v4800 = vshrl.u32 %v4129, 16
        %v4802 = vrot.slane %v4800, 3
        %v4803 = vshll.u32 %v4129, 16
        %v4805 = vrot.slane %v4803, 4
        %v4806 = vor.u32 %v4802, %v4805
        %v4808 = vshrl.u32 %v4131, 16
        %v4810 = vrot.slane %v4808, 3
        %v4811 = vshll.u32 %v4131, 16
        %v4813 = vrot.slane %v4811, 4
        %v4814 = vor.u32 %v4810, %v4813
        %v4815 = vsel %vm1302, %v4806, %v4814
        %v4817 = vshrl.u32 %v4199, 16
        %v4819 = vrot.slane %v4817, 3
        %v4820 = vshll.u32 %v4199, 16
        %v4822 = vrot.slane %v4820, 4
        %v4823 = vor.u32 %v4819, %v4822
        %v4825 = vshrl.u32 %v4200, 16
        %v4827 = vrot.slane %v4825, 3
        %v4828 = vshll.u32 %v4200, 16
        %v4830 = vrot.slane %v4828, 4
        %v4831 = vor.u32 %v4827, %v4830
        %v4832 = vsel %vm1302, %v4823, %v4831
        %v4834 = vshrl.u32 %v4242, 16
        %v4836 = vrot.slane %v4834, 3
        %v4837 = vshll.u32 %v4242, 16
        %v4839 = vrot.slane %v4837, 4
        %v4840 = vor.u32 %v4836, %v4839
        %v4841 = vsel %vm1302, %v4840, %v4840
        %v4843 = vshrl.u32 %v4313, 16
        %v4845 = vrot.slane %v4843, 3
        %v4846 = vshll.u32 %v4313, 16
        %v4848 = vrot.slane %v4846, 4
        %v4849 = vor.u32 %v4845, %v4848
        %v4851 = vshrl.u32 %v4315, 16
        %v4853 = vrot.slane %v4851, 3
        %v4854 = vshll.u32 %v4315, 16
        %v4856 = vrot.slane %v4854, 4
        %v4857 = vor.u32 %v4853, %v4856
        %v4858 = vsel %vm1302, %v4849, %v4857
        %v4860 = vshrl.u32 %v4383, 16
        %v4862 = vrot.slane %v4860, 3
        %v4863 = vshll.u32 %v4383, 16
        %v4865 = vrot.slane %v4863, 4
        %v4866 = vor.u32 %v4862, %v4865
        %v4868 = vshrl.u32 %v4384, 16
        %v4870 = vrot.slane %v4868, 3
        %v4871 = vshll.u32 %v4384, 16
        %v4873 = vrot.slane %v4871, 4
        %v4874 = vor.u32 %v4870, %v4873
        %v4875 = vsel %vm1302, %v4866, %v4874
        %v4877 = vshrl.u32 %v4426, 16
        %v4879 = vrot.slane %v4877, 3
        %v4880 = vshll.u32 %v4426, 16
        %v4882 = vrot.slane %v4880, 4
        %v4883 = vor.u32 %v4879, %v4882
        %v4884 = vsel %vm1302, %v4883, %v4883
        %v4886 = vshrl.u32 %v4497, 16
        %v4888 = vrot.slane %v4886, 3
        %v4889 = vshll.u32 %v4497, 16
        %v4891 = vrot.slane %v4889, 4
        %v4892 = vor.u32 %v4888, %v4891
        %v4894 = vshrl.u32 %v4499, 16
        %v4896 = vrot.slane %v4894, 3
        %v4897 = vshll.u32 %v4499, 16
        %v4899 = vrot.slane %v4897, 4
        %v4900 = vor.u32 %v4896, %v4899
        %v4901 = vsel %vm1302, %v4892, %v4900
        %v4903 = vshrl.u32 %v4017, 16
        %v4905 = vrot.slane %v4903, 3
        %v4906 = vshll.u32 %v4017, 16
        %v4908 = vrot.slane %v4906, 4
        %v4909 = vor.u32 %v4905, %v4908
        %v4911 = vshrl.u32 %v4018, 16
        %v4913 = vrot.slane %v4911, 3
        %v4914 = vshll.u32 %v4018, 16
        %v4916 = vrot.slane %v4914, 4
        %v4917 = vor.u32 %v4913, %v4916
        %v4918 = vsel %vm1302, %v4909, %v4917
        %v4920 = vshrl.u32 %v4066, 16
        %v4922 = vrot.slane %v4920, 3
        %v4923 = vshll.u32 %v4066, 16
        %v4925 = vrot.slane %v4923, 4
        %v4926 = vor.u32 %v4922, %v4925
        %v4927 = vsel %vm1302, %v4926, %v4926
        %v4929 = vshrl.u32 %v4132, 16
        %v4931 = vrot.slane %v4929, 3
        %v4932 = vshll.u32 %v4132, 16
        %v4934 = vrot.slane %v4932, 4
        %v4935 = vor.u32 %v4931, %v4934
        %v4937 = vshrl.u32 %v4134, 16
        %v4939 = vrot.slane %v4937, 3
        %v4940 = vshll.u32 %v4134, 16
        %v4942 = vrot.slane %v4940, 4
        %v4943 = vor.u32 %v4939, %v4942
        %v4944 = vsel %vm1302, %v4935, %v4943
        %v4946 = vshrl.u32 %v4201, 16
        %v4948 = vrot.slane %v4946, 3
        %v4949 = vshll.u32 %v4201, 16
        %v4951 = vrot.slane %v4949, 4
        %v4952 = vor.u32 %v4948, %v4951
        %v4954 = vshrl.u32 %v4202, 16
        %v4956 = vrot.slane %v4954, 3
        %v4957 = vshll.u32 %v4202, 16
        %v4959 = vrot.slane %v4957, 4
        %v4960 = vor.u32 %v4956, %v4959
        %v4961 = vsel %vm1302, %v4952, %v4960
        %v4963 = vshrl.u32 %v4250, 16
        %v4965 = vrot.slane %v4963, 3
        %v4966 = vshll.u32 %v4250, 16
        %v4968 = vrot.slane %v4966, 4
        %v4969 = vor.u32 %v4965, %v4968
        %v4970 = vsel %vm1302, %v4969, %v4969
        %v4972 = vshrl.u32 %v4316, 16
        %v4974 = vrot.slane %v4972, 3
        %v4975 = vshll.u32 %v4316, 16
        %v4977 = vrot.slane %v4975, 4
        %v4978 = vor.u32 %v4974, %v4977
        %v4980 = vshrl.u32 %v4318, 16
        %v4982 = vrot.slane %v4980, 3
        %v4983 = vshll.u32 %v4318, 16
        %v4985 = vrot.slane %v4983, 4
        %v4986 = vor.u32 %v4982, %v4985
        %v4987 = vsel %vm1302, %v4978, %v4986
        %v4989 = vshrl.u32 %v4385, 16
        %v4991 = vrot.slane %v4989, 3
        %v4992 = vshll.u32 %v4385, 16
        %v4994 = vrot.slane %v4992, 4
        %v4995 = vor.u32 %v4991, %v4994
        %v4997 = vshrl.u32 %v4386, 16
        %v4999 = vrot.slane %v4997, 3
        %v5000 = vshll.u32 %v4386, 16
        %v5002 = vrot.slane %v5000, 4
        %v5003 = vor.u32 %v4999, %v5002
        %v5004 = vsel %vm1302, %v4995, %v5003
        %v5006 = vshrl.u32 %v4434, 16
        %v5008 = vrot.slane %v5006, 3
        %v5009 = vshll.u32 %v4434, 16
        %v5011 = vrot.slane %v5009, 4
        %v5012 = vor.u32 %v5008, %v5011
        %v5013 = vsel %vm1302, %v5012, %v5012
        %v5015 = vshrl.u32 %v4500, 16
        %v5017 = vrot.slane %v5015, 3
        %v5018 = vshll.u32 %v4500, 16
        %v5020 = vrot.slane %v5018, 4
        %v5021 = vor.u32 %v5017, %v5020
        %v5023 = vshrl.u32 %v4502, 16
        %v5025 = vrot.slane %v5023, 3
        %v5026 = vshll.u32 %v4502, 16
        %v5028 = vrot.slane %v5026, 4
        %v5029 = vor.u32 %v5025, %v5028
        %v5030 = vsel %vm1302, %v5021, %v5029
        %v5032 = vshrl.u32 %v4019, 16
        %v5034 = vrot.slane %v5032, 3
        %v5035 = vshll.u32 %v4019, 16
        %v5037 = vrot.slane %v5035, 4
        %v5038 = vor.u32 %v5034, %v5037
        %v5040 = vshrl.u32 %v4020, 16
        %v5042 = vrot.slane %v5040, 3
        %v5043 = vshll.u32 %v4020, 16
        %v5045 = vrot.slane %v5043, 4
        %v5046 = vor.u32 %v5042, %v5045
        %v5047 = vsel %vm1302, %v5038, %v5046
        %v5049 = vshrl.u32 %v4074, 16
        %v5051 = vrot.slane %v5049, 3
        %v5052 = vshll.u32 %v4074, 16
        %v5054 = vrot.slane %v5052, 4
        %v5055 = vor.u32 %v5051, %v5054
        %v5056 = vsel %vm1302, %v5055, %v5055
        %v5058 = vshrl.u32 %v4135, 16
        %v5060 = vrot.slane %v5058, 3
        %v5061 = vshll.u32 %v4135, 16
        %v5063 = vrot.slane %v5061, 4
        %v5064 = vor.u32 %v5060, %v5063
        %v5066 = vshrl.u32 %v4137, 16
        %v5068 = vrot.slane %v5066, 3
        %v5069 = vshll.u32 %v4137, 16
        %v5071 = vrot.slane %v5069, 4
        %v5072 = vor.u32 %v5068, %v5071
        %v5073 = vsel %vm1302, %v5064, %v5072
        %v5075 = vshrl.u32 %v4203, 16
        %v5077 = vrot.slane %v5075, 3
        %v5078 = vshll.u32 %v4203, 16
        %v5080 = vrot.slane %v5078, 4
        %v5081 = vor.u32 %v5077, %v5080
        %v5083 = vshrl.u32 %v4204, 16
        %v5085 = vrot.slane %v5083, 3
        %v5086 = vshll.u32 %v4204, 16
        %v5088 = vrot.slane %v5086, 4
        %v5089 = vor.u32 %v5085, %v5088
        %v5090 = vsel %vm1302, %v5081, %v5089
        %v5092 = vshrl.u32 %v4258, 16
        %v5094 = vrot.slane %v5092, 3
        %v5095 = vshll.u32 %v4258, 16
        %v5097 = vrot.slane %v5095, 4
        %v5098 = vor.u32 %v5094, %v5097
        %v5099 = vsel %vm1302, %v5098, %v5098
        %v5101 = vshrl.u32 %v4319, 16
        %v5103 = vrot.slane %v5101, 3
        %v5104 = vshll.u32 %v4319, 16
        %v5106 = vrot.slane %v5104, 4
        %v5107 = vor.u32 %v5103, %v5106
        %v5109 = vshrl.u32 %v4321, 16
        %v5111 = vrot.slane %v5109, 3
        %v5112 = vshll.u32 %v4321, 16
        %v5114 = vrot.slane %v5112, 4
        %v5115 = vor.u32 %v5111, %v5114
        %v5116 = vsel %vm1302, %v5107, %v5115
        %v5118 = vshrl.u32 %v4387, 16
        %v5120 = vrot.slane %v5118, 3
        %v5121 = vshll.u32 %v4387, 16
        %v5123 = vrot.slane %v5121, 4
        %v5124 = vor.u32 %v5120, %v5123
        %v5126 = vshrl.u32 %v4388, 16
        %v5128 = vrot.slane %v5126, 3
        %v5129 = vshll.u32 %v4388, 16
        %v5131 = vrot.slane %v5129, 4
        %v5132 = vor.u32 %v5128, %v5131
        %v5133 = vsel %vm1302, %v5124, %v5132
        %v5135 = vshrl.u32 %v4442, 16
        %v5137 = vrot.slane %v5135, 3
        %v5138 = vshll.u32 %v4442, 16
        %v5140 = vrot.slane %v5138, 4
        %v5141 = vor.u32 %v5137, %v5140
        %v5142 = vsel %vm1302, %v5141, %v5141
        %v5144 = vshrl.u32 %v4503, 16
        %v5146 = vrot.slane %v5144, 3
        %v5147 = vshll.u32 %v4503, 16
        %v5149 = vrot.slane %v5147, 4
        %v5150 = vor.u32 %v5146, %v5149
        %v5152 = vshrl.u32 %v4505, 16
        %v5154 = vrot.slane %v5152, 3
        %v5155 = vshll.u32 %v4505, 16
        %v5157 = vrot.slane %v5155, 4
        %v5158 = vor.u32 %v5154, %v5157
        %v5159 = vsel %vm1302, %v5150, %v5158
        %v5161 = vshrl.u32 %v4021, 16
        %v5163 = vrot.slane %v5161, 3
        %v5164 = vshll.u32 %v4021, 16
        %v5166 = vrot.slane %v5164, 4
        %v5167 = vor.u32 %v5163, %v5166
        %v5169 = vshrl.u32 %v4022, 16
        %v5171 = vrot.slane %v5169, 3
        %v5172 = vshll.u32 %v4022, 16
        %v5174 = vrot.slane %v5172, 4
        %v5175 = vor.u32 %v5171, %v5174
        %v5176 = vsel %vm1302, %v5167, %v5175
        %v5178 = vshrl.u32 %v4082, 16
        %v5180 = vrot.slane %v5178, 3
        %v5181 = vshll.u32 %v4082, 16
        %v5183 = vrot.slane %v5181, 4
        %v5184 = vor.u32 %v5180, %v5183
        %v5185 = vsel %vm1302, %v5184, %v5184
        %v5187 = vshrl.u32 %v4138, 16
        %v5189 = vrot.slane %v5187, 3
        %v5190 = vshll.u32 %v4138, 16
        %v5192 = vrot.slane %v5190, 4
        %v5193 = vor.u32 %v5189, %v5192
        %v5195 = vshrl.u32 %v4140, 16
        %v5197 = vrot.slane %v5195, 3
        %v5198 = vshll.u32 %v4140, 16
        %v5200 = vrot.slane %v5198, 4
        %v5201 = vor.u32 %v5197, %v5200
        %v5202 = vsel %vm1302, %v5193, %v5201
        %v5204 = vshrl.u32 %v4205, 16
        %v5206 = vrot.slane %v5204, 3
        %v5207 = vshll.u32 %v4205, 16
        %v5209 = vrot.slane %v5207, 4
        %v5210 = vor.u32 %v5206, %v5209
        %v5212 = vshrl.u32 %v4206, 16
        %v5214 = vrot.slane %v5212, 3
        %v5215 = vshll.u32 %v4206, 16
        %v5217 = vrot.slane %v5215, 4
        %v5218 = vor.u32 %v5214, %v5217
        %v5219 = vsel %vm1302, %v5210, %v5218
        %v5221 = vshrl.u32 %v4266, 16
        %v5223 = vrot.slane %v5221, 3
        %v5224 = vshll.u32 %v4266, 16
        %v5226 = vrot.slane %v5224, 4
        %v5227 = vor.u32 %v5223, %v5226
        %v5228 = vsel %vm1302, %v5227, %v5227
        %v5230 = vshrl.u32 %v4322, 16
        %v5232 = vrot.slane %v5230, 3
        %v5233 = vshll.u32 %v4322, 16
        %v5235 = vrot.slane %v5233, 4
        %v5236 = vor.u32 %v5232, %v5235
        %v5238 = vshrl.u32 %v4324, 16
        %v5240 = vrot.slane %v5238, 3
        %v5241 = vshll.u32 %v4324, 16
        %v5243 = vrot.slane %v5241, 4
        %v5244 = vor.u32 %v5240, %v5243
        %v5245 = vsel %vm1302, %v5236, %v5244
        %v5247 = vshrl.u32 %v4389, 16
        %v5249 = vrot.slane %v5247, 3
        %v5250 = vshll.u32 %v4389, 16
        %v5252 = vrot.slane %v5250, 4
        %v5253 = vor.u32 %v5249, %v5252
        %v5255 = vshrl.u32 %v4390, 16
        %v5257 = vrot.slane %v5255, 3
        %v5258 = vshll.u32 %v4390, 16
        %v5260 = vrot.slane %v5258, 4
        %v5261 = vor.u32 %v5257, %v5260
        %v5262 = vsel %vm1302, %v5253, %v5261
        %v5264 = vshrl.u32 %v4450, 16
        %v5266 = vrot.slane %v5264, 3
        %v5267 = vshll.u32 %v4450, 16
        %v5269 = vrot.slane %v5267, 4
        %v5270 = vor.u32 %v5266, %v5269
        %v5271 = vsel %vm1302, %v5270, %v5270
        %v5273 = vshrl.u32 %v4506, 16
        %v5275 = vrot.slane %v5273, 3
        %v5276 = vshll.u32 %v4506, 16
        %v5278 = vrot.slane %v5276, 4
        %v5279 = vor.u32 %v5275, %v5278
        %v5281 = vshrl.u32 %v4508, 16
        %v5283 = vrot.slane %v5281, 3
        %v5284 = vshll.u32 %v4508, 16
        %v5286 = vrot.slane %v5284, 4
        %v5287 = vor.u32 %v5283, %v5286
        %v5288 = vsel %vm1302, %v5279, %v5287
        %v5290 = vshrl.u32 %v4023, 16
        %v5292 = vrot.slane %v5290, 3
        %v5293 = vshll.u32 %v4023, 16
        %v5295 = vrot.slane %v5293, 4
        %v5296 = vor.u32 %v5292, %v5295
        %v5298 = vshrl.u32 %v4024, 16
        %v5300 = vrot.slane %v5298, 3
        %v5301 = vshll.u32 %v4024, 16
        %v5303 = vrot.slane %v5301, 4
        %v5304 = vor.u32 %v5300, %v5303
        %v5305 = vsel %vm1302, %v5296, %v5304
        %v5307 = vshrl.u32 %v4090, 16
        %v5309 = vrot.slane %v5307, 3
        %v5310 = vshll.u32 %v4090, 16
        %v5312 = vrot.slane %v5310, 4
        %v5313 = vor.u32 %v5309, %v5312
        %v5314 = vsel %vm1302, %v5313, %v5313
        %v5316 = vshrl.u32 %v4141, 16
        %v5318 = vrot.slane %v5316, 3
        %v5319 = vshll.u32 %v4141, 16
        %v5321 = vrot.slane %v5319, 4
        %v5322 = vor.u32 %v5318, %v5321
        %v5324 = vshrl.u32 %v4143, 16
        %v5326 = vrot.slane %v5324, 3
        %v5327 = vshll.u32 %v4143, 16
        %v5329 = vrot.slane %v5327, 4
        %v5330 = vor.u32 %v5326, %v5329
        %v5331 = vsel %vm1302, %v5322, %v5330
        %v5333 = vshrl.u32 %v4207, 16
        %v5335 = vrot.slane %v5333, 3
        %v5336 = vshll.u32 %v4207, 16
        %v5338 = vrot.slane %v5336, 4
        %v5339 = vor.u32 %v5335, %v5338
        %v5341 = vshrl.u32 %v4208, 16
        %v5343 = vrot.slane %v5341, 3
        %v5344 = vshll.u32 %v4208, 16
        %v5346 = vrot.slane %v5344, 4
        %v5347 = vor.u32 %v5343, %v5346
        %v5348 = vsel %vm1302, %v5339, %v5347
        %v5350 = vshrl.u32 %v4274, 16
        %v5352 = vrot.slane %v5350, 3
        %v5353 = vshll.u32 %v4274, 16
        %v5355 = vrot.slane %v5353, 4
        %v5356 = vor.u32 %v5352, %v5355
        %v5357 = vsel %vm1302, %v5356, %v5356
        %v5359 = vshrl.u32 %v4325, 16
        %v5361 = vrot.slane %v5359, 3
        %v5362 = vshll.u32 %v4325, 16
        %v5364 = vrot.slane %v5362, 4
        %v5365 = vor.u32 %v5361, %v5364
        %v5367 = vshrl.u32 %v4327, 16
        %v5369 = vrot.slane %v5367, 3
        %v5370 = vshll.u32 %v4327, 16
        %v5372 = vrot.slane %v5370, 4
        %v5373 = vor.u32 %v5369, %v5372
        %v5374 = vsel %vm1302, %v5365, %v5373
        %v5376 = vshrl.u32 %v4391, 16
        %v5378 = vrot.slane %v5376, 3
        %v5379 = vshll.u32 %v4391, 16
        %v5381 = vrot.slane %v5379, 4
        %v5382 = vor.u32 %v5378, %v5381
        %v5384 = vshrl.u32 %v4392, 16
        %v5386 = vrot.slane %v5384, 3
        %v5387 = vshll.u32 %v4392, 16
        %v5389 = vrot.slane %v5387, 4
        %v5390 = vor.u32 %v5386, %v5389
        %v5391 = vsel %vm1302, %v5382, %v5390
        %v5393 = vshrl.u32 %v4458, 16
        %v5395 = vrot.slane %v5393, 3
        %v5396 = vshll.u32 %v4458, 16
        %v5398 = vrot.slane %v5396, 4
        %v5399 = vor.u32 %v5395, %v5398
        %v5400 = vsel %vm1302, %v5399, %v5399
        %v5402 = vshrl.u32 %v4509, 16
        %v5404 = vrot.slane %v5402, 3
        %v5405 = vshll.u32 %v4509, 16
        %v5407 = vrot.slane %v5405, 4
        %v5408 = vor.u32 %v5404, %v5407
        %v5410 = vshrl.u32 %v4511, 16
        %v5412 = vrot.slane %v5410, 3
        %v5413 = vshll.u32 %v4511, 16
        %v5415 = vrot.slane %v5413, 4
        %v5416 = vor.u32 %v5412, %v5415
        %v5417 = vsel %vm1302, %v5408, %v5416
        %v5419 = vshrl.u32 %v4025, 16
        %v5421 = vrot.slane %v5419, 3
        %v5422 = vshll.u32 %v4025, 16
        %v5424 = vrot.slane %v5422, 4
        %v5425 = vor.u32 %v5421, %v5424
        %v5427 = vshrl.u32 %v4026, 16
        %v5429 = vrot.slane %v5427, 3
        %v5430 = vshll.u32 %v4026, 16
        %v5432 = vrot.slane %v5430, 4
        %v5433 = vor.u32 %v5429, %v5432
        %v5434 = vsel %vm1302, %v5425, %v5433
        %v5436 = vshrl.u32 %v4098, 16
        %v5438 = vrot.slane %v5436, 3
        %v5439 = vshll.u32 %v4098, 16
        %v5441 = vrot.slane %v5439, 4
        %v5442 = vor.u32 %v5438, %v5441
        %v5443 = vsel %vm1302, %v5442, %v5442
        %v5445 = vshrl.u32 %v4144, 16
        %v5447 = vrot.slane %v5445, 3
        %v5448 = vshll.u32 %v4144, 16
        %v5450 = vrot.slane %v5448, 4
        %v5451 = vor.u32 %v5447, %v5450
        %v5453 = vshrl.u32 %v4146, 16
        %v5455 = vrot.slane %v5453, 3
        %v5456 = vshll.u32 %v4146, 16
        %v5458 = vrot.slane %v5456, 4
        %v5459 = vor.u32 %v5455, %v5458
        %v5460 = vsel %vm1302, %v5451, %v5459
        %v5462 = vshrl.u32 %v4209, 16
        %v5464 = vrot.slane %v5462, 3
        %v5465 = vshll.u32 %v4209, 16
        %v5467 = vrot.slane %v5465, 4
        %v5468 = vor.u32 %v5464, %v5467
        %v5470 = vshrl.u32 %v4210, 16
        %v5472 = vrot.slane %v5470, 3
        %v5473 = vshll.u32 %v4210, 16
        %v5475 = vrot.slane %v5473, 4
        %v5476 = vor.u32 %v5472, %v5475
        %v5477 = vsel %vm1302, %v5468, %v5476
        %v5479 = vshrl.u32 %v4282, 16
        %v5481 = vrot.slane %v5479, 3
        %v5482 = vshll.u32 %v4282, 16
        %v5484 = vrot.slane %v5482, 4
        %v5485 = vor.u32 %v5481, %v5484
        %v5486 = vsel %vm1302, %v5485, %v5485
        %v5488 = vshrl.u32 %v4328, 16
        %v5490 = vrot.slane %v5488, 3
        %v5491 = vshll.u32 %v4328, 16
        %v5493 = vrot.slane %v5491, 4
        %v5494 = vor.u32 %v5490, %v5493
        %v5496 = vshrl.u32 %v4330, 16
        %v5498 = vrot.slane %v5496, 3
        %v5499 = vshll.u32 %v4330, 16
        %v5501 = vrot.slane %v5499, 4
        %v5502 = vor.u32 %v5498, %v5501
        %v5503 = vsel %vm1302, %v5494, %v5502
        %v5505 = vshrl.u32 %v4393, 16
        %v5507 = vrot.slane %v5505, 3
        %v5508 = vshll.u32 %v4393, 16
        %v5510 = vrot.slane %v5508, 4
        %v5511 = vor.u32 %v5507, %v5510
        %v5513 = vshrl.u32 %v4394, 16
        %v5515 = vrot.slane %v5513, 3
        %v5516 = vshll.u32 %v4394, 16
        %v5518 = vrot.slane %v5516, 4
        %v5519 = vor.u32 %v5515, %v5518
        %v5520 = vsel %vm1302, %v5511, %v5519
        %v5522 = vshrl.u32 %v4466, 16
        %v5524 = vrot.slane %v5522, 3
        %v5525 = vshll.u32 %v4466, 16
        %v5527 = vrot.slane %v5525, 4
        %v5528 = vor.u32 %v5524, %v5527
        %v5529 = vsel %vm1302, %v5528, %v5528
        %v5531 = vshrl.u32 %v4512, 16
        %v5533 = vrot.slane %v5531, 3
        %v5534 = vshll.u32 %v4512, 16
        %v5536 = vrot.slane %v5534, 4
        %v5537 = vor.u32 %v5533, %v5536
        %v5539 = vshrl.u32 %v4514, 16
        %v5541 = vrot.slane %v5539, 3
        %v5542 = vshll.u32 %v4514, 16
        %v5544 = vrot.slane %v5542, 4
        %v5545 = vor.u32 %v5541, %v5544
        %v5546 = vsel %vm1302, %v5537, %v5545
        %v5619 = vld [vmem:[#allocation9] sm:$0xf]
        %v5620 = vld [vmem:[#allocation9 + $0x4] sm:$0xf]
        %v5621 = vld [vmem:[#allocation9 + $0x8] sm:$0xf]
        %v5622 = vld [vmem:[#allocation9 + $0xc] sm:$0xf]
        %v5623 = vld [vmem:[#allocation9 + $0x10] sm:$0xf]
        %v5624 = vld [vmem:[#allocation9 + $0x14] sm:$0xf]
        %v5625 = vld [vmem:[#allocation9 + $0x18] sm:$0xf]
        %v5626 = vld [vmem:[#allocation9 + $0x1c] sm:$0xf]
        %v5627 = vld [vmem:[#allocation9 + $0x20] sm:$0xf]
        %v5628 = vld [vmem:[#allocation9 + $0x24] sm:$0xf]
        %v5629 = vld [vmem:[#allocation9 + $0x28] sm:$0xf]
        %v5630 = vld [vmem:[#allocation9 + $0x2c] sm:$0xf]
        %v5631 = vld [vmem:[#allocation9 + $0x30] sm:$0xf]
        %v5632 = vld [vmem:[#allocation9 + $0x34] sm:$0xf]
        %v5633 = vld [vmem:[#allocation9 + $0x38] sm:$0xf]
        %v5634 = vld [vmem:[#allocation9 + $0x3c] sm:$0xf]
        %v5635 = vld [vmem:[#allocation9 + $0x40] sm:$0xf]
        %v5636 = vld [vmem:[#allocation9 + $0x44] sm:$0xf]
        %v5637 = vld [vmem:[#allocation9 + $0x48] sm:$0xf]
        %v5638 = vld [vmem:[#allocation9 + $0x4c] sm:$0xf]
        %v5639 = vld [vmem:[#allocation9 + $0x50] sm:$0xf]
        %v5640 = vld [vmem:[#allocation9 + $0x54] sm:$0xf]
        %v5641 = vld [vmem:[#allocation9 + $0x58] sm:$0xf]
        %v5642 = vld [vmem:[#allocation9 + $0x5c] sm:$0xf]
        %v5643 = vld [vmem:[#allocation9 + $0x60] sm:$0xf]
        %v5644 = vld [vmem:[#allocation9 + $0x64] sm:$0xf]
        %v5645 = vld [vmem:[#allocation9 + $0x68] sm:$0xf]
        %v5646 = vld [vmem:[#allocation9 + $0x6c] sm:$0xf]
        %v5647 = vld [vmem:[#allocation9 + $0x70] sm:$0xf]
        %v5648 = vld [vmem:[#allocation9 + $0x74] sm:$0xf]
        %v5649 = vld [vmem:[#allocation9 + $0x78] sm:$0xf]
        %v5650 = vld [vmem:[#allocation9 + $0x7c] sm:$0xf]
        %v5651 = vld [vmem:[#allocation9 + $0x80] sm:$0xf]
        %v5652 = vld [vmem:[#allocation9 + $0x84] sm:$0xf]
        %v5653 = vld [vmem:[#allocation9 + $0x88] sm:$0xf]
        %v5654 = vld [vmem:[#allocation9 + $0x8c] sm:$0xf]
        %v5655 = vld [vmem:[#allocation9 + $0x90] sm:$0xf]
        %v5656 = vld [vmem:[#allocation9 + $0x94] sm:$0xf]
        %v5657 = vld [vmem:[#allocation9 + $0x98] sm:$0xf]
        %v5658 = vld [vmem:[#allocation9 + $0x9c] sm:$0xf]
        %v5659 = vld [vmem:[#allocation9 + $0xa0] sm:$0xf]
        %v5660 = vld [vmem:[#allocation9 + $0xa4] sm:$0xf]
        %v5661 = vld [vmem:[#allocation9 + $0xa8] sm:$0xf]
        %v5662 = vld [vmem:[#allocation9 + $0xac] sm:$0xf]
        %v5663 = vld [vmem:[#allocation9 + $0xb0] sm:$0xf]
        %v5664 = vld [vmem:[#allocation9 + $0xb4] sm:$0xf]
        %v5665 = vld [vmem:[#allocation9 + $0xb8] sm:$0xf]
        %v5666 = vld [vmem:[#allocation9 + $0xbc] sm:$0xf]
        %v5667 = vld [vmem:[#allocation9 + $0xc0] sm:$0xf]
        %v5668 = vld [vmem:[#allocation9 + $0xc4] sm:$0xf]
        %v5669 = vld [vmem:[#allocation9 + $0xc8] sm:$0xf]
        %v5670 = vld [vmem:[#allocation9 + $0xcc] sm:$0xf]
        %v5671 = vld [vmem:[#allocation9 + $0xd0] sm:$0xf]
        %v5672 = vld [vmem:[#allocation9 + $0xd4] sm:$0xf]
        %v5673 = vld [vmem:[#allocation9 + $0xd8] sm:$0xf]
        %v5674 = vld [vmem:[#allocation9 + $0xdc] sm:$0xf]
        %v5675 = vld [vmem:[#allocation9 + $0xe0] sm:$0xf]
        %v5676 = vld [vmem:[#allocation9 + $0xe4] sm:$0xf]
        %v5677 = vld [vmem:[#allocation9 + $0xe8] sm:$0xf]
        %v5678 = vld [vmem:[#allocation9 + $0xec] sm:$0xf]
        %v5679 = vld [vmem:[#allocation9 + $0xf0] sm:$0xf]
        %v5680 = vld [vmem:[#allocation9 + $0xf4] sm:$0xf]
        %v5681 = vld [vmem:[#allocation9 + $0xf8] sm:$0xf]
        %v5682 = vld [vmem:[#allocation9 + $0xfc] sm:$0xf]
        %v5683 = vld [vmem:[#allocation9 + $0x100] sm:$0xf]
        %v5684 = vld [vmem:[#allocation9 + $0x104] sm:$0xf]
        %v5685 = vld [vmem:[#allocation9 + $0x108] sm:$0xf]
        %v5686 = vld [vmem:[#allocation9 + $0x10c] sm:$0xf]
        %v5687 = vld [vmem:[#allocation9 + $0x110] sm:$0xf]
        %v5688 = vld [vmem:[#allocation9 + $0x114] sm:$0xf]
        %v5689 = vld [vmem:[#allocation9 + $0x118] sm:$0xf]
        %v5690 = vld [vmem:[#allocation9 + $0x11c] sm:$0xf]
        %v5691 = vld [vmem:[#allocation9 + $0x120] sm:$0xf]
        %v5692 = vld [vmem:[#allocation9 + $0x124] sm:$0xf]
        %v5693 = vld [vmem:[#allocation9 + $0x128] sm:$0xf]
        %v5694 = vld [vmem:[#allocation9 + $0x12c] sm:$0xf]
        %v5695 = vld [vmem:[#allocation9 + $0x130] sm:$0xf]
        %v5696 = vld [vmem:[#allocation9 + $0x134] sm:$0xf]
        %v5697 = vld [vmem:[#allocation9 + $0x138] sm:$0xf]
        %v5698 = vld [vmem:[#allocation9 + $0x13c] sm:$0xf]
        %v5699 = vld [vmem:[#allocation9 + $0x140] sm:$0xf]
        %v5700 = vld [vmem:[#allocation9 + $0x144] sm:$0xf]
        %v5701 = vld [vmem:[#allocation9 + $0x148] sm:$0xf]
        %v5702 = vld [vmem:[#allocation9 + $0x14c] sm:$0xf]
        %v5703 = vld [vmem:[#allocation9 + $0x150] sm:$0xf]
        %v5704 = vld [vmem:[#allocation9 + $0x154] sm:$0xf]
        %v5705 = vld [vmem:[#allocation9 + $0x158] sm:$0xf]
        %v5706 = vld [vmem:[#allocation9 + $0x15c] sm:$0xf]
        %v5707 = vld [vmem:[#allocation9 + $0x160] sm:$0xf]
        %v5708 = vld [vmem:[#allocation9 + $0x164] sm:$0xf]
        %v5709 = vld [vmem:[#allocation9 + $0x168] sm:$0xf]
        %v5710 = vld [vmem:[#allocation9 + $0x16c] sm:$0xf]
        %v5711 = vld [vmem:[#allocation9 + $0x170] sm:$0xf]
        %v5712 = vld [vmem:[#allocation9 + $0x174] sm:$0xf]
        %v5713 = vld [vmem:[#allocation9 + $0x178] sm:$0xf]
        %v5714 = vld [vmem:[#allocation9 + $0x17c] sm:$0xf]
        %v5715 = vld [vmem:[#allocation9 + $0x180] sm:$0xf]
        %v5716 = vld [vmem:[#allocation9 + $0x184] sm:$0xf]
        %v5717 = vld [vmem:[#allocation9 + $0x188] sm:$0xf]
        %v5718 = vld [vmem:[#allocation9 + $0x18c] sm:$0xf]
        %v5719 = vld [vmem:[#allocation9 + $0x190] sm:$0xf]
        %v5720 = vld [vmem:[#allocation9 + $0x194] sm:$0xf]
        %v5721 = vld [vmem:[#allocation9 + $0x198] sm:$0xf]
        %v5722 = vld [vmem:[#allocation9 + $0x19c] sm:$0xf]
        %v5723 = vld [vmem:[#allocation9 + $0x1a0] sm:$0xf]
        %v5724 = vld [vmem:[#allocation9 + $0x1a4] sm:$0xf]
        %v5725 = vld [vmem:[#allocation9 + $0x1a8] sm:$0xf]
        %v5726 = vld [vmem:[#allocation9 + $0x1ac] sm:$0xf]
        %v5727 = vld [vmem:[#allocation9 + $0x1b0] sm:$0xf]
        %v5728 = vld [vmem:[#allocation9 + $0x1b4] sm:$0xf]
        %v5729 = vld [vmem:[#allocation9 + $0x1b8] sm:$0xf]
        %v5730 = vld [vmem:[#allocation9 + $0x1bc] sm:$0xf]
        %v5731 = vld [vmem:[#allocation9 + $0x1c0] sm:$0xf]
        %v5732 = vld [vmem:[#allocation9 + $0x1c4] sm:$0xf]
        %v5733 = vld [vmem:[#allocation9 + $0x1c8] sm:$0xf]
        %v5734 = vld [vmem:[#allocation9 + $0x1cc] sm:$0xf]
        %v5735 = vld [vmem:[#allocation9 + $0x1d0] sm:$0xf]
        %v5736 = vld [vmem:[#allocation9 + $0x1d4] sm:$0xf]
        %v5737 = vld [vmem:[#allocation9 + $0x1d8] sm:$0xf]
        %v5738 = vld [vmem:[#allocation9 + $0x1dc] sm:$0xf]
        %v5739 = vld [vmem:[#allocation9 + $0x1e0] sm:$0xf]
        %v5740 = vld [vmem:[#allocation9 + $0x1e4] sm:$0xf]
        %v5741 = vld [vmem:[#allocation9 + $0x1e8] sm:$0xf]
        %v5742 = vld [vmem:[#allocation9 + $0x1ec] sm:$0xf]
        %v5743 = vld [vmem:[#allocation9 + $0x1f0] sm:$0xf]
        %v5744 = vld [vmem:[#allocation9 + $0x1f4] sm:$0xf]
        %v5745 = vld [vmem:[#allocation9 + $0x1f8] sm:$0xf]
        %v5746 = vld [vmem:[#allocation9 + $0x1fc] sm:$0xf]
        %v5747 = vld [vmem:[#allocation9 + $0x200] sm:$0xf]
        %v5748 = vld [vmem:[#allocation9 + $0x204] sm:$0xf]
        %v5749 = vld [vmem:[#allocation9 + $0x208] sm:$0xf]
        %v5750 = vld [vmem:[#allocation9 + $0x20c] sm:$0xf]
        %v5751 = vld [vmem:[#allocation9 + $0x210] sm:$0xf]
        %v5752 = vld [vmem:[#allocation9 + $0x214] sm:$0xf]
        %v5753 = vld [vmem:[#allocation9 + $0x218] sm:$0xf]
        %v5754 = vld [vmem:[#allocation9 + $0x21c] sm:$0xf]
        %v5755 = vld [vmem:[#allocation9 + $0x220] sm:$0xf]
        %v5756 = vld [vmem:[#allocation9 + $0x224] sm:$0xf]
        %v5757 = vld [vmem:[#allocation9 + $0x228] sm:$0xf]
        %v5758 = vld [vmem:[#allocation9 + $0x22c] sm:$0xf]
        %v5759 = vld [vmem:[#allocation9 + $0x230] sm:$0xf]
        %v5760 = vld [vmem:[#allocation9 + $0x234] sm:$0xf]
        %v5761 = vld [vmem:[#allocation9 + $0x238] sm:$0xf]
        %v5762 = vld [vmem:[#allocation9 + $0x23c] sm:$0xf]
        %v5763 = vld [vmem:[%s4] sm:$0x1]
        %v5765 = vperm.slane %v5763, 0
        %v5911 = vunpack.c.l.b16 %v5619
        %v5912 = vunpack.c.l.b16 %v5620
        %v5913 = vunpack.c.l.b16 %v5621
        %v5914 = vunpack.c.l.b16 %v5622
        %v5915 = vunpack.c.l.b16 %v5623
        %v5916 = vunpack.c.l.b16 %v5624
        %v5917 = vunpack.c.l.b16 %v5625
        %v5918 = vunpack.c.l.b16 %v5626
        %v5919 = vunpack.c.l.b16 %v5627
        %v5920 = vunpack.c.l.b16 %v5628
        %v5921 = vunpack.c.l.b16 %v5629
        %v5922 = vunpack.c.l.b16 %v5630
        %v5923 = vunpack.c.l.b16 %v5631
        %v5924 = vunpack.c.l.b16 %v5632
        %v5925 = vunpack.c.l.b16 %v5633
        %v5926 = vunpack.c.l.b16 %v5634
        %v5927 = vunpack.c.l.b16 %v5635
        %v5928 = vunpack.c.l.b16 %v5636
        %v5929 = vunpack.c.l.b16 %v5637
        %v5930 = vunpack.c.l.b16 %v5638
        %v5931 = vunpack.c.l.b16 %v5639
        %v5932 = vunpack.c.l.b16 %v5640
        %v5933 = vunpack.c.l.b16 %v5641
        %v5934 = vunpack.c.l.b16 %v5642
        %v5935 = vunpack.c.l.b16 %v5643
        %v5936 = vunpack.c.l.b16 %v5644
        %v5937 = vunpack.c.l.b16 %v5645
        %v5938 = vunpack.c.l.b16 %v5646
        %v5939 = vunpack.c.l.b16 %v5647
        %v5940 = vunpack.c.l.b16 %v5648
        %v5941 = vunpack.c.l.b16 %v5649
        %v5942 = vunpack.c.l.b16 %v5650
        %v5943 = vunpack.c.l.b16 %v5651
        %v5944 = vunpack.c.l.b16 %v5652
        %v5945 = vunpack.c.l.b16 %v5653
        %v5946 = vunpack.c.l.b16 %v5654
        %v5947 = vunpack.c.l.b16 %v5655
        %v5948 = vunpack.c.l.b16 %v5656
        %v5949 = vunpack.c.l.b16 %v5657
        %v5950 = vunpack.c.l.b16 %v5658
        %v5951 = vunpack.c.l.b16 %v5659
        %v5952 = vunpack.c.l.b16 %v5660
        %v5953 = vunpack.c.l.b16 %v5661
        %v5954 = vunpack.c.l.b16 %v5662
        %v5955 = vunpack.c.l.b16 %v5663
        %v5956 = vunpack.c.l.b16 %v5664
        %v5957 = vunpack.c.l.b16 %v5665
        %v5958 = vunpack.c.l.b16 %v5666
        %v5959 = vunpack.c.l.b16 %v5667
        %v5960 = vunpack.c.l.b16 %v5668
        %v5961 = vunpack.c.l.b16 %v5669
        %v5962 = vunpack.c.l.b16 %v5670
        %v5963 = vunpack.c.l.b16 %v5671
        %v5964 = vunpack.c.l.b16 %v5672
        %v5965 = vunpack.c.l.b16 %v5673
        %v5966 = vunpack.c.l.b16 %v5674
        %v5967 = vunpack.c.l.b16 %v5675
        %v5968 = vunpack.c.l.b16 %v5676
        %v5969 = vunpack.c.l.b16 %v5677
        %v5970 = vunpack.c.l.b16 %v5678
        %v5971 = vunpack.c.l.b16 %v5679
        %v5972 = vunpack.c.l.b16 %v5680
        %v5973 = vunpack.c.l.b16 %v5681
        %v5974 = vunpack.c.l.b16 %v5682
        %v5975 = vunpack.c.l.b16 %v5683
        %v5976 = vunpack.c.l.b16 %v5684
        %v5977 = vunpack.c.l.b16 %v5685
        %v5978 = vunpack.c.l.b16 %v5686
        %v5979 = vunpack.c.l.b16 %v5687
        %v5980 = vunpack.c.l.b16 %v5688
        %v5981 = vunpack.c.l.b16 %v5689
        %v5982 = vunpack.c.l.b16 %v5690
        %v5983 = vunpack.c.l.b16 %v5691
        %v5984 = vunpack.c.l.b16 %v5692
        %v5985 = vunpack.c.l.b16 %v5693
        %v5986 = vunpack.c.l.b16 %v5694
        %v5987 = vunpack.c.l.b16 %v5695
        %v5988 = vunpack.c.l.b16 %v5696
        %v5989 = vunpack.c.l.b16 %v5697
        %v5990 = vunpack.c.l.b16 %v5698
        %v5991 = vunpack.c.l.b16 %v5699
        %v5992 = vunpack.c.l.b16 %v5700
        %v5993 = vunpack.c.l.b16 %v5701
        %v5994 = vunpack.c.l.b16 %v5702
        %v5995 = vunpack.c.l.b16 %v5703
        %v5996 = vunpack.c.l.b16 %v5704
        %v5997 = vunpack.c.l.b16 %v5705
        %v5998 = vunpack.c.l.b16 %v5706
        %v5999 = vunpack.c.l.b16 %v5707
        %v6000 = vunpack.c.l.b16 %v5708
        %v6001 = vunpack.c.l.b16 %v5709
        %v6002 = vunpack.c.l.b16 %v5710
        %v6003 = vunpack.c.l.b16 %v5711
        %v6004 = vunpack.c.l.b16 %v5712
        %v6005 = vunpack.c.l.b16 %v5713
        %v6006 = vunpack.c.l.b16 %v5714
        %v6007 = vunpack.c.l.b16 %v5715
        %v6008 = vunpack.c.l.b16 %v5716
        %v6009 = vunpack.c.l.b16 %v5717
        %v6010 = vunpack.c.l.b16 %v5718
        %v6011 = vunpack.c.l.b16 %v5719
        %v6012 = vunpack.c.l.b16 %v5720
        %v6013 = vunpack.c.l.b16 %v5721
        %v6014 = vunpack.c.l.b16 %v5722
        %v6015 = vunpack.c.l.b16 %v5723
        %v6016 = vunpack.c.l.b16 %v5724
        %v6017 = vunpack.c.l.b16 %v5725
        %v6018 = vunpack.c.l.b16 %v5726
        %v6019 = vunpack.c.l.b16 %v5727
        %v6020 = vunpack.c.l.b16 %v5728
        %v6021 = vunpack.c.l.b16 %v5729
        %v6022 = vunpack.c.l.b16 %v5730
        %v6023 = vunpack.c.l.b16 %v5731
        %v6024 = vunpack.c.l.b16 %v5732
        %v6025 = vunpack.c.l.b16 %v5733
        %v6026 = vunpack.c.l.b16 %v5734
        %v6027 = vunpack.c.l.b16 %v5735
        %v6028 = vunpack.c.l.b16 %v5736
        %v6029 = vunpack.c.l.b16 %v5737
        %v6030 = vunpack.c.l.b16 %v5738
        %v6031 = vunpack.c.l.b16 %v5739
        %v6032 = vunpack.c.l.b16 %v5740
        %v6033 = vunpack.c.l.b16 %v5741
        %v6034 = vunpack.c.l.b16 %v5742
        %v6035 = vunpack.c.l.b16 %v5743
        %v6036 = vunpack.c.l.b16 %v5744
        %v6037 = vunpack.c.l.b16 %v5745
        %v6038 = vunpack.c.l.b16 %v5746
        %v6039 = vunpack.c.l.b16 %v5747
        %v6040 = vunpack.c.l.b16 %v5748
        %v6041 = vunpack.c.l.b16 %v5749
        %v6042 = vunpack.c.l.b16 %v5750
        %v6043 = vunpack.c.l.b16 %v5751
        %v6044 = vunpack.c.l.b16 %v5752
        %v6045 = vunpack.c.l.b16 %v5753
        %v6046 = vunpack.c.l.b16 %v5754
        %v6047 = vunpack.c.l.b16 %v5755
        %v6048 = vunpack.c.l.b16 %v5756
        %v6049 = vunpack.c.l.b16 %v5757
        %v6050 = vunpack.c.l.b16 %v5758
        %v6051 = vunpack.c.l.b16 %v5759
        %v6052 = vunpack.c.l.b16 %v5760
        %v6053 = vunpack.c.l.b16 %v5761
        %v6054 = vunpack.c.l.b16 %v5762
        %v6055 = vpack.c.b16 %v5912, %v5911
        %v6056 = vpack.c.b16 %v5914, %v5913
        %v6057 = vpack.c.b16 %v5916, %v5915
        %v6058 = vpack.c.b16 %v5918, %v5917
        %v6059 = vpack.c.b16 %v5920, %v5919
        %v6060 = vpack.c.b16 %v5922, %v5921
        %v6061 = vpack.c.b16 %v5924, %v5923
        %v6062 = vpack.c.b16 %v5926, %v5925
        %v6063 = vpack.c.b16 %v5928, %v5927
        %v6064 = vpack.c.b16 %v5930, %v5929
        %v6065 = vpack.c.b16 %v5932, %v5931
        %v6066 = vpack.c.b16 %v5934, %v5933
        %v6067 = vpack.c.b16 %v5936, %v5935
        %v6068 = vpack.c.b16 %v5938, %v5937
        %v6069 = vpack.c.b16 %v5940, %v5939
        %v6070 = vpack.c.b16 %v5942, %v5941
        %v6071 = vpack.c.b16 %v5944, %v5943
        %v6072 = vpack.c.b16 %v5946, %v5945
        %v6073 = vpack.c.b16 %v5948, %v5947
        %v6074 = vpack.c.b16 %v5950, %v5949
        %v6075 = vpack.c.b16 %v5952, %v5951
        %v6076 = vpack.c.b16 %v5954, %v5953
        %v6077 = vpack.c.b16 %v5956, %v5955
        %v6078 = vpack.c.b16 %v5958, %v5957
        %v6079 = vpack.c.b16 %v5960, %v5959
        %v6080 = vpack.c.b16 %v5962, %v5961
        %v6081 = vpack.c.b16 %v5964, %v5963
        %v6082 = vpack.c.b16 %v5966, %v5965
        %v6083 = vpack.c.b16 %v5968, %v5967
        %v6084 = vpack.c.b16 %v5970, %v5969
        %v6085 = vpack.c.b16 %v5972, %v5971
        %v6086 = vpack.c.b16 %v5974, %v5973
        %v6087 = vpack.c.b16 %v5976, %v5975
        %v6088 = vpack.c.b16 %v5978, %v5977
        %v6089 = vpack.c.b16 %v5980, %v5979
        %v6090 = vpack.c.b16 %v5982, %v5981
        %v6091 = vpack.c.b16 %v5984, %v5983
        %v6092 = vpack.c.b16 %v5986, %v5985
        %v6093 = vpack.c.b16 %v5988, %v5987
        %v6094 = vpack.c.b16 %v5990, %v5989
        %v6095 = vpack.c.b16 %v5992, %v5991
        %v6096 = vpack.c.b16 %v5994, %v5993
        %v6097 = vpack.c.b16 %v5996, %v5995
        %v6098 = vpack.c.b16 %v5998, %v5997
        %v6099 = vpack.c.b16 %v6000, %v5999
        %v6100 = vpack.c.b16 %v6002, %v6001
        %v6101 = vpack.c.b16 %v6004, %v6003
        %v6102 = vpack.c.b16 %v6006, %v6005
        %v6103 = vpack.c.b16 %v6008, %v6007
        %v6104 = vpack.c.b16 %v6010, %v6009
        %v6105 = vpack.c.b16 %v6012, %v6011
        %v6106 = vpack.c.b16 %v6014, %v6013
        %v6107 = vpack.c.b16 %v6016, %v6015
        %v6108 = vpack.c.b16 %v6018, %v6017
        %v6109 = vpack.c.b16 %v6020, %v6019
        %v6110 = vpack.c.b16 %v6022, %v6021
        %v6111 = vpack.c.b16 %v6024, %v6023
        %v6112 = vpack.c.b16 %v6026, %v6025
        %v6113 = vpack.c.b16 %v6028, %v6027
        %v6114 = vpack.c.b16 %v6030, %v6029
        %v6115 = vpack.c.b16 %v6032, %v6031
        %v6116 = vpack.c.b16 %v6034, %v6033
        %v6117 = vpack.c.b16 %v6036, %v6035
        %v6118 = vpack.c.b16 %v6038, %v6037
        %v6119 = vpack.c.b16 %v6040, %v6039
        %v6120 = vpack.c.b16 %v6042, %v6041
        %v6121 = vpack.c.b16 %v6044, %v6043
        %v6122 = vpack.c.b16 %v6046, %v6045
        %v6123 = vpack.c.b16 %v6048, %v6047
        %v6124 = vpack.c.b16 %v6050, %v6049
        %v6125 = vpack.c.b16 %v6052, %v6051
        %v6126 = vpack.c.b16 %v6054, %v6053
        %6199 = vmatpush.bf16.msra.mxu0 %v6062
        %6200 = vmatpush.bf16.msra.mxu0 %v6061
        %6201 = vmatpush.bf16.msra.mxu0 %v6060
        %6202 = vmatpush.bf16.msra.mxu0 %v6059
        %6203 = vmatpush.bf16.msra.mxu0 %v6058
        %6204 = vmatpush.bf16.msra.mxu0 %v6057
        %6205 = vmatpush.bf16.msra.mxu0 %v6056
        %6206 = vmatpush.bf16.msra.mxu0 %v6055
        %6207 = vmatmul.bf16.gmra.mxu0 %v4531
        %v6208 = vpop.f32.mrf.mxu0
        %v6209 = vadd.f32 %v5765, %v6208
        %v6210 = vpop.f32.mrf.mxu0
        %v6211 = vadd.f32 %v5765, %v6210
        %6212 = vmatmul.bf16.gmra.mxu0 %v4660
        %v6213 = vpop.f32.mrf.mxu0
        %v6214 = vadd.f32 %v5765, %v6213
        %v6215 = vpop.f32.mrf.mxu0
        %v6216 = vadd.f32 %v5765, %v6215
        %6217 = vmatmul.bf16.gmra.mxu0 %v4789
        %v6218 = vpop.f32.mrf.mxu0
        %v6219 = vadd.f32 %v5765, %v6218
        %v6220 = vpop.f32.mrf.mxu0
        %v6221 = vadd.f32 %v5765, %v6220
        %6222 = vmatmul.bf16.gmra.mxu0 %v4918
        %v6223 = vpop.f32.mrf.mxu0
        %v6224 = vadd.f32 %v5765, %v6223
        %v6225 = vpop.f32.mrf.mxu0
        %v6226 = vadd.f32 %v5765, %v6225
        %6227 = vmatmul.bf16.gmra.mxu0 %v5047
        %v6228 = vpop.f32.mrf.mxu0
        %v6229 = vadd.f32 %v5765, %v6228
        %v6230 = vpop.f32.mrf.mxu0
        %v6231 = vadd.f32 %v5765, %v6230
        %6232 = vmatmul.bf16.gmra.mxu0 %v5176
        %v6233 = vpop.f32.mrf.mxu0
        %v6234 = vadd.f32 %v5765, %v6233
        %v6235 = vpop.f32.mrf.mxu0
        %v6236 = vadd.f32 %v5765, %v6235
        %6237 = vmatmul.bf16.gmra.mxu0 %v5305
        %v6238 = vpop.f32.mrf.mxu0
        %v6239 = vadd.f32 %v5765, %v6238
        %v6240 = vpop.f32.mrf.mxu0
        %v6241 = vadd.f32 %v5765, %v6240
        %6242 = vmatmul.bf16.gmra.mxu0 %v5434
        %v6243 = vpop.f32.mrf.mxu0
        %v6244 = vadd.f32 %v5765, %v6243
        %v6245 = vpop.f32.mrf.mxu0
        %v6246 = vadd.f32 %v5765, %v6245
        %6247 = vdwg.mxu0
        %6248 = vmatpush.bf16.msra.mxu0 %v6070
        %6249 = vmatpush.bf16.msra.mxu0 %v6069
        %6250 = vmatpush.bf16.msra.mxu0 %v6068
        %6251 = vmatpush.bf16.msra.mxu0 %v6067
        %6252 = vmatpush.bf16.msra.mxu0 %v6066
        %6253 = vmatpush.bf16.msra.mxu0 %v6065
        %6254 = vmatpush.bf16.msra.mxu0 %v6064
        %6255 = vmatpush.bf16.msra.mxu0 %v6063
        %6256 = vmatmul.bf16.gmra.mxu0 %v4540
        %v6257 = vpop.f32.mrf.mxu0
        %v6258 = vadd.f32 %v6209, %v6257
        %v6259 = vpop.f32.mrf.mxu0
        %v6260 = vadd.f32 %v6211, %v6259
        %6261 = vmatmul.bf16.gmra.mxu0 %v4669
        %v6262 = vpop.f32.mrf.mxu0
        %v6263 = vadd.f32 %v6214, %v6262
        %v6264 = vpop.f32.mrf.mxu0
        %v6265 = vadd.f32 %v6216, %v6264
        %6266 = vmatmul.bf16.gmra.mxu0 %v4798
        %v6267 = vpop.f32.mrf.mxu0
        %v6268 = vadd.f32 %v6219, %v6267
        %v6269 = vpop.f32.mrf.mxu0
        %v6270 = vadd.f32 %v6221, %v6269
        %6271 = vmatmul.bf16.gmra.mxu0 %v4927
        %v6272 = vpop.f32.mrf.mxu0
        %v6273 = vadd.f32 %v6224, %v6272
        %v6274 = vpop.f32.mrf.mxu0
        %v6275 = vadd.f32 %v6226, %v6274
        %6276 = vmatmul.bf16.gmra.mxu0 %v5056
        %v6277 = vpop.f32.mrf.mxu0
        %v6278 = vadd.f32 %v6229, %v6277
        %v6279 = vpop.f32.mrf.mxu0
        %v6280 = vadd.f32 %v6231, %v6279
        %6281 = vmatmul.bf16.gmra.mxu0 %v5185
        %v6282 = vpop.f32.mrf.mxu0
        %v6283 = vadd.f32 %v6234, %v6282
        %v6284 = vpop.f32.mrf.mxu0
        %v6285 = vadd.f32 %v6236, %v6284
        %6286 = vmatmul.bf16.gmra.mxu0 %v5314
        %v6287 = vpop.f32.mrf.mxu0
        %v6288 = vadd.f32 %v6239, %v6287
        %v6289 = vpop.f32.mrf.mxu0
        %v6290 = vadd.f32 %v6241, %v6289
        %6291 = vmatmul.bf16.gmra.mxu0 %v5443
        %v6292 = vpop.f32.mrf.mxu0
        %v6293 = vadd.f32 %v6244, %v6292
        %v6294 = vpop.f32.mrf.mxu0
        %v6295 = vadd.f32 %v6246, %v6294
        %6296 = vdwg.mxu0
        %6297 = vmatpush.bf16.msra.mxu0 %v6078
        %6298 = vmatpush.bf16.msra.mxu0 %v6077
        %6299 = vmatpush.bf16.msra.mxu0 %v6076
        %6300 = vmatpush.bf16.msra.mxu0 %v6075
        %6301 = vmatpush.bf16.msra.mxu0 %v6074
        %6302 = vmatpush.bf16.msra.mxu0 %v6073
        %6303 = vmatpush.bf16.msra.mxu0 %v6072
        %6304 = vmatpush.bf16.msra.mxu0 %v6071
        %6305 = vmatmul.bf16.gmra.mxu0 %v4557
        %v6306 = vpop.f32.mrf.mxu0
        %v6307 = vadd.f32 %v6258, %v6306
        %v6308 = vpop.f32.mrf.mxu0
        %v6309 = vadd.f32 %v6260, %v6308
        %6310 = vmatmul.bf16.gmra.mxu0 %v4686
        %v6311 = vpop.f32.mrf.mxu0
        %v6312 = vadd.f32 %v6263, %v6311
        %v6313 = vpop.f32.mrf.mxu0
        %v6314 = vadd.f32 %v6265, %v6313
        %6315 = vmatmul.bf16.gmra.mxu0 %v4815
        %v6316 = vpop.f32.mrf.mxu0
        %v6317 = vadd.f32 %v6268, %v6316
        %v6318 = vpop.f32.mrf.mxu0
        %v6319 = vadd.f32 %v6270, %v6318
        %6320 = vmatmul.bf16.gmra.mxu0 %v4944
        %v6321 = vpop.f32.mrf.mxu0
        %v6322 = vadd.f32 %v6273, %v6321
        %v6323 = vpop.f32.mrf.mxu0
        %v6324 = vadd.f32 %v6275, %v6323
        %6325 = vmatmul.bf16.gmra.mxu0 %v5073
        %v6326 = vpop.f32.mrf.mxu0
        %v6327 = vadd.f32 %v6278, %v6326
        %v6328 = vpop.f32.mrf.mxu0
        %v6329 = vadd.f32 %v6280, %v6328
        %6330 = vmatmul.bf16.gmra.mxu0 %v5202
        %v6331 = vpop.f32.mrf.mxu0
        %v6332 = vadd.f32 %v6283, %v6331
        %v6333 = vpop.f32.mrf.mxu0
        %v6334 = vadd.f32 %v6285, %v6333
        %6335 = vmatmul.bf16.gmra.mxu0 %v5331
        %v6336 = vpop.f32.mrf.mxu0
        %v6337 = vadd.f32 %v6288, %v6336
        %v6338 = vpop.f32.mrf.mxu0
        %v6339 = vadd.f32 %v6290, %v6338
        %6340 = vmatmul.bf16.gmra.mxu0 %v5460
        %v6341 = vpop.f32.mrf.mxu0
        %v6342 = vadd.f32 %v6293, %v6341
        %v6343 = vpop.f32.mrf.mxu0
        %v6344 = vadd.f32 %v6295, %v6343
        %6345 = vdwg.mxu0
        %6346 = vmatpush.bf16.msra.mxu0 %v6086
        %6347 = vmatpush.bf16.msra.mxu0 %v6085
        %6348 = vmatpush.bf16.msra.mxu0 %v6084
        %6349 = vmatpush.bf16.msra.mxu0 %v6083
        %6350 = vmatpush.bf16.msra.mxu0 %v6082
        %6351 = vmatpush.bf16.msra.mxu0 %v6081
        %6352 = vmatpush.bf16.msra.mxu0 %v6080
        %6353 = vmatpush.bf16.msra.mxu0 %v6079
        %6354 = vmatmul.bf16.gmra.mxu0 %v4574
        %v6355 = vpop.f32.mrf.mxu0
        %v6356 = vadd.f32 %v6307, %v6355
        %v6357 = vpop.f32.mrf.mxu0
        %v6358 = vadd.f32 %v6309, %v6357
        %6359 = vmatmul.bf16.gmra.mxu0 %v4703
        %v6360 = vpop.f32.mrf.mxu0
        %v6361 = vadd.f32 %v6312, %v6360
        %v6362 = vpop.f32.mrf.mxu0
        %v6363 = vadd.f32 %v6314, %v6362
        %6364 = vmatmul.bf16.gmra.mxu0 %v4832
        %v6365 = vpop.f32.mrf.mxu0
        %v6366 = vadd.f32 %v6317, %v6365
        %v6367 = vpop.f32.mrf.mxu0
        %v6368 = vadd.f32 %v6319, %v6367
        %6369 = vmatmul.bf16.gmra.mxu0 %v4961
        %v6370 = vpop.f32.mrf.mxu0
        %v6371 = vadd.f32 %v6322, %v6370
        %v6372 = vpop.f32.mrf.mxu0
        %v6373 = vadd.f32 %v6324, %v6372
        %6374 = vmatmul.bf16.gmra.mxu0 %v5090
        %v6375 = vpop.f32.mrf.mxu0
        %v6376 = vadd.f32 %v6327, %v6375
        %v6377 = vpop.f32.mrf.mxu0
        %v6378 = vadd.f32 %v6329, %v6377
        %6379 = vmatmul.bf16.gmra.mxu0 %v5219
        %v6380 = vpop.f32.mrf.mxu0
        %v6381 = vadd.f32 %v6332, %v6380
        %v6382 = vpop.f32.mrf.mxu0
        %v6383 = vadd.f32 %v6334, %v6382
        %6384 = vmatmul.bf16.gmra.mxu0 %v5348
        %v6385 = vpop.f32.mrf.mxu0
        %v6386 = vadd.f32 %v6337, %v6385
        %v6387 = vpop.f32.mrf.mxu0
        %v6388 = vadd.f32 %v6339, %v6387
        %6389 = vmatmul.bf16.gmra.mxu0 %v5477
        %v6390 = vpop.f32.mrf.mxu0
        %v6391 = vadd.f32 %v6342, %v6390
        %v6392 = vpop.f32.mrf.mxu0
        %v6393 = vadd.f32 %v6344, %v6392
        %6394 = vdwg.mxu0
        %6395 = vmatpush.bf16.msra.mxu0 %v6094
        %6396 = vmatpush.bf16.msra.mxu0 %v6093
        %6397 = vmatpush.bf16.msra.mxu0 %v6092
        %6398 = vmatpush.bf16.msra.mxu0 %v6091
        %6399 = vmatpush.bf16.msra.mxu0 %v6090
        %6400 = vmatpush.bf16.msra.mxu0 %v6089
        %6401 = vmatpush.bf16.msra.mxu0 %v6088
        %6402 = vmatpush.bf16.msra.mxu0 %v6087
        %6403 = vmatmul.bf16.gmra.mxu0 %v4583
        %v6404 = vpop.f32.mrf.mxu0
        %v6405 = vadd.f32 %v6356, %v6404
        %v6406 = vpop.f32.mrf.mxu0
        %v6407 = vadd.f32 %v6358, %v6406
        %6408 = vmatmul.bf16.gmra.mxu0 %v4712
        %v6409 = vpop.f32.mrf.mxu0
        %v6410 = vadd.f32 %v6361, %v6409
        %v6411 = vpop.f32.mrf.mxu0
        %v6412 = vadd.f32 %v6363, %v6411
        %6413 = vmatmul.bf16.gmra.mxu0 %v4841
        %v6414 = vpop.f32.mrf.mxu0
        %v6415 = vadd.f32 %v6366, %v6414
        %v6416 = vpop.f32.mrf.mxu0
        %v6417 = vadd.f32 %v6368, %v6416
        %6418 = vmatmul.bf16.gmra.mxu0 %v4970
        %v6419 = vpop.f32.mrf.mxu0
        %v6420 = vadd.f32 %v6371, %v6419
        %v6421 = vpop.f32.mrf.mxu0
        %v6422 = vadd.f32 %v6373, %v6421
        %6423 = vmatmul.bf16.gmra.mxu0 %v5099
        %v6424 = vpop.f32.mrf.mxu0
        %v6425 = vadd.f32 %v6376, %v6424
        %v6426 = vpop.f32.mrf.mxu0
        %v6427 = vadd.f32 %v6378, %v6426
        %6428 = vmatmul.bf16.gmra.mxu0 %v5228
        %v6429 = vpop.f32.mrf.mxu0
        %v6430 = vadd.f32 %v6381, %v6429
        %v6431 = vpop.f32.mrf.mxu0
        %v6432 = vadd.f32 %v6383, %v6431
        %6433 = vmatmul.bf16.gmra.mxu0 %v5357
        %v6434 = vpop.f32.mrf.mxu0
        %v6435 = vadd.f32 %v6386, %v6434
        %v6436 = vpop.f32.mrf.mxu0
        %v6437 = vadd.f32 %v6388, %v6436
        %6438 = vmatmul.bf16.gmra.mxu0 %v5486
        %v6439 = vpop.f32.mrf.mxu0
        %v6440 = vadd.f32 %v6391, %v6439
        %v6441 = vpop.f32.mrf.mxu0
        %v6442 = vadd.f32 %v6393, %v6441
        %6443 = vdwg.mxu0
        %6444 = vmatpush.bf16.msra.mxu0 %v6102
        %6445 = vmatpush.bf16.msra.mxu0 %v6101
        %6446 = vmatpush.bf16.msra.mxu0 %v6100
        %6447 = vmatpush.bf16.msra.mxu0 %v6099
        %6448 = vmatpush.bf16.msra.mxu0 %v6098
        %6449 = vmatpush.bf16.msra.mxu0 %v6097
        %6450 = vmatpush.bf16.msra.mxu0 %v6096
        %6451 = vmatpush.bf16.msra.mxu0 %v6095
        %6452 = vmatmul.bf16.gmra.mxu0 %v4600
        %v6453 = vpop.f32.mrf.mxu0
        %v6454 = vadd.f32 %v6405, %v6453
        %v6455 = vpop.f32.mrf.mxu0
        %v6456 = vadd.f32 %v6407, %v6455
        %6457 = vmatmul.bf16.gmra.mxu0 %v4729
        %v6458 = vpop.f32.mrf.mxu0
        %v6459 = vadd.f32 %v6410, %v6458
        %v6460 = vpop.f32.mrf.mxu0
        %v6461 = vadd.f32 %v6412, %v6460
        %6462 = vmatmul.bf16.gmra.mxu0 %v4858
        %v6463 = vpop.f32.mrf.mxu0
        %v6464 = vadd.f32 %v6415, %v6463
        %v6465 = vpop.f32.mrf.mxu0
        %v6466 = vadd.f32 %v6417, %v6465
        %6467 = vmatmul.bf16.gmra.mxu0 %v4987
        %v6468 = vpop.f32.mrf.mxu0
        %v6469 = vadd.f32 %v6420, %v6468
        %v6470 = vpop.f32.mrf.mxu0
        %v6471 = vadd.f32 %v6422, %v6470
        %6472 = vmatmul.bf16.gmra.mxu0 %v5116
        %v6473 = vpop.f32.mrf.mxu0
        %v6474 = vadd.f32 %v6425, %v6473
        %v6475 = vpop.f32.mrf.mxu0
        %v6476 = vadd.f32 %v6427, %v6475
        %6477 = vmatmul.bf16.gmra.mxu0 %v5245
        %v6478 = vpop.f32.mrf.mxu0
        %v6479 = vadd.f32 %v6430, %v6478
        %v6480 = vpop.f32.mrf.mxu0
        %v6481 = vadd.f32 %v6432, %v6480
        %6482 = vmatmul.bf16.gmra.mxu0 %v5374
        %v6483 = vpop.f32.mrf.mxu0
        %v6484 = vadd.f32 %v6435, %v6483
        %v6485 = vpop.f32.mrf.mxu0
        %v6486 = vadd.f32 %v6437, %v6485
        %6487 = vmatmul.bf16.gmra.mxu0 %v5503
        %v6488 = vpop.f32.mrf.mxu0
        %v6489 = vadd.f32 %v6440, %v6488
        %v6490 = vpop.f32.mrf.mxu0
        %v6491 = vadd.f32 %v6442, %v6490
        %6492 = vdwg.mxu0
        %6493 = vmatpush.bf16.msra.mxu0 %v6110
        %6494 = vmatpush.bf16.msra.mxu0 %v6109
        %6495 = vmatpush.bf16.msra.mxu0 %v6108
        %6496 = vmatpush.bf16.msra.mxu0 %v6107
        %6497 = vmatpush.bf16.msra.mxu0 %v6106
        %6498 = vmatpush.bf16.msra.mxu0 %v6105
        %6499 = vmatpush.bf16.msra.mxu0 %v6104
        %6500 = vmatpush.bf16.msra.mxu0 %v6103
        %6501 = vmatmul.bf16.gmra.mxu0 %v4617
        %v6502 = vpop.f32.mrf.mxu0
        %v6503 = vadd.f32 %v6454, %v6502
        %v6504 = vpop.f32.mrf.mxu0
        %v6505 = vadd.f32 %v6456, %v6504
        %6506 = vmatmul.bf16.gmra.mxu0 %v4746
        %v6507 = vpop.f32.mrf.mxu0
        %v6508 = vadd.f32 %v6459, %v6507
        %v6509 = vpop.f32.mrf.mxu0
        %v6510 = vadd.f32 %v6461, %v6509
        %6511 = vmatmul.bf16.gmra.mxu0 %v4875
        %v6512 = vpop.f32.mrf.mxu0
        %v6513 = vadd.f32 %v6464, %v6512
        %v6514 = vpop.f32.mrf.mxu0
        %v6515 = vadd.f32 %v6466, %v6514
        %6516 = vmatmul.bf16.gmra.mxu0 %v5004
        %v6517 = vpop.f32.mrf.mxu0
        %v6518 = vadd.f32 %v6469, %v6517
        %v6519 = vpop.f32.mrf.mxu0
        %v6520 = vadd.f32 %v6471, %v6519
        %6521 = vmatmul.bf16.gmra.mxu0 %v5133
        %v6522 = vpop.f32.mrf.mxu0
        %v6523 = vadd.f32 %v6474, %v6522
        %v6524 = vpop.f32.mrf.mxu0
        %v6525 = vadd.f32 %v6476, %v6524
        %6526 = vmatmul.bf16.gmra.mxu0 %v5262
        %v6527 = vpop.f32.mrf.mxu0
        %v6528 = vadd.f32 %v6479, %v6527
        %v6529 = vpop.f32.mrf.mxu0
        %v6530 = vadd.f32 %v6481, %v6529
        %6531 = vmatmul.bf16.gmra.mxu0 %v5391
        %v6532 = vpop.f32.mrf.mxu0
        %v6533 = vadd.f32 %v6484, %v6532
        %v6534 = vpop.f32.mrf.mxu0
        %v6535 = vadd.f32 %v6486, %v6534
        %6536 = vmatmul.bf16.gmra.mxu0 %v5520
        %v6537 = vpop.f32.mrf.mxu0
        %v6538 = vadd.f32 %v6489, %v6537
        %v6539 = vpop.f32.mrf.mxu0
        %v6540 = vadd.f32 %v6491, %v6539
        %6541 = vdwg.mxu0
        %6542 = vmatpush.bf16.msra.mxu0 %v6118
        %6543 = vmatpush.bf16.msra.mxu0 %v6117
        %6544 = vmatpush.bf16.msra.mxu0 %v6116
        %6545 = vmatpush.bf16.msra.mxu0 %v6115
        %6546 = vmatpush.bf16.msra.mxu0 %v6114
        %6547 = vmatpush.bf16.msra.mxu0 %v6113
        %6548 = vmatpush.bf16.msra.mxu0 %v6112
        %6549 = vmatpush.bf16.msra.mxu0 %v6111
        %6550 = vmatmul.bf16.gmra.mxu0 %v4626
        %v6551 = vpop.f32.mrf.mxu0
        %v6552 = vadd.f32 %v6503, %v6551
        %v6553 = vpop.f32.mrf.mxu0
        %v6554 = vadd.f32 %v6505, %v6553
        %6555 = vmatmul.bf16.gmra.mxu0 %v4755
        %v6556 = vpop.f32.mrf.mxu0
        %v6557 = vadd.f32 %v6508, %v6556
        %v6558 = vpop.f32.mrf.mxu0
        %v6559 = vadd.f32 %v6510, %v6558
        %6560 = vmatmul.bf16.gmra.mxu0 %v4884
        %v6561 = vpop.f32.mrf.mxu0
        %v6562 = vadd.f32 %v6513, %v6561
        %v6563 = vpop.f32.mrf.mxu0
        %v6564 = vadd.f32 %v6515, %v6563
        %6565 = vmatmul.bf16.gmra.mxu0 %v5013
        %v6566 = vpop.f32.mrf.mxu0
        %v6567 = vadd.f32 %v6518, %v6566
        %v6568 = vpop.f32.mrf.mxu0
        %v6569 = vadd.f32 %v6520, %v6568
        %6570 = vmatmul.bf16.gmra.mxu0 %v5142
        %v6571 = vpop.f32.mrf.mxu0
        %v6572 = vadd.f32 %v6523, %v6571
        %v6573 = vpop.f32.mrf.mxu0
        %v6574 = vadd.f32 %v6525, %v6573
        %6575 = vmatmul.bf16.gmra.mxu0 %v5271
        %v6576 = vpop.f32.mrf.mxu0
        %v6577 = vadd.f32 %v6528, %v6576
        %v6578 = vpop.f32.mrf.mxu0
        %v6579 = vadd.f32 %v6530, %v6578
        %6580 = vmatmul.bf16.gmra.mxu0 %v5400
        %v6581 = vpop.f32.mrf.mxu0
        %v6582 = vadd.f32 %v6533, %v6581
        %v6583 = vpop.f32.mrf.mxu0
        %v6584 = vadd.f32 %v6535, %v6583
        %6585 = vmatmul.bf16.gmra.mxu0 %v5529
        %v6586 = vpop.f32.mrf.mxu0
        %v6587 = vadd.f32 %v6538, %v6586
        %v6588 = vpop.f32.mrf.mxu0
        %v6589 = vadd.f32 %v6540, %v6588
        %6590 = vdwg.mxu0
        %6591 = vmatpush.bf16.msra.mxu0 %v6126
        %6592 = vmatpush.bf16.msra.mxu0 %v6125
        %6593 = vmatpush.bf16.msra.mxu0 %v6124
        %6594 = vmatpush.bf16.msra.mxu0 %v6123
        %6595 = vmatpush.bf16.msra.mxu0 %v6122
        %6596 = vmatpush.bf16.msra.mxu0 %v6121
        %6597 = vmatpush.bf16.msra.mxu0 %v6120
        %6598 = vmatpush.bf16.msra.mxu0 %v6119
        %6599 = vmatmul.bf16.gmra.mxu0 %v4643
        %v6600 = vpop.f32.mrf.mxu0
        %v6601 = vadd.f32 %v6552, %v6600
        %v6602 = vpop.f32.mrf.mxu0
        %v6603 = vadd.f32 %v6554, %v6602
        %6604 = vmatmul.bf16.gmra.mxu0 %v4772
        %v6605 = vpop.f32.mrf.mxu0
        %v6606 = vadd.f32 %v6557, %v6605
        %v6607 = vpop.f32.mrf.mxu0
        %v6608 = vadd.f32 %v6559, %v6607
        %6609 = vmatmul.bf16.gmra.mxu0 %v4901
        %v6610 = vpop.f32.mrf.mxu0
        %v6611 = vadd.f32 %v6562, %v6610
        %v6612 = vpop.f32.mrf.mxu0
        %v6613 = vadd.f32 %v6564, %v6612
        %6614 = vmatmul.bf16.gmra.mxu0 %v5030
        %v6615 = vpop.f32.mrf.mxu0
        %v6616 = vadd.f32 %v6567, %v6615
        %v6617 = vpop.f32.mrf.mxu0
        %v6618 = vadd.f32 %v6569, %v6617
        %6619 = vmatmul.bf16.gmra.mxu0 %v5159
        %v6620 = vpop.f32.mrf.mxu0
        %v6621 = vadd.f32 %v6572, %v6620
        %v6622 = vpop.f32.mrf.mxu0
        %v6623 = vadd.f32 %v6574, %v6622
        %6624 = vmatmul.bf16.gmra.mxu0 %v5288
        %v6625 = vpop.f32.mrf.mxu0
        %v6626 = vadd.f32 %v6577, %v6625
        %v6627 = vpop.f32.mrf.mxu0
        %v6628 = vadd.f32 %v6579, %v6627
        %6629 = vmatmul.bf16.gmra.mxu0 %v5417
        %v6630 = vpop.f32.mrf.mxu0
        %v6631 = vadd.f32 %v6582, %v6630
        %v6632 = vpop.f32.mrf.mxu0
        %v6633 = vadd.f32 %v6584, %v6632
        %6634 = vmatmul.bf16.gmra.mxu0 %v5546
        %v6635 = vpop.f32.mrf.mxu0
        %v6636 = vadd.f32 %v6587, %v6635
        %v6637 = vpop.f32.mrf.mxu0
        %v6638 = vadd.f32 %v6589, %v6637
        %6639 = vdwg.mxu0
        %v6640 = vadd.f32 %v6601, %v385
        %v6641 = vadd.f32 %v6603, %v386
        %v6642 = vadd.f32 %v6606, %v387
        %v6643 = vadd.f32 %v6608, %v388
        %v6644 = vadd.f32 %v6611, %v389
        %v6645 = vadd.f32 %v6613, %v390
        %v6646 = vadd.f32 %v6616, %v391
        %v6647 = vadd.f32 %v6618, %v392
        %v6648 = vadd.f32 %v6621, %v393
        %v6649 = vadd.f32 %v6623, %v394
        %v6650 = vadd.f32 %v6626, %v395
        %v6651 = vadd.f32 %v6628, %v396
        %v6652 = vadd.f32 %v6631, %v397
        %v6653 = vadd.f32 %v6633, %v398
        %v6654 = vadd.f32 %v6636, %v399
        %v6655 = vadd.f32 %v6638, %v400
        %v6656 = vmax.f32 %v6640, 0.0
        %v6657 = vmax.f32 %v6641, 0.0
        %v6658 = vmax.f32 %v6642, 0.0
        %v6659 = vmax.f32 %v6643, 0.0
        %v6660 = vmax.f32 %v6644, 0.0
        %v6661 = vmax.f32 %v6645, 0.0
        %v6662 = vmax.f32 %v6646, 0.0
        %v6663 = vmax.f32 %v6647, 0.0
        %v6664 = vmax.f32 %v6648, 0.0
        %v6665 = vmax.f32 %v6649, 0.0
        %v6666 = vmax.f32 %v6650, 0.0
        %v6667 = vmax.f32 %v6651, 0.0
        %v6668 = vmax.f32 %v6652, 0.0
        %v6669 = vmax.f32 %v6653, 0.0
        %v6670 = vmax.f32 %v6654, 0.0
        %v6671 = vmax.f32 %v6655, 0.0
        %6672 = vst [vmem:[%s291] sm:$0xff] %v6656
        %6673 = vst [vmem:[%s291 + $0x8] sm:$0xff] %v6657
        %6674 = vst [vmem:[%s291 + $0x10] sm:$0xff] %v6658
        %6675 = vst [vmem:[%s291 + $0x18] sm:$0xff] %v6659
        %6676 = vst [vmem:[%s291 + $0x20] sm:$0xff] %v6660
        %6677 = vst [vmem:[%s291 + $0x28] sm:$0xff] %v6661
        %6678 = vst [vmem:[%s291 + $0x30] sm:$0xff] %v6662
        %6679 = vst [vmem:[%s291 + $0x38] sm:$0xff] %v6663
        %6680 = vst [vmem:[%s291 + $0x40] sm:$0xff] %v6664
        %6681 = vst [vmem:[%s291 + $0x48] sm:$0xff] %v6665
        %6682 = vst [vmem:[%s291 + $0x50] sm:$0xff] %v6666
        %6683 = vst [vmem:[%s291 + $0x58] sm:$0xff] %v6667
        %6684 = vst [vmem:[%s291 + $0x60] sm:$0xff] %v6668
        %6685 = vst [vmem:[%s291 + $0x68] sm:$0xff] %v6669
        %6686 = vst [vmem:[%s291 + $0x70] sm:$0xff] %v6670
        %6687 = vst [vmem:[%s291 + $0x78] sm:$0xff] %v6671
        %s6688 = sand.u32 %s155, 1
        %s6689 = scalar_lea.sflag [#allocation6], %s6688
        %s6690 = sand.u32 %s155, 1
        %s6691 = smul.addr %s6690, 128
        %s6692 = scalar_lea.vmem [#allocation10], %s6691
        // Predicated region
        $region77: #{tpu_custom_call.1} parent=39 // pred_check
          %p6693 = pneg %p165
        $region78: #{tpu_custom_call.1} parent=39 // pred_check_branch
          %6695 = sbr.rel (%p6693) target = $region80
        $region79: #{tpu_custom_call.1} parent=39 // pred_region
          %s6696 = smul.u32 8, %s28
          %6698 = vsyncadd %s6689, 0
          %s6699 = smul.addr %s6696, 2
          %s6700 = smul.addr %s27, 32
          %s6701 = sadd.s32 %s6699, %s6700
          %s6702 = smul.addr %s6701, 8
          %s6703 = scalar_lea.hbm %s5, %s6702
          %s6704 = sshll.u32 %s6692, 4
          %s6705 = int_to_ptr.vmem [resolvable:$true] %s6704
          %s6706 = sshll.u32 %s6703, 4
          %s6707 = int_to_ptr.hbm [resolvable:$true] %s6706
          %6712 = dma.vmem_to_hbm [thread:$0]  %s6705, 2048, %s6707, %s6689, 128, 128, 8
        $region80: #{tpu_custom_call.1} parent=39 // pred_fallthru
          _
      $region40: #{tpu_custom_call.1} parent=5 // pred_fallthru
        _
      %p6713 = scmp.le.s32.totalorder 2, %s18
      // Predicated region
      $region81: #{tpu_custom_call.1} parent=5 // pred_check
        %p6714 = pneg %p6713
      $region82: #{tpu_custom_call.1} parent=5 // pred_check_branch
        %6716 = sbr.rel (%p6714) target = $region84
      $region83: #{tpu_custom_call.1} parent=5 // pred_region
        %s6717 = ssub.s32 %s18, 2
        // Predicated region
        $region85: #{tpu_custom_call.1} parent=83 // pred_check
          %p6718 = pneg %p171
        $region86: #{tpu_custom_call.1} parent=83 // pred_check_branch
          %6720 = sbr.rel (%p6718) target = $region88
        $region87: #{tpu_custom_call.1} parent=83 // pred_region
          %s6721 = sand.u32 %s156, 1
          %s6722 = scalar_lea.sflag [#allocation6], %s6721
          %s6723 = sand.u32 %s156, 1
          %s6724 = smul.addr %s6723, 128
          %s6725 = scalar_lea.vmem [#allocation10], %s6724
          %6727 = dma.done %s6722, 2048
        $region88: #{tpu_custom_call.1} parent=83 // pred_fallthru
          _
      $region84: #{tpu_custom_call.1} parent=5 // pred_fallthru
        _
    $region6: #{tpu_custom_call.1} parent=1 // loop_footer
      %s22 = sadd.s32 1, %s18
    $region7: #{tpu_custom_call.1} parent=1 // loop_footer_branch
      %17 = sbr.rel target = $region3
    $region8: #{tpu_custom_call.1} parent=1 // loop_exit
      _
    %6728 = vsyncpa [#allocation5], 1
    %s6729 = scalar_lea.sflag [#allocation5], 1
    %6730 = vsyncpa %s6729, 1
    %6731 = vsyncpa [#allocation8], 1
    %6732 = vsyncpa [#allocation6], 1
    %s6733 = scalar_lea.sflag [#allocation6], 1
    %6734 = vsyncpa %s6733, 1

</llo_original>
